<compile_context>
chip_gen: v5e
topology: v5e:2x2
jax: 0.10.0
libtpu: 0.0.40
codegen_flags: <defaults>
</compile_context>

<pallas_src>
import functools

import jax
import jax.numpy as jnp
import numpy as np
from jax.experimental import pallas as pl
from jax.experimental.pallas import tpu as pltpu


def _bottleneck_kernel(x_ref, w1_ref, w2_ref, w3_ref, b1_ref, b2_ref, b3_ref,
                       o_ref, pad_ref, *, TH, W, WP, Pp):
    """One (image, row-block) per grid step.

    x_ref  : (H+2, W, C)      bf16  full image, 1 zero halo row top & bottom;
                                    block index ignores the row axis so it is
                                    DMA'd once per image, not per row-block.
    w1_ref : (C, Pp)          bf16  conv1 1x1, BN1 scale folded
    w2_ref : (9, Pp, Pp)      bf16  conv2 3x3 taps (ky*3+kx, in, out), BN2 folded
    w3_ref : (Pp, C)          bf16  conv3 1x1, BN3 scale folded
    b*_ref : (1, Pp | C)      f32   folded BN biases
    o_ref  : (TH, W, C)       bf16  TH output rows of this image
    pad_ref: ((TH+3)*WP, Pp)  bf16  persistent scratch: zero-padded conv2
                                    input flattened with row pitch
                                    WP = round_up(W+2, 8).
    """
    f32, bf16 = jnp.float32, jnp.bfloat16
    r = pl.program_id(1)
    last = pl.num_programs(1) - 1
    C = x_ref.shape[-1]

    # Zero the slab once per image: halo columns 0 / W+1, tail columns and the
    # safety rows are never written again.  Keyed on the sequential row axis,
    # so it runs for every image no matter how the batch axis is sharded.
    @pl.when(r == 0)
    def _():
        pad_ref[...] = jnp.zeros_like(pad_ref)

    # ---- conv1 (1x1) + bn1 + relu on TH output rows + 2 halo rows ---------
    i0 = pl.multiple_of(r * TH, TH)
    xs = x_ref[pl.ds(i0, TH + 2), :, :]                    # (TH+2, W, C) bf16
    h1 = jnp.dot(xs.reshape((TH + 2) * W, C), w1_ref[...],
                 preferred_element_type=f32)
    h1 = jnp.maximum(h1 + b1_ref[...], 0.0)                # ((TH+2)*W, Pp) f32
    h1b = h1.astype(bf16).reshape(TH + 2, W, Pp)

    # Store only the slab interior (one contiguous (W, Pp) store per padded
    # row).  Halo columns stay zero from the r == 0 init; tail columns
    # W+2..WP-1 may hold stale (finite) data across images — they only feed
    # the garbage outputs sliced away below.
    for s in range(TH + 2):
        pad_ref[pl.ds(s * WP + 1, W), :] = h1b[s]

    # Image-boundary halo rows must be zero (the h1 computed from the
    # wrapper's zero x rows would be relu(b1), not zero).
    @pl.when(r == 0)
    def _():
        pad_ref[pl.ds(1, W), :] = jnp.zeros((W, Pp), bf16)

    @pl.when(r == last)
    def _():
        pad_ref[pl.ds((TH + 1) * WP + 1, W), :] = jnp.zeros((W, Pp), bf16)

    # ---- conv2 (3x3, stride 1, pad 1) + bn2 + relu -------------------------
    # Padded-pitch trick: output flat index g = y*WP + x reads the slab at
    # g + ky*WP + kx, so every tap is one contiguous window read + one matmul.
    # Columns x >= W of each row group are garbage and sliced away below.
    G = TH * WP
    acc = jnp.dot(pad_ref[0:G, :], w2_ref[0],
                  preferred_element_type=f32) + b2_ref[...]
    for t in range(1, 9):
        ky, kx = divmod(t, 3)
        off = ky * WP + kx
        acc = acc + jnp.dot(pad_ref[off:off + G, :], w2_ref[t],
                            preferred_element_type=f32)
    # Compact to W pitch, fused with the bf16 cast conv3 needs anyway.
    h2b = (jnp.maximum(acc, 0.0).astype(bf16)
           .reshape(TH, WP, Pp)[:, :W, :].reshape(TH * W, Pp))

    # ---- conv3 (1x1) + bn3 + residual add + relu ---------------------------
    h3 = jnp.dot(h2b, w3_ref[...], preferred_element_type=f32)
    res = xs[1:TH + 1].reshape(TH * W, C).astype(f32)
    out = jnp.maximum(h3 + b3_ref[...] + res, 0.0)
    o_ref[...] = out.astype(o_ref.dtype).reshape(TH, W, C)


def bottleneck_forward_nhwc(x_nhwc, params, *, row_block=8):
    """Fused Bottleneck on NHWC bf16 activations with lane-padded channels.

    x_nhwc: (N, H, W, C) bf16, C a multiple of 128 (zero channel padding),
    C == padded(4*planes).  Returns the same layout/dtype; a chain of blocks
    keeps this layout end-to-end and converts only at the network edges.
    """
    N, H, W, C = x_nhwc.shape
    Pp = params["w1"].shape[1]
    assert params["w1"].shape[0] == C
    TH = row_block if H % row_block == 0 else H     # rows per grid step
    WP = -(-(W + 2) // 8) * 8                       # slab row pitch (8-aligned)

    # One zero halo row above and below (source rows of conv2 'same' padding).
    xp = jnp.pad(x_nhwc, ((0, 0), (1, 1), (0, 0), (0, 0)))

    kernel = functools.partial(_bottleneck_kernel, TH=TH, W=W, WP=WP, Pp=Pp)

    return pl.pallas_call(
        kernel,
        out_shape=jax.ShapeDtypeStruct((N, H, W, C), jnp.bfloat16),
        grid_spec=pltpu.PrefetchScalarGridSpec(
            num_scalar_prefetch=0,
            grid=(N, H // TH),
            in_specs=[
                # Full image per step; index ignores r -> fetched once per n.
                pl.BlockSpec((None, H + 2, W, C), lambda n, r: (n, 0, 0, 0)),
                pl.BlockSpec((C, Pp), lambda n, r: (0, 0)),          # w1
                pl.BlockSpec((9, Pp, Pp), lambda n, r: (0, 0, 0)),   # w2 taps
                pl.BlockSpec((Pp, C), lambda n, r: (0, 0)),          # w3
                pl.BlockSpec((1, Pp), lambda n, r: (0, 0)),          # b1
                pl.BlockSpec((1, Pp), lambda n, r: (0, 0)),          # b2
                pl.BlockSpec((1, C), lambda n, r: (0, 0)),           # b3
            ],
            out_specs=pl.BlockSpec((None, TH, W, C), lambda n, r: (n, r, 0, 0)),
            scratch_shapes=[pltpu.VMEM(((TH + 3) * WP, Pp), jnp.bfloat16)],
        ),
        compiler_params=pltpu.CompilerParams(
            # Batch axis is megacore-parallel; the row-block axis must stay
            # sequential because the persistent slab is initialised at r == 0.
            dimension_semantics=("parallel", "arbitrary"),
            vmem_limit_bytes=64 * 1024 * 1024),
    )(xp, params["w1"], params["w2"], params["w3"],
      params["b1"], params["b2"], params["b3"])


def bottleneck_forward(x_nchw, params):
    """PyTorch-layout convenience wrapper (NCHW f32 in / out).

    For a chain of Bottleneck blocks, keep activations in the kernel's padded
    NHWC bf16 layout (bottleneck_forward_nhwc) and convert only at the ends —
    these transposes are test-harness glue, not part of the hot path.
    """
    N, Cin, H, W = x_nchw.shape
    cout = params["cout"]
    C = params["w1"].shape[0]
    assert Cin == cout, "identity residual requires inplanes == 4*planes"

    x = jnp.transpose(x_nchw, (0, 2, 3, 1)).astype(jnp.bfloat16)
    x = jnp.pad(x, ((0, 0), (0, 0), (0, 0), (0, C - Cin)))
    out = bottleneck_forward_nhwc(x, params)
    out = out[..., :cout].astype(jnp.float32)
    return jnp.transpose(out, (0, 3, 1, 2))


def _round_up(v, m):
    return ((v + m - 1) // m) * m


def make_params(key, inplanes, planes, eps=1e-5):
    """Deterministic synthetic parameters with BN folded (eval mode).

    scale = gamma / sqrt(var + eps) is multiplied into the conv weights
    (per output channel); bias = beta - mean * scale is added in-kernel.
    Weights are bf16 and channel-padded to multiples of 128 lanes.
    """
    exp = 4
    cout = planes * exp
    assert inplanes == cout, "identity residual requires inplanes == 4*planes"
    C = _round_up(inplanes, 128)
    Pp = _round_up(planes, 128)

    kw1, kw2, kw3, kb1, kb2, kb3 = jax.random.split(key, 6)

    def bn_fold(k, c):
        kg, kb, km, kv = jax.random.split(k, 4)
        gamma = jax.random.uniform(kg, (c,), jnp.float32, 0.5, 1.5)
        beta = jax.random.normal(kb, (c,), jnp.float32) * 0.1
        mean = jax.random.normal(km, (c,), jnp.float32) * 0.1
        var = jax.random.uniform(kv, (c,), jnp.float32, 0.5, 1.5)
        scale = gamma / jnp.sqrt(var + eps)
        bias = beta - mean * scale
        return scale, bias

    s1, b1 = bn_fold(kb1, planes)
    s2, b2 = bn_fold(kb2, planes)
    s3, b3 = bn_fold(kb3, cout)

    # Conv weights (PyTorch (out, in, kh, kw) semantics), BN scale folded,
    # cast once to bf16 so kernel and reference use identical values.
    w1 = (jax.random.normal(kw1, (planes, inplanes), jnp.float32) * 0.1
          * s1[:, None]).astype(jnp.bfloat16)                        # (o, i)
    w2 = (jax.random.normal(kw2, (planes, planes, 3, 3), jnp.float32) * 0.1
          * s2[:, None, None, None]).astype(jnp.bfloat16)            # (o,i,3,3)
    w3 = (jax.random.normal(kw3, (cout, planes), jnp.float32) * 0.1
          * s3[:, None]).astype(jnp.bfloat16)                        # (o, i)

    # Kernel layouts: (in, out) matmul form, taps flattened, channel-padded.
    w1k = jnp.zeros((C, Pp), jnp.bfloat16).at[:inplanes, :planes].set(w1.T)
    w2_taps = jnp.transpose(w2, (2, 3, 1, 0)).reshape(9, planes, planes)
    w2k = jnp.zeros((9, Pp, Pp), jnp.bfloat16).at[:, :planes, :planes].set(w2_taps)
    w3k = jnp.zeros((Pp, C), jnp.bfloat16).at[:planes, :cout].set(w3.T)

    b1k = jnp.zeros((1, Pp), jnp.float32).at[0, :planes].set(b1)
    b2k = jnp.zeros((1, Pp), jnp.float32).at[0, :planes].set(b2)
    b3k = jnp.zeros((1, C), jnp.float32).at[0, :cout].set(b3)

    return {
        "w1": w1k, "w2": w2k, "w3": w3k,
        "b1": b1k, "b2": b2k, "b3": b3k,
        "cout": cout,
        # Unpadded torch-layout copies for the pure-JAX reference check.
        "_w1": w1[:, :, None, None], "_w2": w2, "_w3": w3[:, :, None, None],
        "_b1": b1, "_b2": b2, "_b3": b3,
    }


def _reference(x, p):
    """Pure-JAX NCHW reference with matching numerics (bf16 conv inputs and
    bf16 residual, f32 accumulation, folded eval-mode BN)."""
    def conv(inp, w, pad):
        return jax.lax.conv_general_dilated(
            inp.astype(jnp.bfloat16), w,
            window_strides=(1, 1), padding=[(pad, pad), (pad, pad)],
            dimension_numbers=("NCHW", "OIHW", "NCHW"),
            preferred_element_type=jnp.float32)

    def add_bias(t, b):
        return t + b[None, :, None, None]

    h = jax.nn.relu(add_bias(conv(x, p["_w1"], 0), p["_b1"]))
    h = jax.nn.relu(add_bias(conv(h, p["_w2"], 1), p["_b2"]))
    h = add_bias(conv(h, p["_w3"], 0), p["_b3"])
    # The kernel carries the residual as bf16 (bf16 HBM I/O).
    return jax.nn.relu(h + x.astype(jnp.bfloat16).astype(jnp.float32))


if __name__ == "__main__":
    planes = 4
    inplanes = planes * 4          # 16: identity residual is valid
    N, H, W = 2, 16, 16

    key = jax.random.PRNGKey(0)
    kx, kp = jax.random.split(key)
    x = jax.random.normal(kx, (N, inplanes, H, W), jnp.float32)
    params = make_params(kp, inplanes, planes)

    out = jax.block_until_ready(bottleneck_forward(x, params))
    ref = jax.block_until_ready(_reference(x, params))
    np.testing.assert_allclose(np.asarray(out, dtype=np.float32),
                               np.asarray(ref, dtype=np.float32),
                               rtol=1e-2, atol=1e-2)
    print("KERNEL_OK")
</pallas_src>

<mosaic_0001>
module attributes {stable_mosaic.version = 11 : i64} {
  func.func @_bottleneck_kernel(%arg0: i32, %arg1: i32, %arg2: memref<1x18x16x128xbf16, #tpu.memory_space<vmem>>, %arg3: memref<128x128xbf16, #tpu.memory_space<vmem>>, %arg4: memref<9x128x128xbf16, #tpu.memory_space<vmem>>, %arg5: memref<128x128xbf16, #tpu.memory_space<vmem>>, %arg6: memref<1x128xf32, #tpu.memory_space<vmem>>, %arg7: memref<1x128xf32, #tpu.memory_space<vmem>>, %arg8: memref<1x128xf32, #tpu.memory_space<vmem>>, %arg9: memref<1x8x16x128xbf16, #tpu.memory_space<vmem>>, %arg10: memref<264x128xbf16, #tpu.memory_space<vmem>>) attributes {dimension_semantics = [#tpu.dimension_semantics<parallel>, #tpu.dimension_semantics<arbitrary>], iteration_bounds = array<i64: 2, 2>, scalar_prefetch = 0 : i64, scratch_operands = 1 : i64, tpu.core_type = #tpu.core_type<tc>, window_params = [{transform_indices = @transform_0, window_bounds = array<i64: 1, 18, 16, 128>}, {pipeline_mode = #tpu.pipeline_mode<synchronous>, transform_indices = @transform_1, window_bounds = array<i64: 128, 128>}, {pipeline_mode = #tpu.pipeline_mode<synchronous>, transform_indices = @transform_2, window_bounds = array<i64: 9, 128, 128>}, {pipeline_mode = #tpu.pipeline_mode<synchronous>, transform_indices = @transform_3, window_bounds = array<i64: 128, 128>}, {pipeline_mode = #tpu.pipeline_mode<synchronous>, transform_indices = @transform_4, window_bounds = array<i64: 1, 128>}, {pipeline_mode = #tpu.pipeline_mode<synchronous>, transform_indices = @transform_5, window_bounds = array<i64: 1, 128>}, {pipeline_mode = #tpu.pipeline_mode<synchronous>, transform_indices = @transform_6, window_bounds = array<i64: 1, 128>}, {transform_indices = @transform_7, window_bounds = array<i64: 1, 8, 16, 128>}]} {
    %c0_i32 = arith.constant 0 : i32
    %0 = arith.cmpi eq, %arg1, %c0_i32 : i32
    %1 = arith.extui %0 : i1 to i32
    %c0_i32_0 = arith.constant 0 : i32
    %2 = arith.cmpi ne, %1, %c0_i32_0 : i32
    scf.if %2 {
      %cst_77 = arith.constant 0.000000e+00 : bf16
      %123 = vector.broadcast %cst_77 : bf16 to vector<264x128xbf16>
      %c0_78 = arith.constant 0 : index
      %c0_79 = arith.constant 0 : index
      %124 = vector.load %arg10[%c0_78, %c0_79] : memref<264x128xbf16, #tpu.memory_space<vmem>>, vector<264x128xbf16>
      tpu.vector_store %arg10[%c0_78, %c0_79], %123 {strides = array<i32>} : memref<264x128xbf16, #tpu.memory_space<vmem>>, vector<264x128xbf16>,
    } else {
    }
    %c8_i32 = arith.constant 8 : i32
    %3 = arith.muli %arg1, %c8_i32 : i32
    %4 = tpu.assume_multiple %3, 8 : i32
    %c0 = arith.constant 0 : index
    %5 = arith.index_cast %4 : i32 to index
    %c0_1 = arith.constant 0 : index
    %c0_2 = arith.constant 0 : index
    %6 = vector.load %arg2[%c0, %5, %c0_1, %c0_2] : memref<1x18x16x128xbf16, #tpu.memory_space<vmem>>, vector<1x10x16x128xbf16>
    %7 = vector.shape_cast %6 : vector<1x10x16x128xbf16> to vector<10x16x128xbf16>
    %8 = vector.shape_cast %7 : vector<10x16x128xbf16> to vector<160x128xbf16>
    %c0_3 = arith.constant 0 : index
    %c0_4 = arith.constant 0 : index
    %9 = vector.load %arg3[%c0_3, %c0_4] : memref<128x128xbf16, #tpu.memory_space<vmem>>, vector<128x128xbf16>
    %cst = arith.constant dense<0.000000e+00> : vector<160x128xf32>
    %10 = tpu.matmul %8, %9, %cst {dimension_numbers = #tpu.dot_dimension_numbers<[1], [0], [0], [1], [0, 0, 1, 1], [], []>} : vector<160x128xbf16>, vector<128x128xbf16>, vector<160x128xf32> -> vector<160x128xf32>
    %c0_5 = arith.constant 0 : index
    %c0_6 = arith.constant 0 : index
    %11 = vector.load %arg6[%c0_5, %c0_6] : memref<1x128xf32, #tpu.memory_space<vmem>>, vector<1x128xf32>
    %12 = vector.broadcast %11 : vector<1x128xf32> to vector<160x128xf32>
    %13 = arith.addf %10, %12 : vector<160x128xf32>
    %cst_7 = arith.constant 0.000000e+00 : f32
    %14 = vector.broadcast %cst_7 : f32 to vector<160x128xf32>
    %15 = arith.maximumf %13, %14 : vector<160x128xf32>
    %16 = arith.truncf %15 : vector<160x128xf32> to vector<160x128xbf16>
    %17 = vector.shape_cast %16 : vector<160x128xbf16> to vector<10x16x128xbf16>
    %18 = vector.extract_strided_slice %17 {offsets = [0, 0, 0], sizes = [1, 16, 128], strides = [1, 1, 1]} : vector<10x16x128xbf16> to vector<1x16x128xbf16>
    %19 = vector.shape_cast %18 : vector<1x16x128xbf16> to vector<16x128xbf16>
    %c1 = arith.constant 1 : index
    %c0_8 = arith.constant 0 : index
    %20 = vector.load %arg10[%c1, %c0_8] : memref<264x128xbf16, #tpu.memory_space<vmem>>, vector<16x128xbf16>
    tpu.vector_store %arg10[%c1, %c0_8], %19 {strides = array<i32>} : memref<264x128xbf16, #tpu.memory_space<vmem>>, vector<16x128xbf16>,
    %21 = vector.extract_strided_slice %17 {offsets = [1, 0, 0], sizes = [1, 16, 128], strides = [1, 1, 1]} : vector<10x16x128xbf16> to vector<1x16x128xbf16>
    %22 = vector.shape_cast %21 : vector<1x16x128xbf16> to vector<16x128xbf16>
    %c25 = arith.constant 25 : index
    %c0_9 = arith.constant 0 : index
    %23 = vector.load %arg10[%c25, %c0_9] : memref<264x128xbf16, #tpu.memory_space<vmem>>, vector<16x128xbf16>
    tpu.vector_store %arg10[%c25, %c0_9], %22 {strides = array<i32>} : memref<264x128xbf16, #tpu.memory_space<vmem>>, vector<16x128xbf16>,
    %24 = vector.extract_strided_slice %17 {offsets = [2, 0, 0], sizes = [1, 16, 128], strides = [1, 1, 1]} : vector<10x16x128xbf16> to vector<1x16x128xbf16>
    %25 = vector.shape_cast %24 : vector<1x16x128xbf16> to vector<16x128xbf16>
    %c49 = arith.constant 49 : index
    %c0_10 = arith.constant 0 : index
    %26 = vector.load %arg10[%c49, %c0_10] : memref<264x128xbf16, #tpu.memory_space<vmem>>, vector<16x128xbf16>
    tpu.vector_store %arg10[%c49, %c0_10], %25 {strides = array<i32>} : memref<264x128xbf16, #tpu.memory_space<vmem>>, vector<16x128xbf16>,
    %27 = vector.extract_strided_slice %17 {offsets = [3, 0, 0], sizes = [1, 16, 128], strides = [1, 1, 1]} : vector<10x16x128xbf16> to vector<1x16x128xbf16>
    %28 = vector.shape_cast %27 : vector<1x16x128xbf16> to vector<16x128xbf16>
    %c73 = arith.constant 73 : index
    %c0_11 = arith.constant 0 : index
    %29 = vector.load %arg10[%c73, %c0_11] : memref<264x128xbf16, #tpu.memory_space<vmem>>, vector<16x128xbf16>
    tpu.vector_store %arg10[%c73, %c0_11], %28 {strides = array<i32>} : memref<264x128xbf16, #tpu.memory_space<vmem>>, vector<16x128xbf16>,
    %30 = vector.extract_strided_slice %17 {offsets = [4, 0, 0], sizes = [1, 16, 128], strides = [1, 1, 1]} : vector<10x16x128xbf16> to vector<1x16x128xbf16>
    %31 = vector.shape_cast %30 : vector<1x16x128xbf16> to vector<16x128xbf16>
    %c97 = arith.constant 97 : index
    %c0_12 = arith.constant 0 : index
    %32 = vector.load %arg10[%c97, %c0_12] : memref<264x128xbf16, #tpu.memory_space<vmem>>, vector<16x128xbf16>
    tpu.vector_store %arg10[%c97, %c0_12], %31 {strides = array<i32>} : memref<264x128xbf16, #tpu.memory_space<vmem>>, vector<16x128xbf16>,
    %33 = vector.extract_strided_slice %17 {offsets = [5, 0, 0], sizes = [1, 16, 128], strides = [1, 1, 1]} : vector<10x16x128xbf16> to vector<1x16x128xbf16>
    %34 = vector.shape_cast %33 : vector<1x16x128xbf16> to vector<16x128xbf16>
    %c121 = arith.constant 121 : index
    %c0_13 = arith.constant 0 : index
    %35 = vector.load %arg10[%c121, %c0_13] : memref<264x128xbf16, #tpu.memory_space<vmem>>, vector<16x128xbf16>
    tpu.vector_store %arg10[%c121, %c0_13], %34 {strides = array<i32>} : memref<264x128xbf16, #tpu.memory_space<vmem>>, vector<16x128xbf16>,
    %36 = vector.extract_strided_slice %17 {offsets = [6, 0, 0], sizes = [1, 16, 128], strides = [1, 1, 1]} : vector<10x16x128xbf16> to vector<1x16x128xbf16>
    %37 = vector.shape_cast %36 : vector<1x16x128xbf16> to vector<16x128xbf16>
    %c145 = arith.constant 145 : index
    %c0_14 = arith.constant 0 : index
    %38 = vector.load %arg10[%c145, %c0_14] : memref<264x128xbf16, #tpu.memory_space<vmem>>, vector<16x128xbf16>
    tpu.vector_store %arg10[%c145, %c0_14], %37 {strides = array<i32>} : memref<264x128xbf16, #tpu.memory_space<vmem>>, vector<16x128xbf16>,
    %39 = vector.extract_strided_slice %17 {offsets = [7, 0, 0], sizes = [1, 16, 128], strides = [1, 1, 1]} : vector<10x16x128xbf16> to vector<1x16x128xbf16>
    %40 = vector.shape_cast %39 : vector<1x16x128xbf16> to vector<16x128xbf16>
    %c169 = arith.constant 169 : index
    %c0_15 = arith.constant 0 : index
    %41 = vector.load %arg10[%c169, %c0_15] : memref<264x128xbf16, #tpu.memory_space<vmem>>, vector<16x128xbf16>
    tpu.vector_store %arg10[%c169, %c0_15], %40 {strides = array<i32>} : memref<264x128xbf16, #tpu.memory_space<vmem>>, vector<16x128xbf16>,
    %42 = vector.extract_strided_slice %17 {offsets = [8, 0, 0], sizes = [1, 16, 128], strides = [1, 1, 1]} : vector<10x16x128xbf16> to vector<1x16x128xbf16>
    %43 = vector.shape_cast %42 : vector<1x16x128xbf16> to vector<16x128xbf16>
    %c193 = arith.constant 193 : index
    %c0_16 = arith.constant 0 : index
    %44 = vector.load %arg10[%c193, %c0_16] : memref<264x128xbf16, #tpu.memory_space<vmem>>, vector<16x128xbf16>
    tpu.vector_store %arg10[%c193, %c0_16], %43 {strides = array<i32>} : memref<264x128xbf16, #tpu.memory_space<vmem>>, vector<16x128xbf16>,
    %45 = vector.extract_strided_slice %17 {offsets = [9, 0, 0], sizes = [1, 16, 128], strides = [1, 1, 1]} : vector<10x16x128xbf16> to vector<1x16x128xbf16>
    %46 = vector.shape_cast %45 : vector<1x16x128xbf16> to vector<16x128xbf16>
    %c217 = arith.constant 217 : index
    %c0_17 = arith.constant 0 : index
    %47 = vector.load %arg10[%c217, %c0_17] : memref<264x128xbf16, #tpu.memory_space<vmem>>, vector<16x128xbf16>
    tpu.vector_store %arg10[%c217, %c0_17], %46 {strides = array<i32>} : memref<264x128xbf16, #tpu.memory_space<vmem>>, vector<16x128xbf16>,
    %c0_i32_18 = arith.constant 0 : i32
    %48 = arith.cmpi eq, %arg1, %c0_i32_18 : i32
    %49 = arith.extui %48 : i1 to i32
    %c0_i32_19 = arith.constant 0 : i32
    %50 = arith.cmpi ne, %49, %c0_i32_19 : i32
    scf.if %50 {
      %cst_77 = arith.constant 0.000000e+00 : bf16
      %123 = vector.broadcast %cst_77 : bf16 to vector<16x128xbf16>
      %c1_78 = arith.constant 1 : index
      %c0_79 = arith.constant 0 : index
      %124 = vector.load %arg10[%c1_78, %c0_79] : memref<264x128xbf16, #tpu.memory_space<vmem>>, vector<16x128xbf16>
      tpu.vector_store %arg10[%c1_78, %c0_79], %123 {strides = array<i32>} : memref<264x128xbf16, #tpu.memory_space<vmem>>, vector<16x128xbf16>,
    } else {
    }
    %c1_i32 = arith.constant 1 : i32
    %51 = arith.cmpi eq, %arg1, %c1_i32 : i32
    %52 = arith.extui %51 : i1 to i32
    %c0_i32_20 = arith.constant 0 : i32
    %53 = arith.cmpi ne, %52, %c0_i32_20 : i32
    scf.if %53 {
      %cst_77 = arith.constant 0.000000e+00 : bf16
      %123 = vector.broadcast %cst_77 : bf16 to vector<16x128xbf16>
      %c217_78 = arith.constant 217 : index
      %c0_79 = arith.constant 0 : index
      %124 = vector.load %arg10[%c217_78, %c0_79] : memref<264x128xbf16, #tpu.memory_space<vmem>>, vector<16x128xbf16>
      tpu.vector_store %arg10[%c217_78, %c0_79], %123 {strides = array<i32>} : memref<264x128xbf16, #tpu.memory_space<vmem>>, vector<16x128xbf16>,
    } else {
    }
    %c0_21 = arith.constant 0 : index
    %c0_22 = arith.constant 0 : index
    %54 = vector.load %arg10[%c0_21, %c0_22] : memref<264x128xbf16, #tpu.memory_space<vmem>>, vector<192x128xbf16>
    %c0_23 = arith.constant 0 : index
    %c0_24 = arith.constant 0 : index
    %c0_25 = arith.constant 0 : index
    %55 = vector.load %arg4[%c0_23, %c0_24, %c0_25] : memref<9x128x128xbf16, #tpu.memory_space<vmem>>, vector<1x128x128xbf16>
    %56 = vector.shape_cast %55 : vector<1x128x128xbf16> to vector<128x128xbf16>
    %cst_26 = arith.constant dense<0.000000e+00> : vector<192x128xf32>
    %57 = tpu.matmul %54, %56, %cst_26 {dimension_numbers = #tpu.dot_dimension_numbers<[1], [0], [0], [1], [0, 0, 1, 1], [], []>} : vector<192x128xbf16>, vector<128x128xbf16>, vector<192x128xf32> -> vector<192x128xf32>
    %c0_27 = arith.constant 0 : index
    %c0_28 = arith.constant 0 : index
    %58 = vector.load %arg7[%c0_27, %c0_28] : memref<1x128xf32, #tpu.memory_space<vmem>>, vector<1x128xf32>
    %59 = vector.broadcast %58 : vector<1x128xf32> to vector<192x128xf32>
    %60 = arith.addf %57, %59 : vector<192x128xf32>
    %c1_29 = arith.constant 1 : index
    %c0_30 = arith.constant 0 : index
    %61 = vector.load %arg10[%c1_29, %c0_30] : memref<264x128xbf16, #tpu.memory_space<vmem>>, vector<192x128xbf16>
    %c1_31 = arith.constant 1 : index
    %c0_32 = arith.constant 0 : index
    %c0_33 = arith.constant 0 : index
    %62 = vector.load %arg4[%c1_31, %c0_32, %c0_33] : memref<9x128x128xbf16, #tpu.memory_space<vmem>>, vector<1x128x128xbf16>
    %63 = vector.shape_cast %62 : vector<1x128x128xbf16> to vector<128x128xbf16>
    %cst_34 = arith.constant dense<0.000000e+00> : vector<192x128xf32>
    %64 = tpu.matmul %61, %63, %cst_34 {dimension_numbers = #tpu.dot_dimension_numbers<[1], [0], [0], [1], [0, 0, 1, 1], [], []>} : vector<192x128xbf16>, vector<128x128xbf16>, vector<192x128xf32> -> vector<192x128xf32>
    %65 = arith.addf %60, %64 : vector<192x128xf32>
    %c2 = arith.constant 2 : index
    %c0_35 = arith.constant 0 : index
    %66 = vector.load %arg10[%c2, %c0_35] : memref<264x128xbf16, #tpu.memory_space<vmem>>, vector<192x128xbf16>
    %c2_36 = arith.constant 2 : index
    %c0_37 = arith.constant 0 : index
    %c0_38 = arith.constant 0 : index
    %67 = vector.load %arg4[%c2_36, %c0_37, %c0_38] : memref<9x128x128xbf16, #tpu.memory_space<vmem>>, vector<1x128x128xbf16>
    %68 = vector.shape_cast %67 : vector<1x128x128xbf16> to vector<128x128xbf16>
    %cst_39 = arith.constant dense<0.000000e+00> : vector<192x128xf32>
    %69 = tpu.matmul %66, %68, %cst_39 {dimension_numbers = #tpu.dot_dimension_numbers<[1], [0], [0], [1], [0, 0, 1, 1], [], []>} : vector<192x128xbf16>, vector<128x128xbf16>, vector<192x128xf32> -> vector<192x128xf32>
    %70 = arith.addf %65, %69 : vector<192x128xf32>
    %c24 = arith.constant 24 : index
    %c0_40 = arith.constant 0 : index
    %71 = vector.load %arg10[%c24, %c0_40] : memref<264x128xbf16, #tpu.memory_space<vmem>>, vector<192x128xbf16>
    %c3 = arith.constant 3 : index
    %c0_41 = arith.constant 0 : index
    %c0_42 = arith.constant 0 : index
    %72 = vector.load %arg4[%c3, %c0_41, %c0_42] : memref<9x128x128xbf16, #tpu.memory_space<vmem>>, vector<1x128x128xbf16>
    %73 = vector.shape_cast %72 : vector<1x128x128xbf16> to vector<128x128xbf16>
    %cst_43 = arith.constant dense<0.000000e+00> : vector<192x128xf32>
    %74 = tpu.matmul %71, %73, %cst_43 {dimension_numbers = #tpu.dot_dimension_numbers<[1], [0], [0], [1], [0, 0, 1, 1], [], []>} : vector<192x128xbf16>, vector<128x128xbf16>, vector<192x128xf32> -> vector<192x128xf32>
    %75 = arith.addf %70, %74 : vector<192x128xf32>
    %c25_44 = arith.constant 25 : index
    %c0_45 = arith.constant 0 : index
    %76 = vector.load %arg10[%c25_44, %c0_45] : memref<264x128xbf16, #tpu.memory_space<vmem>>, vector<192x128xbf16>
    %c4 = arith.constant 4 : index
    %c0_46 = arith.constant 0 : index
    %c0_47 = arith.constant 0 : index
    %77 = vector.load %arg4[%c4, %c0_46, %c0_47] : memref<9x128x128xbf16, #tpu.memory_space<vmem>>, vector<1x128x128xbf16>
    %78 = vector.shape_cast %77 : vector<1x128x128xbf16> to vector<128x128xbf16>
    %cst_48 = arith.constant dense<0.000000e+00> : vector<192x128xf32>
    %79 = tpu.matmul %76, %78, %cst_48 {dimension_numbers = #tpu.dot_dimension_numbers<[1], [0], [0], [1], [0, 0, 1, 1], [], []>} : vector<192x128xbf16>, vector<128x128xbf16>, vector<192x128xf32> -> vector<192x128xf32>
    %80 = arith.addf %75, %79 : vector<192x128xf32>
    %c26 = arith.constant 26 : index
    %c0_49 = arith.constant 0 : index
    %81 = vector.load %arg10[%c26, %c0_49] : memref<264x128xbf16, #tpu.memory_space<vmem>>, vector<192x128xbf16>
    %c5 = arith.constant 5 : index
    %c0_50 = arith.constant 0 : index
    %c0_51 = arith.constant 0 : index
    %82 = vector.load %arg4[%c5, %c0_50, %c0_51] : memref<9x128x128xbf16, #tpu.memory_space<vmem>>, vector<1x128x128xbf16>
    %83 = vector.shape_cast %82 : vector<1x128x128xbf16> to vector<128x128xbf16>
    %cst_52 = arith.constant dense<0.000000e+00> : vector<192x128xf32>
    %84 = tpu.matmul %81, %83, %cst_52 {dimension_numbers = #tpu.dot_dimension_numbers<[1], [0], [0], [1], [0, 0, 1, 1], [], []>} : vector<192x128xbf16>, vector<128x128xbf16>, vector<192x128xf32> -> vector<192x128xf32>
    %85 = arith.addf %80, %84 : vector<192x128xf32>
    %c48 = arith.constant 48 : index
    %c0_53 = arith.constant 0 : index
    %86 = vector.load %arg10[%c48, %c0_53] : memref<264x128xbf16, #tpu.memory_space<vmem>>, vector<192x128xbf16>
    %c6 = arith.constant 6 : index
    %c0_54 = arith.constant 0 : index
    %c0_55 = arith.constant 0 : index
    %87 = vector.load %arg4[%c6, %c0_54, %c0_55] : memref<9x128x128xbf16, #tpu.memory_space<vmem>>, vector<1x128x128xbf16>
    %88 = vector.shape_cast %87 : vector<1x128x128xbf16> to vector<128x128xbf16>
    %cst_56 = arith.constant dense<0.000000e+00> : vector<192x128xf32>
    %89 = tpu.matmul %86, %88, %cst_56 {dimension_numbers = #tpu.dot_dimension_numbers<[1], [0], [0], [1], [0, 0, 1, 1], [], []>} : vector<192x128xbf16>, vector<128x128xbf16>, vector<192x128xf32> -> vector<192x128xf32>
    %90 = arith.addf %85, %89 : vector<192x128xf32>
    %c49_57 = arith.constant 49 : index
    %c0_58 = arith.constant 0 : index
    %91 = vector.load %arg10[%c49_57, %c0_58] : memref<264x128xbf16, #tpu.memory_space<vmem>>, vector<192x128xbf16>
    %c7 = arith.constant 7 : index
    %c0_59 = arith.constant 0 : index
    %c0_60 = arith.constant 0 : index
    %92 = vector.load %arg4[%c7, %c0_59, %c0_60] : memref<9x128x128xbf16, #tpu.memory_space<vmem>>, vector<1x128x128xbf16>
    %93 = vector.shape_cast %92 : vector<1x128x128xbf16> to vector<128x128xbf16>
    %cst_61 = arith.constant dense<0.000000e+00> : vector<192x128xf32>
    %94 = tpu.matmul %91, %93, %cst_61 {dimension_numbers = #tpu.dot_dimension_numbers<[1], [0], [0], [1], [0, 0, 1, 1], [], []>} : vector<192x128xbf16>, vector<128x128xbf16>, vector<192x128xf32> -> vector<192x128xf32>
    %95 = arith.addf %90, %94 : vector<192x128xf32>
    %c50 = arith.constant 50 : index
    %c0_62 = arith.constant 0 : index
    %96 = vector.load %arg10[%c50, %c0_62] : memref<264x128xbf16, #tpu.memory_space<vmem>>, vector<192x128xbf16>
    %c8 = arith.constant 8 : index
    %c0_63 = arith.constant 0 : index
    %c0_64 = arith.constant 0 : index
    %97 = vector.load %arg4[%c8, %c0_63, %c0_64] : memref<9x128x128xbf16, #tpu.memory_space<vmem>>, vector<1x128x128xbf16>
    %98 = vector.shape_cast %97 : vector<1x128x128xbf16> to vector<128x128xbf16>
    %cst_65 = arith.constant dense<0.000000e+00> : vector<192x128xf32>
    %99 = tpu.matmul %96, %98, %cst_65 {dimension_numbers = #tpu.dot_dimension_numbers<[1], [0], [0], [1], [0, 0, 1, 1], [], []>} : vector<192x128xbf16>, vector<128x128xbf16>, vector<192x128xf32> -> vector<192x128xf32>
    %100 = arith.addf %95, %99 : vector<192x128xf32>
    %cst_66 = arith.constant 0.000000e+00 : f32
    %101 = vector.broadcast %cst_66 : f32 to vector<192x128xf32>
    %102 = arith.maximumf %100, %101 : vector<192x128xf32>
    %103 = arith.truncf %102 : vector<192x128xf32> to vector<192x128xbf16>
    %104 = vector.shape_cast %103 : vector<192x128xbf16> to vector<8x24x128xbf16>
    %105 = vector.extract_strided_slice %104 {offsets = [0, 0, 0], sizes = [8, 16, 128], strides = [1, 1, 1]} : vector<8x24x128xbf16> to vector<8x16x128xbf16>
    %106 = vector.shape_cast %105 : vector<8x16x128xbf16> to vector<128x128xbf16>
    %c0_67 = arith.constant 0 : index
    %c0_68 = arith.constant 0 : index
    %107 = vector.load %arg5[%c0_67, %c0_68] : memref<128x128xbf16, #tpu.memory_space<vmem>>, vector<128x128xbf16>
    %cst_69 = arith.constant dense<0.000000e+00> : vector<128x128xf32>
    %108 = tpu.matmul %106, %107, %cst_69 {dimension_numbers = #tpu.dot_dimension_numbers<[1], [0], [0], [1], [0, 0, 1, 1], [], []>} : vector<128x128xbf16>, vector<128x128xbf16>, vector<128x128xf32> -> vector<128x128xf32>
    %109 = vector.extract_strided_slice %7 {offsets = [1, 0, 0], sizes = [8, 16, 128], strides = [1, 1, 1]} : vector<10x16x128xbf16> to vector<8x16x128xbf16>
    %110 = vector.shape_cast %109 : vector<8x16x128xbf16> to vector<128x128xbf16>
    %111 = arith.extf %110 : vector<128x128xbf16> to vector<128x128xf32>
    %c0_70 = arith.constant 0 : index
    %c0_71 = arith.constant 0 : index
    %112 = vector.load %arg8[%c0_70, %c0_71] : memref<1x128xf32, #tpu.memory_space<vmem>>, vector<1x128xf32>
    %113 = vector.broadcast %112 : vector<1x128xf32> to vector<128x128xf32>
    %114 = arith.addf %108, %113 : vector<128x128xf32>
    %115 = arith.addf %114, %111 : vector<128x128xf32>
    %cst_72 = arith.constant 0.000000e+00 : f32
    %116 = vector.broadcast %cst_72 : f32 to vector<128x128xf32>
    %117 = arith.maximumf %115, %116 : vector<128x128xf32>
    %118 = arith.truncf %117 : vector<128x128xf32> to vector<128x128xbf16>
    %119 = vector.shape_cast %118 : vector<128x128xbf16> to vector<8x16x128xbf16>
    %c0_73 = arith.constant 0 : index
    %c0_74 = arith.constant 0 : index
    %c0_75 = arith.constant 0 : index
    %c0_76 = arith.constant 0 : index
    %120 = vector.load %arg9[%c0_73, %c0_74, %c0_75, %c0_76] : memref<1x8x16x128xbf16, #tpu.memory_space<vmem>>, vector<1x8x16x128xbf16>
    %121 = vector.shape_cast %120 : vector<1x8x16x128xbf16> to vector<8x16x128xbf16>
    %122 = vector.shape_cast %119 : vector<8x16x128xbf16> to vector<1x8x16x128xbf16>
    tpu.vector_store %arg9[%c0_73, %c0_74, %c0_75, %c0_76], %122 {strides = array<i32>} : memref<1x8x16x128xbf16, #tpu.memory_space<vmem>>, vector<1x8x16x128xbf16>,
    return
  }
  func.func @transform_0(%arg0: i32, %arg1: i32) -> (i32, i32, i32, i32) {
    %c0_i32 = arith.constant 0 : i32
    %c0_i32_0 = arith.constant 0 : i32
    %c0_i32_1 = arith.constant 0 : i32
    %c0_i32_2 = arith.constant 0 : i32
    return %arg0, %c0_i32, %c0_i32_0, %c0_i32_1 : i32, i32, i32, i32
  }
  func.func @transform_1(%arg0: i32, %arg1: i32) -> (i32, i32) {
    %c0_i32 = arith.constant 0 : i32
    %c0_i32_0 = arith.constant 0 : i32
    %c0_i32_1 = arith.constant 0 : i32
    return %c0_i32, %c0_i32_0 : i32, i32
  }
  func.func @transform_2(%arg0: i32, %arg1: i32) -> (i32, i32, i32) {
    %c0_i32 = arith.constant 0 : i32
    %c0_i32_0 = arith.constant 0 : i32
    %c0_i32_1 = arith.constant 0 : i32
    %c0_i32_2 = arith.constant 0 : i32
    return %c0_i32, %c0_i32_0, %c0_i32_1 : i32, i32, i32
  }
  func.func @transform_3(%arg0: i32, %arg1: i32) -> (i32, i32) {
    %c0_i32 = arith.constant 0 : i32
    %c0_i32_0 = arith.constant 0 : i32
    %c0_i32_1 = arith.constant 0 : i32
    return %c0_i32, %c0_i32_0 : i32, i32
  }
  func.func @transform_4(%arg0: i32, %arg1: i32) -> (i32, i32) {
    %c0_i32 = arith.constant 0 : i32
    %c0_i32_0 = arith.constant 0 : i32
    %c0_i32_1 = arith.constant 0 : i32
    return %c0_i32, %c0_i32_0 : i32, i32
  }
  func.func @transform_5(%arg0: i32, %arg1: i32) -> (i32, i32) {
    %c0_i32 = arith.constant 0 : i32
    %c0_i32_0 = arith.constant 0 : i32
    %c0_i32_1 = arith.constant 0 : i32
    return %c0_i32, %c0_i32_0 : i32, i32
  }
  func.func @transform_6(%arg0: i32, %arg1: i32) -> (i32, i32) {
    %c0_i32 = arith.constant 0 : i32
    %c0_i32_0 = arith.constant 0 : i32
    %c0_i32_1 = arith.constant 0 : i32
    return %c0_i32, %c0_i32_0 : i32, i32
  }
  func.func @transform_7(%arg0: i32, %arg1: i32) -> (i32, i32, i32, i32) {
    %c0_i32 = arith.constant 0 : i32
    %c0_i32_0 = arith.constant 0 : i32
    %c0_i32_1 = arith.constant 0 : i32
    return %arg0, %arg1, %c0_i32, %c0_i32_0 : i32, i32, i32, i32
  }
}

</mosaic_0001>

<llo_original>
// kernel: tpu_custom_call.1
$region0: #{tpu_custom_call.1}
  #allocation0 [shape = 'u32[]', space=smem, size = 0x4, offset = 0x4, fixed_abs, tag = 'smem constant byte address 0x4 - core index']
  #allocation1 [shape = 'u32[72,128]{1,0:T(1,128)}', space=vmem, size = 0x9000, scoped, tag = 'internal scratch']
  #allocation2 [shape = 'bf16[264,128]{1,0:T(8,128)(2,1)}', space=vmem, size = 0x10800, scoped, tag = 'scratch operand']
  %s0 = inlined_call_operand.hbm [shape: bf16[2,18,16,128], index: 0, kind: input, shape index: {}]
  %s1 = inlined_call_operand.hbm [shape: bf16[128,128], index: 1, kind: input, shape index: {}]
  %s2 = inlined_call_operand.hbm [shape: bf16[9,128,128], index: 2, kind: input, shape index: {}]
  %s3 = inlined_call_operand.hbm [shape: bf16[128,128], index: 3, kind: input, shape index: {}]
  %s4 = inlined_call_operand.vmem [shape: f32[1,128], index: 4, kind: input, shape index: {}]
  %s5 = inlined_call_operand.vmem [shape: f32[1,128], index: 5, kind: input, shape index: {}]
  %s6 = inlined_call_operand.vmem [shape: f32[1,128], index: 6, kind: input, shape index: {}]
  %s7 = inlined_call_operand.hbm [shape: bf16[2,16,16,128], index: 7, kind: output, shape index: {}]
  %s8 = sld [smem:[#allocation0]]
  $region89: #{tpu_custom_call.1} parent=0
    _
  %s10 = ssub.s32 1, %s8
  %s11 = scalar_select 0, %s10, %s8
  $region1: #{tpu_custom_call.1} parent=0
    #allocation3 [shape = 'u8[147456]{0}', space=vmem, size = 0x24000, scoped, tag = 'input window, operand 0']
    #allocation4 [shape = 's32[2]{0}', space=sflag, size = 0x8, scoped, tag = 'scoped memory for tpu_custom_call.1']
    #allocation5 [shape = 's32[2]{0}', space=sflag, size = 0x8, scoped, tag = 'scoped memory for tpu_custom_call.1']
    #allocation6 [shape = 'u8[32768]{0}', space=vmem, size = 0x8000, scoped, tag = 'input window, operand 1, single buffered']
    #allocation7 [shape = 's32[1]{0}', space=sflag, size = 0x4, scoped, tag = 'scoped memory for tpu_custom_call.1']
    #allocation8 [shape = 'u8[294912]{0}', space=vmem, size = 0x48000, scoped, tag = 'input window, operand 2, single buffered']
    #allocation9 [shape = 'u8[32768]{0}', space=vmem, size = 0x8000, scoped, tag = 'input window, operand 3, single buffered']
    #allocation10 [shape = 's32[1]{0}', space=sflag, size = 0x4, scoped, tag = 'scoped memory for tpu_custom_call.1']
    #allocation11 [shape = 'u8[65536]{0}', space=vmem, size = 0x10000, scoped, tag = 'output window, operand 0']
    %12 = vsyncpa [#allocation4], 0
    %s13 = scalar_lea.sflag [#allocation4], 1
    %14 = vsyncpa %s13, 0
    %15 = vsyncpa [#allocation7], 0
    %16 = vsyncpa [#allocation10], 0
    %17 = vsyncpa [#allocation5], 0
    %s18 = scalar_lea.sflag [#allocation5], 1
    %19 = vsyncpa %s18, 0
    loop: start=0, step=1, limit=6
    $region2: #{tpu_custom_call.1} parent=1 // loop_pre_header
      _
    $region3: #{tpu_custom_call.1} parent=1 // loop_header
      %s21 = sphi 0, %s25
      %p22 = scmp.ge.s32.totalorder %s21, 6
      %s28 = sphi 0, %s40
      %s29 = sphi 0, %s36
      %s30 = sphi 0, %s28
      %s31 = sphi 0, %s29
      %s32 = sphi 0, %s30
      %s33 = sphi 0, %s31
      %s43 = sphi 0, %s45
      %s46 = sphi 0, %s43
      %s47 = sphi 0, %s46
      %s63 = sphi 0, %s47
      %s67 = sphi 0, %s67
      %s69 = sphi 0, %s67
      %s70 = sphi 0, %s69
      %s84 = sphi 0, %s70
      %s88 = sphi 0, %s88
      %s90 = sphi 0, %s88
      %s91 = sphi 0, %s90
      %s105 = sphi 0, %s91
      %s109 = sphi 0, %s109
      %s111 = sphi 0, %s109
      %s112 = sphi 0, %s111
      %s126 = sphi 0, %s112
      %s130 = sphi 0, %s130
      %s132 = sphi 0, %s130
      %s133 = sphi 0, %s132
      %s147 = sphi 0, %s133
      %s151 = sphi 0, %s151
      %s153 = sphi 0, %s151
      %s154 = sphi 0, %s153
      %s168 = sphi 0, %s154
      %s172 = sphi 0, %s172
      %s174 = sphi 0, %s172
      %s175 = sphi 0, %s174
      %s189 = sphi 0, %s175
      %s197 = sphi 0, %s199
      %s200 = sphi 0, %s197
      %s201 = sphi 0, %s200
      %s217 = sphi 0, %s201
    $region4: #{tpu_custom_call.1} parent=1 // loop_header_branch
      %24 = sbr.rel (%p22) target = $region8
    $region5: #{tpu_custom_call.1} parent=1 // loop_body
      %s26 = ssub.s32 %s21, 1
      %s27 = ssub.s32 %s21, 2
      %s34 = sadd.s32 1, %s29
      %p35 = scmp.ge.s32.totalorder %s34, 2
      %s36 = scalar_select %p35, 0, %s34
      %s37 = sadd.s32 1, %s28
      %s38 = scalar_select %p35, %s37, %s28
      %p39 = scmp.ge.s32.totalorder %s38, 2
      %s40 = scalar_select %p39, 0, %s38
      %s41 = ssub.s32 %s28, %s40
      %p42 = scmp.eq.s32.totalorder %s41, 0
      %s44 = sadd.s32 %s43, 1
      %s45 = scalar_select %p42, %s43, %s44
      %p48 = pneg %p42
      %p49 = scmp.eq.s32.totalorder %s21, 3
      %p50 = por %p48, %p49
      %p51 = scmp.ne.s32.totalorder %s43, %s46
      %p52 = scmp.eq.s32.totalorder %s21, 0
      %p53 = por %p51, %p52
      %p54 = scmp.ne.s32.totalorder %s43, %s46
      %p55 = scmp.eq.s32.totalorder %s26, 3
      %p56 = por %p54, %p55
      %p57 = scmp.ne.s32.totalorder %s46, %s47
      %p58 = scmp.eq.s32.totalorder %s26, 0
      %p59 = por %p57, %p58
      %p60 = scmp.ne.s32.totalorder %s46, %s47
      %p61 = scmp.eq.s32.totalorder %s27, 3
      %p62 = por %p60, %p61
      %p64 = scmp.ne.s32.totalorder %s47, %s63
      %p65 = scmp.eq.s32.totalorder %s27, 0
      %p66 = por %p64, %p65
      %s68 = sadd.s32 %s67, 1
      %p71 = scmp.eq.s32.totalorder %s21, 3
      %p72 = scmp.ne.s32.totalorder %s67, %s69
      %p73 = scmp.eq.s32.totalorder %s21, 0
      %p74 = por %p72, %p73
      %p75 = scmp.ne.s32.totalorder %s67, %s69
      %p76 = scmp.eq.s32.totalorder %s26, 3
      %p77 = por %p75, %p76
      %p78 = scmp.ne.s32.totalorder %s69, %s70
      %p79 = scmp.eq.s32.totalorder %s26, 0
      %p80 = por %p78, %p79
      %p81 = scmp.ne.s32.totalorder %s69, %s70
      %p82 = scmp.eq.s32.totalorder %s27, 3
      %p83 = por %p81, %p82
      %p85 = scmp.ne.s32.totalorder %s70, %s84
      %p86 = scmp.eq.s32.totalorder %s27, 0
      %p87 = por %p85, %p86
      %s89 = sadd.s32 %s88, 1
      %p92 = scmp.eq.s32.totalorder %s21, 3
      %p93 = scmp.ne.s32.totalorder %s88, %s90
      %p94 = scmp.eq.s32.totalorder %s21, 0
      %p95 = por %p93, %p94
      %p96 = scmp.ne.s32.totalorder %s88, %s90
      %p97 = scmp.eq.s32.totalorder %s26, 3
      %p98 = por %p96, %p97
      %p99 = scmp.ne.s32.totalorder %s90, %s91
      %p100 = scmp.eq.s32.totalorder %s26, 0
      %p101 = por %p99, %p100
      %p102 = scmp.ne.s32.totalorder %s90, %s91
      %p103 = scmp.eq.s32.totalorder %s27, 3
      %p104 = por %p102, %p103
      %p106 = scmp.ne.s32.totalorder %s91, %s105
      %p107 = scmp.eq.s32.totalorder %s27, 0
      %p108 = por %p106, %p107
      %s110 = sadd.s32 %s109, 1
      %p113 = scmp.eq.s32.totalorder %s21, 3
      %p114 = scmp.ne.s32.totalorder %s109, %s111
      %p115 = scmp.eq.s32.totalorder %s21, 0
      %p116 = por %p114, %p115
      %p117 = scmp.ne.s32.totalorder %s109, %s111
      %p118 = scmp.eq.s32.totalorder %s26, 3
      %p119 = por %p117, %p118
      %p120 = scmp.ne.s32.totalorder %s111, %s112
      %p121 = scmp.eq.s32.totalorder %s26, 0
      %p122 = por %p120, %p121
      %p123 = scmp.ne.s32.totalorder %s111, %s112
      %p124 = scmp.eq.s32.totalorder %s27, 3
      %p125 = por %p123, %p124
      %p127 = scmp.ne.s32.totalorder %s112, %s126
      %p128 = scmp.eq.s32.totalorder %s27, 0
      %p129 = por %p127, %p128
      %s131 = sadd.s32 %s130, 1
      %p134 = scmp.eq.s32.totalorder %s21, 3
      %p135 = scmp.ne.s32.totalorder %s130, %s132
      %p136 = scmp.eq.s32.totalorder %s21, 0
      %p137 = por %p135, %p136
      %p138 = scmp.ne.s32.totalorder %s130, %s132
      %p139 = scmp.eq.s32.totalorder %s26, 3
      %p140 = por %p138, %p139
      %p141 = scmp.ne.s32.totalorder %s132, %s133
      %p142 = scmp.eq.s32.totalorder %s26, 0
      %p143 = por %p141, %p142
      %p144 = scmp.ne.s32.totalorder %s132, %s133
      %p145 = scmp.eq.s32.totalorder %s27, 3
      %p146 = por %p144, %p145
      %p148 = scmp.ne.s32.totalorder %s133, %s147
      %p149 = scmp.eq.s32.totalorder %s27, 0
      %p150 = por %p148, %p149
      %s152 = sadd.s32 %s151, 1
      %p155 = scmp.eq.s32.totalorder %s21, 3
      %p156 = scmp.ne.s32.totalorder %s151, %s153
      %p157 = scmp.eq.s32.totalorder %s21, 0
      %p158 = por %p156, %p157
      %p159 = scmp.ne.s32.totalorder %s151, %s153
      %p160 = scmp.eq.s32.totalorder %s26, 3
      %p161 = por %p159, %p160
      %p162 = scmp.ne.s32.totalorder %s153, %s154
      %p163 = scmp.eq.s32.totalorder %s26, 0
      %p164 = por %p162, %p163
      %p165 = scmp.ne.s32.totalorder %s153, %s154
      %p166 = scmp.eq.s32.totalorder %s27, 3
      %p167 = por %p165, %p166
      %p169 = scmp.ne.s32.totalorder %s154, %s168
      %p170 = scmp.eq.s32.totalorder %s27, 0
      %p171 = por %p169, %p170
      %s173 = sadd.s32 %s172, 1
      %p176 = scmp.eq.s32.totalorder %s21, 3
      %p177 = scmp.ne.s32.totalorder %s172, %s174
      %p178 = scmp.eq.s32.totalorder %s21, 0
      %p179 = por %p177, %p178
      %p180 = scmp.ne.s32.totalorder %s172, %s174
      %p181 = scmp.eq.s32.totalorder %s26, 3
      %p182 = por %p180, %p181
      %p183 = scmp.ne.s32.totalorder %s174, %s175
      %p184 = scmp.eq.s32.totalorder %s26, 0
      %p185 = por %p183, %p184
      %p186 = scmp.ne.s32.totalorder %s174, %s175
      %p187 = scmp.eq.s32.totalorder %s27, 3
      %p188 = por %p186, %p187
      %p190 = scmp.ne.s32.totalorder %s175, %s189
      %p191 = scmp.eq.s32.totalorder %s27, 0
      %p192 = por %p190, %p191
      %s193 = ssub.s32 %s28, %s40
      %s194 = ssub.s32 %s29, %s36
      %s195 = sor.u32 %s193, %s194
      %p196 = scmp.eq.s32.totalorder %s195, 0
      %s198 = sadd.s32 %s197, 1
      %s199 = scalar_select %p196, %s197, %s198
      %p202 = pneg %p196
      %p203 = scmp.eq.s32.totalorder %s21, 3
      %p204 = por %p202, %p203
      %p205 = scmp.ne.s32.totalorder %s197, %s200
      %p206 = scmp.eq.s32.totalorder %s21, 0
      %p207 = por %p205, %p206
      %p208 = scmp.ne.s32.totalorder %s197, %s200
      %p209 = scmp.eq.s32.totalorder %s26, 3
      %p210 = por %p208, %p209
      %p211 = scmp.ne.s32.totalorder %s200, %s201
      %p212 = scmp.eq.s32.totalorder %s26, 0
      %p213 = por %p211, %p212
      %p214 = scmp.ne.s32.totalorder %s200, %s201
      %p215 = scmp.eq.s32.totalorder %s27, 3
      %p216 = por %p214, %p215
      %p218 = scmp.ne.s32.totalorder %s201, %s217
      %p219 = scmp.eq.s32.totalorder %s27, 0
      %p220 = por %p218, %p219
      %p221 = scmp.le.s32.totalorder 1, %s21
      %p222 = scmp.lt.s32.totalorder %s21, 5
      %p223 = pnand %p221, %p222
      %p224 = pneg %p223
      // Predicated region
      $region9: #{tpu_custom_call.1} parent=5 // pred_check
        _
      $region10: #{tpu_custom_call.1} parent=5 // pred_check_branch
        %226 = sbr.rel (%p223) target = $region12
      $region11: #{tpu_custom_call.1} parent=5 // pred_region
        %s227 = ssub.s32 %s21, 1
        // Predicated region
        $region13: #{tpu_custom_call.1} parent=11 // pred_check
          %p228 = pneg %p80
        $region14: #{tpu_custom_call.1} parent=11 // pred_check_branch
          %230 = sbr.rel (%p228) target = $region16
        $region15: #{tpu_custom_call.1} parent=11 // pred_region
          %232 = vsyncadd [#allocation7], 0
          %s233 = sshll.u32 %s1, 4
          %s234 = int_to_ptr.hbm [resolvable:$true] %s233
          %s235 = sshll.u32 [#allocation6], 4
          %s236 = int_to_ptr.vmem [resolvable:$true] %s235
          %241 = dma.hbm_to_vmem [thread:$0]  %s234, 1024, %s236, [#allocation7], 64, 64, 4
        $region16: #{tpu_custom_call.1} parent=11 // pred_fallthru
          _
        // Predicated region
        $region17: #{tpu_custom_call.1} parent=11 // pred_check
          %p242 = pneg %p101
        $region18: #{tpu_custom_call.1} parent=11 // pred_check_branch
          %244 = sbr.rel (%p242) target = $region20
        $region19: #{tpu_custom_call.1} parent=11 // pred_region
          %246 = vsyncadd [#allocation7], 0
          %s247 = sshll.u32 %s2, 4
          %s248 = int_to_ptr.hbm [resolvable:$true] %s247
          %s249 = sshll.u32 [#allocation8], 4
          %s250 = int_to_ptr.vmem [resolvable:$true] %s249
          %255 = dma.hbm_to_vmem [thread:$0]  %s248, 9216, %s250, [#allocation7], 64, 64, 4
        $region20: #{tpu_custom_call.1} parent=11 // pred_fallthru
          _
        // Predicated region
        $region21: #{tpu_custom_call.1} parent=11 // pred_check
          %p256 = pneg %p122
        $region22: #{tpu_custom_call.1} parent=11 // pred_check_branch
          %258 = sbr.rel (%p256) target = $region24
        $region23: #{tpu_custom_call.1} parent=11 // pred_region
          %260 = vsyncadd [#allocation10], 0
          %s261 = sshll.u32 %s3, 4
          %s262 = int_to_ptr.hbm [resolvable:$true] %s261
          %s263 = sshll.u32 [#allocation9], 4
          %s264 = int_to_ptr.vmem [resolvable:$true] %s263
          %269 = dma.hbm_to_vmem [thread:$0]  %s262, 1024, %s264, [#allocation10], 64, 64, 4
        $region24: #{tpu_custom_call.1} parent=11 // pred_fallthru
          _
        // Predicated region
        $region25: #{tpu_custom_call.1} parent=11 // pred_check
          %p270 = pneg %p143
        $region26: #{tpu_custom_call.1} parent=11 // pred_check_branch
          %272 = sbr.rel (%p270) target = $region28
        $region27: #{tpu_custom_call.1} parent=11 // pred_region
          _
        $region28: #{tpu_custom_call.1} parent=11 // pred_fallthru
          _
        // Predicated region
        $region29: #{tpu_custom_call.1} parent=11 // pred_check
          %p273 = pneg %p164
        $region30: #{tpu_custom_call.1} parent=11 // pred_check_branch
          %275 = sbr.rel (%p273) target = $region32
        $region31: #{tpu_custom_call.1} parent=11 // pred_region
          _
        $region32: #{tpu_custom_call.1} parent=11 // pred_fallthru
          _
        // Predicated region
        $region33: #{tpu_custom_call.1} parent=11 // pred_check
          %p276 = pneg %p185
        $region34: #{tpu_custom_call.1} parent=11 // pred_check_branch
          %278 = sbr.rel (%p276) target = $region36
        $region35: #{tpu_custom_call.1} parent=11 // pred_region
          _
        $region36: #{tpu_custom_call.1} parent=11 // pred_fallthru
          _
      $region12: #{tpu_custom_call.1} parent=5 // pred_fallthru
        _
      %p279 = scmp.lt.s32.totalorder %s21, 4
      // Predicated region
      $region37: #{tpu_custom_call.1} parent=5 // pred_check
        %p280 = pneg %p279
      $region38: #{tpu_custom_call.1} parent=5 // pred_check_branch
        %282 = sbr.rel (%p280) target = $region40
      $region39: #{tpu_custom_call.1} parent=5 // pred_region
        // Predicated region
        $region41: #{tpu_custom_call.1} parent=39 // pred_check
          %p283 = pneg %p53
        $region42: #{tpu_custom_call.1} parent=39 // pred_check_branch
          %285 = sbr.rel (%p283) target = $region44
        $region43: #{tpu_custom_call.1} parent=39 // pred_region
          %s286 = sand.u32 %s43, 1
          %s287 = scalar_lea.sflag [#allocation4], %s286
          %s288 = sand.u32 %s43, 1
          %s289 = smul.addr %s288, 144
          %s290 = scalar_lea.vmem [#allocation3], %s289
          %292 = vsyncadd %s287, 0
          %s293 = smul.addr %s28, 36
          %s294 = smul.addr %s293, 4
          %s295 = scalar_lea.hbm %s0, %s294
          %s296 = sshll.u32 %s295, 4
          %s297 = int_to_ptr.hbm [resolvable:$true] %s296
          %s298 = sshll.u32 %s290, 4
          %s299 = int_to_ptr.vmem [resolvable:$true] %s298
          %304 = dma.hbm_to_vmem [thread:$0]  %s297, 2304, %s299, %s287, 64, 64, 4
        $region44: #{tpu_custom_call.1} parent=39 // pred_fallthru
          _
      $region40: #{tpu_custom_call.1} parent=5 // pred_fallthru
        _
      %p305 = scmp.le.s32.totalorder 1, %s21
      %p306 = scmp.lt.s32.totalorder %s21, 5
      %p307 = pnand %p305, %p306
      %p308 = pneg %p307
      // Predicated region
      $region45: #{tpu_custom_call.1} parent=5 // pred_check
        _
      $region46: #{tpu_custom_call.1} parent=5 // pred_check_branch
        %310 = sbr.rel (%p307) target = $region48
      $region47: #{tpu_custom_call.1} parent=5 // pred_region
        %s311 = ssub.s32 %s21, 1
        %s312 = sand.u32 %s46, 1
        %s313 = scalar_lea.sflag [#allocation4], %s312
        %s314 = sand.u32 %s46, 1
        %s315 = smul.addr %s314, 144
        %s316 = scalar_lea.vmem [#allocation3], %s315
        // Predicated region
        $region49: #{tpu_custom_call.1} parent=47 // pred_check
          %p317 = pneg %p59
        $region50: #{tpu_custom_call.1} parent=47 // pred_check_branch
          %319 = sbr.rel (%p317) target = $region52
        $region51: #{tpu_custom_call.1} parent=47 // pred_region
          %321 = dma.done %s313, 2304
        $region52: #{tpu_custom_call.1} parent=47 // pred_fallthru
          _
        // Predicated region
        $region53: #{tpu_custom_call.1} parent=47 // pred_check
          %p322 = pneg %p80
        $region54: #{tpu_custom_call.1} parent=47 // pred_check_branch
          %324 = sbr.rel (%p322) target = $region56
        $region55: #{tpu_custom_call.1} parent=47 // pred_region
          %326 = dma.done [#allocation7], 1024
        $region56: #{tpu_custom_call.1} parent=47 // pred_fallthru
          _
        // Predicated region
        $region57: #{tpu_custom_call.1} parent=47 // pred_check
          %p327 = pneg %p101
        $region58: #{tpu_custom_call.1} parent=47 // pred_check_branch
          %329 = sbr.rel (%p327) target = $region60
        $region59: #{tpu_custom_call.1} parent=47 // pred_region
          %331 = dma.done [#allocation7], 9216
        $region60: #{tpu_custom_call.1} parent=47 // pred_fallthru
          _
        // Predicated region
        $region61: #{tpu_custom_call.1} parent=47 // pred_check
          %p332 = pneg %p122
        $region62: #{tpu_custom_call.1} parent=47 // pred_check_branch
          %334 = sbr.rel (%p332) target = $region64
        $region63: #{tpu_custom_call.1} parent=47 // pred_region
          %336 = dma.done [#allocation10], 1024
        $region64: #{tpu_custom_call.1} parent=47 // pred_fallthru
          _
        %s337 = sand.u32 %s46, 1
        %s338 = scalar_lea.sflag [#allocation4], %s337
        %s339 = sand.u32 %s46, 1
        %s340 = smul.addr %s339, 144
        %s341 = scalar_lea.vmem [#allocation3], %s340
        %p342 = pneg %p59
        %p343 = pneg %p56
        %p344 = pneg %p80
        %p345 = pneg %p77
        %p346 = pneg %p101
        %p347 = pneg %p98
        %p348 = pneg %p122
        %p349 = pneg %p119
        %p350 = pneg %p143
        %p351 = pneg %p140
        %p352 = pneg %p164
        %p353 = pneg %p161
        %p354 = pneg %p185
        %p355 = pneg %p182
        %p356 = pneg %p213
        %p357 = pneg %p210
        %s358 = sand.u32 %s200, 1
        %s359 = scalar_lea.sflag [#allocation5], %s358
        %s360 = sand.u32 %s200, 1
        %s361 = smul.addr %s360, 64
        %s362 = scalar_lea.vmem [#allocation11], %s361
        %s363 = smul.u32 8, %s31
        %p365 = scmp.eq.s32.totalorder %s31, 0
        // Predicated region
        $region65: #{tpu_custom_call.1} parent=47 // pred_check
          %p366 = pneg %p365
        $region66: #{tpu_custom_call.1} parent=47 // pred_check_branch
          %368 = sbr.rel (%p366) target = $region68
        $region67: #{tpu_custom_call.1} parent=47 // pred_region
          %369 = vst [vmem:[#allocation2] sm:$0xf] 0
          %370 = vst [vmem:[#allocation2 + $0x4] sm:$0xf] 0
          %371 = vst [vmem:[#allocation2 + $0x8] sm:$0xf] 0
          %372 = vst [vmem:[#allocation2 + $0xc] sm:$0xf] 0
          %373 = vst [vmem:[#allocation2 + $0x10] sm:$0xf] 0
          %374 = vst [vmem:[#allocation2 + $0x14] sm:$0xf] 0
          %375 = vst [vmem:[#allocation2 + $0x18] sm:$0xf] 0
          %376 = vst [vmem:[#allocation2 + $0x1c] sm:$0xf] 0
          %377 = vst [vmem:[#allocation2 + $0x20] sm:$0xf] 0
          %378 = vst [vmem:[#allocation2 + $0x24] sm:$0xf] 0
          %379 = vst [vmem:[#allocation2 + $0x28] sm:$0xf] 0
          %380 = vst [vmem:[#allocation2 + $0x2c] sm:$0xf] 0
          %381 = vst [vmem:[#allocation2 + $0x30] sm:$0xf] 0
          %382 = vst [vmem:[#allocation2 + $0x34] sm:$0xf] 0
          %383 = vst [vmem:[#allocation2 + $0x38] sm:$0xf] 0
          %384 = vst [vmem:[#allocation2 + $0x3c] sm:$0xf] 0
          %385 = vst [vmem:[#allocation2 + $0x40] sm:$0xf] 0
          %386 = vst [vmem:[#allocation2 + $0x44] sm:$0xf] 0
          %387 = vst [vmem:[#allocation2 + $0x48] sm:$0xf] 0
          %388 = vst [vmem:[#allocation2 + $0x4c] sm:$0xf] 0
          %389 = vst [vmem:[#allocation2 + $0x50] sm:$0xf] 0
          %390 = vst [vmem:[#allocation2 + $0x54] sm:$0xf] 0
          %391 = vst [vmem:[#allocation2 + $0x58] sm:$0xf] 0
          %392 = vst [vmem:[#allocation2 + $0x5c] sm:$0xf] 0
          %393 = vst [vmem:[#allocation2 + $0x60] sm:$0xf] 0
          %394 = vst [vmem:[#allocation2 + $0x64] sm:$0xf] 0
          %395 = vst [vmem:[#allocation2 + $0x68] sm:$0xf] 0
          %396 = vst [vmem:[#allocation2 + $0x6c] sm:$0xf] 0
          %397 = vst [vmem:[#allocation2 + $0x70] sm:$0xf] 0
          %398 = vst [vmem:[#allocation2 + $0x74] sm:$0xf] 0
          %399 = vst [vmem:[#allocation2 + $0x78] sm:$0xf] 0
          %400 = vst [vmem:[#allocation2 + $0x7c] sm:$0xf] 0
          %401 = vst [vmem:[#allocation2 + $0x80] sm:$0xf] 0
        $region68: #{tpu_custom_call.1} parent=47 // pred_fallthru
          _
        %s402 = smul.u32 %s31, 8
        %s403 = smul.u32 %s402, 2
        %s404 = smul.addr %s403, 4
        %s405 = scalar_lea.vmem %s316, %s404 [#allocation3]
        %v406 = vld [vmem:[%s405] sm:$0xf]
        %v407 = vld [vmem:[%s405 + $0x4] sm:$0xf]
        %v408 = vld [vmem:[%s405 + $0x8] sm:$0xf]
        %v409 = vld [vmem:[%s405 + $0xc] sm:$0xf]
        %v410 = vld [vmem:[%s405 + $0x10] sm:$0xf]
        %v411 = vld [vmem:[%s405 + $0x14] sm:$0xf]
        %v412 = vld [vmem:[%s405 + $0x18] sm:$0xf]
        %v413 = vld [vmem:[%s405 + $0x1c] sm:$0xf]
        %v414 = vld [vmem:[%s405 + $0x20] sm:$0xf]
        %v415 = vld [vmem:[%s405 + $0x24] sm:$0xf]
        %v416 = vld [vmem:[%s405 + $0x28] sm:$0xf]
        %v417 = vld [vmem:[%s405 + $0x2c] sm:$0xf]
        %v418 = vld [vmem:[%s405 + $0x30] sm:$0xf]
        %v419 = vld [vmem:[%s405 + $0x34] sm:$0xf]
        %v420 = vld [vmem:[%s405 + $0x38] sm:$0xf]
        %v421 = vld [vmem:[%s405 + $0x3c] sm:$0xf]
        %v422 = vld [vmem:[%s405 + $0x40] sm:$0xf]
        %v423 = vld [vmem:[%s405 + $0x44] sm:$0xf]
        %v424 = vld [vmem:[%s405 + $0x48] sm:$0xf]
        %v425 = vld [vmem:[%s405 + $0x4c] sm:$0xf]
        %v426 = vld [vmem:[#allocation6] sm:$0xf]
        %v427 = vld [vmem:[#allocation6 + $0x4] sm:$0xf]
        %v428 = vld [vmem:[#allocation6 + $0x8] sm:$0xf]
        %v429 = vld [vmem:[#allocation6 + $0xc] sm:$0xf]
        %v430 = vld [vmem:[#allocation6 + $0x10] sm:$0xf]
        %v431 = vld [vmem:[#allocation6 + $0x14] sm:$0xf]
        %v432 = vld [vmem:[#allocation6 + $0x18] sm:$0xf]
        %v433 = vld [vmem:[#allocation6 + $0x1c] sm:$0xf]
        %v434 = vld [vmem:[#allocation6 + $0x20] sm:$0xf]
        %v435 = vld [vmem:[#allocation6 + $0x24] sm:$0xf]
        %v436 = vld [vmem:[#allocation6 + $0x28] sm:$0xf]
        %v437 = vld [vmem:[#allocation6 + $0x2c] sm:$0xf]
        %v438 = vld [vmem:[#allocation6 + $0x30] sm:$0xf]
        %v439 = vld [vmem:[#allocation6 + $0x34] sm:$0xf]
        %v440 = vld [vmem:[#allocation6 + $0x38] sm:$0xf]
        %v441 = vld [vmem:[#allocation6 + $0x3c] sm:$0xf]
        %v442 = vld [vmem:[%s4] sm:$0x1]
        %v444 = vperm.slane %v442, 0
        %v466 = vunpack.c.l.b16 %v406
        %v467 = vunpack.c.l.b16 %v407
        %v468 = vunpack.c.l.b16 %v408
        %v469 = vunpack.c.l.b16 %v409
        %v470 = vunpack.c.l.b16 %v410
        %v471 = vunpack.c.l.b16 %v411
        %v472 = vunpack.c.l.b16 %v412
        %v473 = vunpack.c.l.b16 %v413
        %v474 = vunpack.c.l.b16 %v414
        %v475 = vunpack.c.l.b16 %v415
        %v476 = vunpack.c.l.b16 %v416
        %v477 = vunpack.c.l.b16 %v417
        %v478 = vunpack.c.l.b16 %v418
        %v479 = vunpack.c.l.b16 %v419
        %v480 = vunpack.c.l.b16 %v420
        %v481 = vunpack.c.l.b16 %v421
        %v482 = vunpack.c.l.b16 %v422
        %v483 = vunpack.c.l.b16 %v423
        %v484 = vunpack.c.l.b16 %v424
        %v485 = vunpack.c.l.b16 %v425
        %v486 = vpack.c.b16 %v467, %v466
        %v487 = vpack.c.b16 %v469, %v468
        %v488 = vpack.c.b16 %v471, %v470
        %v489 = vpack.c.b16 %v473, %v472
        %v490 = vpack.c.b16 %v475, %v474
        %v491 = vpack.c.b16 %v477, %v476
        %v492 = vpack.c.b16 %v479, %v478
        %v493 = vpack.c.b16 %v481, %v480
        %v494 = vpack.c.b16 %v483, %v482
        %v495 = vpack.c.b16 %v485, %v484
        %v522 = vunpack.c.l.b16 %v426
        %v523 = vunpack.c.l.b16 %v427
        %v524 = vunpack.c.l.b16 %v428
        %v525 = vunpack.c.l.b16 %v429
        %v526 = vunpack.c.l.b16 %v430
        %v527 = vunpack.c.l.b16 %v431
        %v528 = vunpack.c.l.b16 %v432
        %v529 = vunpack.c.l.b16 %v433
        %v530 = vunpack.c.l.b16 %v434
        %v531 = vunpack.c.l.b16 %v435
        %v532 = vunpack.c.l.b16 %v436
        %v533 = vunpack.c.l.b16 %v437
        %v534 = vunpack.c.l.b16 %v438
        %v535 = vunpack.c.l.b16 %v439
        %v536 = vunpack.c.l.b16 %v440
        %v537 = vunpack.c.l.b16 %v441
        %v538 = vpack.c.b16 %v523, %v522
        %v539 = vpack.c.b16 %v525, %v524
        %v540 = vpack.c.b16 %v527, %v526
        %v541 = vpack.c.b16 %v529, %v528
        %v542 = vpack.c.b16 %v531, %v530
        %v543 = vpack.c.b16 %v533, %v532
        %v544 = vpack.c.b16 %v535, %v534
        %v545 = vpack.c.b16 %v537, %v536
        %554 = vmatpush.bf16.msra.mxu0 %v545
        %555 = vmatpush.bf16.msra.mxu0 %v544
        %556 = vmatpush.bf16.msra.mxu0 %v543
        %557 = vmatpush.bf16.msra.mxu0 %v542
        %558 = vmatpush.bf16.msra.mxu0 %v541
        %559 = vmatpush.bf16.msra.mxu0 %v540
        %560 = vmatpush.bf16.msra.mxu0 %v539
        %561 = vmatpush.bf16.msra.mxu0 %v538
        %562 = vmatmul.bf16.gmra.mxu0 %v486
        %v563 = vpop.f32.mrf.mxu0
        %v564 = vadd.f32 %v444, %v563
        %v565 = vpop.f32.mrf.mxu0
        %v566 = vadd.f32 %v444, %v565
        %567 = vmatmul.bf16.gmra.mxu0 %v487
        %v568 = vpop.f32.mrf.mxu0
        %v569 = vadd.f32 %v444, %v568
        %v570 = vpop.f32.mrf.mxu0
        %v571 = vadd.f32 %v444, %v570
        %572 = vmatmul.bf16.gmra.mxu0 %v488
        %v573 = vpop.f32.mrf.mxu0
        %v574 = vadd.f32 %v444, %v573
        %v575 = vpop.f32.mrf.mxu0
        %v576 = vadd.f32 %v444, %v575
        %577 = vmatmul.bf16.gmra.mxu0 %v489
        %v578 = vpop.f32.mrf.mxu0
        %v579 = vadd.f32 %v444, %v578
        %v580 = vpop.f32.mrf.mxu0
        %v581 = vadd.f32 %v444, %v580
        %582 = vmatmul.bf16.gmra.mxu0 %v490
        %v583 = vpop.f32.mrf.mxu0
        %v584 = vadd.f32 %v444, %v583
        %v585 = vpop.f32.mrf.mxu0
        %v586 = vadd.f32 %v444, %v585
        %587 = vmatmul.bf16.gmra.mxu0 %v491
        %v588 = vpop.f32.mrf.mxu0
        %v589 = vadd.f32 %v444, %v588
        %v590 = vpop.f32.mrf.mxu0
        %v591 = vadd.f32 %v444, %v590
        %592 = vmatmul.bf16.gmra.mxu0 %v492
        %v593 = vpop.f32.mrf.mxu0
        %v594 = vadd.f32 %v444, %v593
        %v595 = vpop.f32.mrf.mxu0
        %v596 = vadd.f32 %v444, %v595
        %597 = vmatmul.bf16.gmra.mxu0 %v493
        %v598 = vpop.f32.mrf.mxu0
        %v599 = vadd.f32 %v444, %v598
        %v600 = vpop.f32.mrf.mxu0
        %v601 = vadd.f32 %v444, %v600
        %602 = vmatmul.bf16.gmra.mxu0 %v494
        %v603 = vpop.f32.mrf.mxu0
        %v604 = vadd.f32 %v444, %v603
        %v605 = vpop.f32.mrf.mxu0
        %v606 = vadd.f32 %v444, %v605
        %607 = vmatmul.bf16.gmra.mxu0 %v495
        %v608 = vpop.f32.mrf.mxu0
        %v609 = vadd.f32 %v444, %v608
        %v610 = vpop.f32.mrf.mxu0
        %v611 = vadd.f32 %v444, %v610
        %612 = vdwg.mxu0
        %v613 = vmax.f32 %v564, 0.0
        %v614 = vmax.f32 %v566, 0.0
        %v615 = vmax.f32 %v569, 0.0
        %v616 = vmax.f32 %v571, 0.0
        %v617 = vmax.f32 %v574, 0.0
        %v618 = vmax.f32 %v576, 0.0
        %v619 = vmax.f32 %v579, 0.0
        %v620 = vmax.f32 %v581, 0.0
        %v621 = vmax.f32 %v584, 0.0
        %v622 = vmax.f32 %v586, 0.0
        %v623 = vmax.f32 %v589, 0.0
        %v624 = vmax.f32 %v591, 0.0
        %v625 = vmax.f32 %v594, 0.0
        %v626 = vmax.f32 %v596, 0.0
        %v627 = vmax.f32 %v599, 0.0
        %v628 = vmax.f32 %v601, 0.0
        %v629 = vmax.f32 %v604, 0.0
        %v630 = vmax.f32 %v606, 0.0
        %v631 = vmax.f32 %v609, 0.0
        %v632 = vmax.f32 %v611, 0.0
        %v633 = vpack.c.bf16 %v613, %v613
        %v634 = vpack.c.bf16 %v614, %v614
        %v635 = vpack.c.bf16 %v615, %v615
        %v636 = vpack.c.bf16 %v616, %v616
        %v637 = vpack.c.bf16 %v617, %v617
        %v638 = vpack.c.bf16 %v618, %v618
        %v639 = vpack.c.bf16 %v619, %v619
        %v640 = vpack.c.bf16 %v620, %v620
        %v641 = vpack.c.bf16 %v621, %v621
        %v642 = vpack.c.bf16 %v622, %v622
        %v643 = vpack.c.bf16 %v623, %v623
        %v644 = vpack.c.bf16 %v624, %v624
        %v645 = vpack.c.bf16 %v625, %v625
        %v646 = vpack.c.bf16 %v626, %v626
        %v647 = vpack.c.bf16 %v627, %v627
        %v648 = vpack.c.bf16 %v628, %v628
        %v649 = vpack.c.bf16 %v629, %v629
        %v650 = vpack.c.bf16 %v630, %v630
        %v651 = vpack.c.bf16 %v631, %v631
        %v652 = vpack.c.bf16 %v632, %v632
        %vm653 = vsmask.f32 256
        %vm654 = vsmask.f32 4368
        %vm655 = vmor %vm653, %vm654
        %v657 = vshrl.u32 %v633, 16
        %v659 = vrot.slane %v657, 7
        %v660 = vshll.u32 %v633, 16
        %v662 = vor.u32 %v659, %v660
        %v663 = vrot.slane %v659, 4
        %v665 = vshrl.u32 %v634, 16
        %v667 = vrot.slane %v665, 7
        %v668 = vshll.u32 %v634, 16
        %v670 = vor.u32 %v667, %v668
        %v671 = vsel %vm655, %v663, %v670
        %v672 = vrot.slane %v667, 4
        %vm676 = vcmask 1043456
        %vm677 = vsmask.f32 7938
        %vm678 = vmand %vm676, %vm677
        %v679 = vld [vmem:[#allocation2] sm:$0xf]
        %v680 = vsel %vm678, %v662, %v679
        %681 = vst [vmem:[#allocation2] sm:$0xf] %v680
        %682 = vst [vmem:[#allocation2 + $0x4] sm:$0xf] %v671
        %vm683 = vcmask 1040384
        %vm684 = vmand %vm683, %vm653
        %v685 = vld [vmem:[#allocation2 + $0x8] sm:$0x1]
        %v686 = vsel %vm684, %v672, %v685
        %687 = vst [vmem:[#allocation2 + $0x8] sm:$0x1] %v686
        %v689 = vshrl.u32 %v635, 16
        %v691 = vrot.slane %v689, 7
        %v692 = vshll.u32 %v635, 16
        %v694 = vor.u32 %v691, %v692
        %v695 = vrot.slane %v691, 4
        %v697 = vshrl.u32 %v636, 16
        %v699 = vrot.slane %v697, 7
        %v700 = vshll.u32 %v636, 16
        %v702 = vor.u32 %v699, %v700
        %v703 = vsel %vm655, %v695, %v702
        %v704 = vrot.slane %v699, 4
        %v708 = vld [vmem:[#allocation2 + $0xc] sm:$0xf]
        %v709 = vsel %vm678, %v694, %v708
        %710 = vst [vmem:[#allocation2 + $0xc] sm:$0xf] %v709
        %711 = vst [vmem:[#allocation2 + $0x10] sm:$0xf] %v703
        %v712 = vld [vmem:[#allocation2 + $0x14] sm:$0x1]
        %v713 = vsel %vm684, %v704, %v712
        %714 = vst [vmem:[#allocation2 + $0x14] sm:$0x1] %v713
        %v716 = vshrl.u32 %v637, 16
        %v718 = vrot.slane %v716, 7
        %v719 = vshll.u32 %v637, 16
        %v721 = vor.u32 %v718, %v719
        %v722 = vrot.slane %v718, 4
        %v724 = vshrl.u32 %v638, 16
        %v726 = vrot.slane %v724, 7
        %v727 = vshll.u32 %v638, 16
        %v729 = vor.u32 %v726, %v727
        %v730 = vsel %vm655, %v722, %v729
        %v731 = vrot.slane %v726, 4
        %v735 = vld [vmem:[#allocation2 + $0x18] sm:$0xf]
        %v736 = vsel %vm678, %v721, %v735
        %737 = vst [vmem:[#allocation2 + $0x18] sm:$0xf] %v736
        %738 = vst [vmem:[#allocation2 + $0x1c] sm:$0xf] %v730
        %v739 = vld [vmem:[#allocation2 + $0x20] sm:$0x1]
        %v740 = vsel %vm684, %v731, %v739
        %741 = vst [vmem:[#allocation2 + $0x20] sm:$0x1] %v740
        %v743 = vshrl.u32 %v639, 16
        %v745 = vrot.slane %v743, 7
        %v746 = vshll.u32 %v639, 16
        %v748 = vor.u32 %v745, %v746
        %v749 = vrot.slane %v745, 4
        %v751 = vshrl.u32 %v640, 16
        %v753 = vrot.slane %v751, 7
        %v754 = vshll.u32 %v640, 16
        %v756 = vor.u32 %v753, %v754
        %v757 = vsel %vm655, %v749, %v756
        %v758 = vrot.slane %v753, 4
        %v762 = vld [vmem:[#allocation2 + $0x24] sm:$0xf]
        %v763 = vsel %vm678, %v748, %v762
        %764 = vst [vmem:[#allocation2 + $0x24] sm:$0xf] %v763
        %765 = vst [vmem:[#allocation2 + $0x28] sm:$0xf] %v757
        %v766 = vld [vmem:[#allocation2 + $0x2c] sm:$0x1]
        %v767 = vsel %vm684, %v758, %v766
        %768 = vst [vmem:[#allocation2 + $0x2c] sm:$0x1] %v767
        %v770 = vshrl.u32 %v641, 16
        %v772 = vrot.slane %v770, 7
        %v773 = vshll.u32 %v641, 16
        %v775 = vor.u32 %v772, %v773
        %v776 = vrot.slane %v772, 4
        %v778 = vshrl.u32 %v642, 16
        %v780 = vrot.slane %v778, 7
        %v781 = vshll.u32 %v642, 16
        %v783 = vor.u32 %v780, %v781
        %v784 = vsel %vm655, %v776, %v783
        %v785 = vrot.slane %v780, 4
        %v789 = vld [vmem:[#allocation2 + $0x30] sm:$0xf]
        %v790 = vsel %vm678, %v775, %v789
        %791 = vst [vmem:[#allocation2 + $0x30] sm:$0xf] %v790
        %792 = vst [vmem:[#allocation2 + $0x34] sm:$0xf] %v784
        %v793 = vld [vmem:[#allocation2 + $0x38] sm:$0x1]
        %v794 = vsel %vm684, %v785, %v793
        %795 = vst [vmem:[#allocation2 + $0x38] sm:$0x1] %v794
        %v797 = vshrl.u32 %v643, 16
        %v799 = vrot.slane %v797, 7
        %v800 = vshll.u32 %v643, 16
        %v802 = vor.u32 %v799, %v800
        %v803 = vrot.slane %v799, 4
        %v805 = vshrl.u32 %v644, 16
        %v807 = vrot.slane %v805, 7
        %v808 = vshll.u32 %v644, 16
        %v810 = vor.u32 %v807, %v808
        %v811 = vsel %vm655, %v803, %v810
        %v812 = vrot.slane %v807, 4
        %v816 = vld [vmem:[#allocation2 + $0x3c] sm:$0xf]
        %v817 = vsel %vm678, %v802, %v816
        %818 = vst [vmem:[#allocation2 + $0x3c] sm:$0xf] %v817
        %819 = vst [vmem:[#allocation2 + $0x40] sm:$0xf] %v811
        %v820 = vld [vmem:[#allocation2 + $0x44] sm:$0x1]
        %v821 = vsel %vm684, %v812, %v820
        %822 = vst [vmem:[#allocation2 + $0x44] sm:$0x1] %v821
        %v824 = vshrl.u32 %v645, 16
        %v826 = vrot.slane %v824, 7
        %v827 = vshll.u32 %v645, 16
        %v829 = vor.u32 %v826, %v827
        %v830 = vrot.slane %v826, 4
        %v832 = vshrl.u32 %v646, 16
        %v834 = vrot.slane %v832, 7
        %v835 = vshll.u32 %v646, 16
        %v837 = vor.u32 %v834, %v835
        %v838 = vsel %vm655, %v830, %v837
        %v839 = vrot.slane %v834, 4
        %v843 = vld [vmem:[#allocation2 + $0x48] sm:$0xf]
        %v844 = vsel %vm678, %v829, %v843
        %845 = vst [vmem:[#allocation2 + $0x48] sm:$0xf] %v844
        %846 = vst [vmem:[#allocation2 + $0x4c] sm:$0xf] %v838
        %v847 = vld [vmem:[#allocation2 + $0x50] sm:$0x1]
        %v848 = vsel %vm684, %v839, %v847
        %849 = vst [vmem:[#allocation2 + $0x50] sm:$0x1] %v848
        %v851 = vshrl.u32 %v647, 16
        %v853 = vrot.slane %v851, 7
        %v854 = vshll.u32 %v647, 16
        %v856 = vor.u32 %v853, %v854
        %v857 = vrot.slane %v853, 4
        %v859 = vshrl.u32 %v648, 16
        %v861 = vrot.slane %v859, 7
        %v862 = vshll.u32 %v648, 16
        %v864 = vor.u32 %v861, %v862
        %v865 = vsel %vm655, %v857, %v864
        %v866 = vrot.slane %v861, 4
        %v870 = vld [vmem:[#allocation2 + $0x54] sm:$0xf]
        %v871 = vsel %vm678, %v856, %v870
        %872 = vst [vmem:[#allocation2 + $0x54] sm:$0xf] %v871
        %873 = vst [vmem:[#allocation2 + $0x58] sm:$0xf] %v865
        %v874 = vld [vmem:[#allocation2 + $0x5c] sm:$0x1]
        %v875 = vsel %vm684, %v866, %v874
        %876 = vst [vmem:[#allocation2 + $0x5c] sm:$0x1] %v875
        %v878 = vshrl.u32 %v649, 16
        %v880 = vrot.slane %v878, 7
        %v881 = vshll.u32 %v649, 16
        %v883 = vor.u32 %v880, %v881
        %v884 = vrot.slane %v880, 4
        %v886 = vshrl.u32 %v650, 16
        %v888 = vrot.slane %v886, 7
        %v889 = vshll.u32 %v650, 16
        %v891 = vor.u32 %v888, %v889
        %v892 = vsel %vm655, %v884, %v891
        %v893 = vrot.slane %v888, 4
        %v897 = vld [vmem:[#allocation2 + $0x60] sm:$0xf]
        %v898 = vsel %vm678, %v883, %v897
        %899 = vst [vmem:[#allocation2 + $0x60] sm:$0xf] %v898
        %900 = vst [vmem:[#allocation2 + $0x64] sm:$0xf] %v892
        %v901 = vld [vmem:[#allocation2 + $0x68] sm:$0x1]
        %v902 = vsel %vm684, %v893, %v901
        %903 = vst [vmem:[#allocation2 + $0x68] sm:$0x1] %v902
        %v905 = vshrl.u32 %v651, 16
        %v907 = vrot.slane %v905, 7
        %v908 = vshll.u32 %v651, 16
        %v910 = vor.u32 %v907, %v908
        %v911 = vrot.slane %v907, 4
        %v913 = vshrl.u32 %v652, 16
        %v915 = vrot.slane %v913, 7
        %v916 = vshll.u32 %v652, 16
        %v918 = vor.u32 %v915, %v916
        %v919 = vsel %vm655, %v911, %v918
        %v920 = vrot.slane %v915, 4
        %v924 = vld [vmem:[#allocation2 + $0x6c] sm:$0xf]
        %v925 = vsel %vm678, %v910, %v924
        %926 = vst [vmem:[#allocation2 + $0x6c] sm:$0xf] %v925
        %927 = vst [vmem:[#allocation2 + $0x70] sm:$0xf] %v919
        %v928 = vld [vmem:[#allocation2 + $0x74] sm:$0x1]
        %v929 = vsel %vm684, %v920, %v928
        %930 = vst [vmem:[#allocation2 + $0x74] sm:$0x1] %v929
        // Predicated region
        $region69: #{tpu_custom_call.1} parent=47 // pred_check
          %p931 = pneg %p365
        $region70: #{tpu_custom_call.1} parent=47 // pred_check_branch
          %933 = sbr.rel (%p931) target = $region72
        $region71: #{tpu_custom_call.1} parent=47 // pred_region
          %v934 = vld [vmem:[#allocation2] sm:$0xf]
          %v935 = vsel %vm678, 0, %v934
          %936 = vst [vmem:[#allocation2] sm:$0xf] %v935
          %937 = vst [vmem:[#allocation2 + $0x4] sm:$0xf] 0
          %v938 = vld [vmem:[#allocation2 + $0x8] sm:$0x1]
          %v939 = vsel %vm684, 0, %v938
          %940 = vst [vmem:[#allocation2 + $0x8] sm:$0x1] %v939
        $region72: #{tpu_custom_call.1} parent=47 // pred_fallthru
          _
        %p941 = scmp.eq.s32.totalorder %s31, 1
        // Predicated region
        $region73: #{tpu_custom_call.1} parent=47 // pred_check
          %p942 = pneg %p941
        $region74: #{tpu_custom_call.1} parent=47 // pred_check_branch
          %944 = sbr.rel (%p942) target = $region76
        $region75: #{tpu_custom_call.1} parent=47 // pred_region
          %v945 = vld [vmem:[#allocation2 + $0x6c] sm:$0xf]
          %v946 = vsel %vm678, 0, %v945
          %947 = vst [vmem:[#allocation2 + $0x6c] sm:$0xf] %v946
          %948 = vst [vmem:[#allocation2 + $0x70] sm:$0xf] 0
          %v949 = vld [vmem:[#allocation2 + $0x74] sm:$0x1]
          %v950 = vsel %vm684, 0, %v949
          %951 = vst [vmem:[#allocation2 + $0x74] sm:$0x1] %v950
        $region76: #{tpu_custom_call.1} parent=47 // pred_fallthru
          _
        %v952 = vld [vmem:[#allocation2] sm:$0xf]
        %v953 = vld [vmem:[#allocation2 + $0x4] sm:$0xf]
        %v954 = vld [vmem:[#allocation2 + $0x8] sm:$0xf]
        %v955 = vld [vmem:[#allocation2 + $0xc] sm:$0xf]
        %v956 = vld [vmem:[#allocation2 + $0x10] sm:$0xf]
        %v957 = vld [vmem:[#allocation2 + $0x14] sm:$0xf]
        %v958 = vld [vmem:[#allocation2 + $0x18] sm:$0xf]
        %v959 = vld [vmem:[#allocation2 + $0x1c] sm:$0xf]
        %v960 = vld [vmem:[#allocation2 + $0x20] sm:$0xf]
        %v961 = vld [vmem:[#allocation2 + $0x24] sm:$0xf]
        %v962 = vld [vmem:[#allocation2 + $0x28] sm:$0xf]
        %v963 = vld [vmem:[#allocation2 + $0x2c] sm:$0xf]
        %v964 = vld [vmem:[#allocation2 + $0x30] sm:$0xf]
        %v965 = vld [vmem:[#allocation2 + $0x34] sm:$0xf]
        %v966 = vld [vmem:[#allocation2 + $0x38] sm:$0xf]
        %v967 = vld [vmem:[#allocation2 + $0x3c] sm:$0xf]
        %v968 = vld [vmem:[#allocation2 + $0x40] sm:$0xf]
        %v969 = vld [vmem:[#allocation2 + $0x44] sm:$0xf]
        %v970 = vld [vmem:[#allocation2 + $0x48] sm:$0xf]
        %v971 = vld [vmem:[#allocation2 + $0x4c] sm:$0xf]
        %v972 = vld [vmem:[#allocation2 + $0x50] sm:$0xf]
        %v973 = vld [vmem:[#allocation2 + $0x54] sm:$0xf]
        %v974 = vld [vmem:[#allocation2 + $0x58] sm:$0xf]
        %v975 = vld [vmem:[#allocation2 + $0x5c] sm:$0xf]
        %v976 = vld [vmem:[#allocation8] sm:$0xf]
        %v977 = vld [vmem:[#allocation8 + $0x4] sm:$0xf]
        %v978 = vld [vmem:[#allocation8 + $0x8] sm:$0xf]
        %v979 = vld [vmem:[#allocation8 + $0xc] sm:$0xf]
        %v980 = vld [vmem:[#allocation8 + $0x10] sm:$0xf]
        %v981 = vld [vmem:[#allocation8 + $0x14] sm:$0xf]
        %v982 = vld [vmem:[#allocation8 + $0x18] sm:$0xf]
        %v983 = vld [vmem:[#allocation8 + $0x1c] sm:$0xf]
        %v984 = vld [vmem:[#allocation8 + $0x20] sm:$0xf]
        %v985 = vld [vmem:[#allocation8 + $0x24] sm:$0xf]
        %v986 = vld [vmem:[#allocation8 + $0x28] sm:$0xf]
        %v987 = vld [vmem:[#allocation8 + $0x2c] sm:$0xf]
        %v988 = vld [vmem:[#allocation8 + $0x30] sm:$0xf]
        %v989 = vld [vmem:[#allocation8 + $0x34] sm:$0xf]
        %v990 = vld [vmem:[#allocation8 + $0x38] sm:$0xf]
        %v991 = vld [vmem:[#allocation8 + $0x3c] sm:$0xf]
        %v992 = vld [vmem:[%s5] sm:$0x1]
        %v994 = vperm.slane %v992, 0
        %v1020 = vunpack.c.l.b16 %v952
        %v1021 = vunpack.c.l.b16 %v953
        %v1022 = vunpack.c.l.b16 %v954
        %v1023 = vunpack.c.l.b16 %v955
        %v1024 = vunpack.c.l.b16 %v956
        %v1025 = vunpack.c.l.b16 %v957
        %v1026 = vunpack.c.l.b16 %v958
        %v1027 = vunpack.c.l.b16 %v959
        %v1028 = vunpack.c.l.b16 %v960
        %v1029 = vunpack.c.l.b16 %v961
        %v1030 = vunpack.c.l.b16 %v962
        %v1031 = vunpack.c.l.b16 %v963
        %v1032 = vunpack.c.l.b16 %v964
        %v1033 = vunpack.c.l.b16 %v965
        %v1034 = vunpack.c.l.b16 %v966
        %v1035 = vunpack.c.l.b16 %v967
        %v1036 = vunpack.c.l.b16 %v968
        %v1037 = vunpack.c.l.b16 %v969
        %v1038 = vunpack.c.l.b16 %v970
        %v1039 = vunpack.c.l.b16 %v971
        %v1040 = vunpack.c.l.b16 %v972
        %v1041 = vunpack.c.l.b16 %v973
        %v1042 = vunpack.c.l.b16 %v974
        %v1043 = vunpack.c.l.b16 %v975
        %v1044 = vpack.c.b16 %v1021, %v1020
        %v1045 = vpack.c.b16 %v1023, %v1022
        %v1046 = vpack.c.b16 %v1025, %v1024
        %v1047 = vpack.c.b16 %v1027, %v1026
        %v1048 = vpack.c.b16 %v1029, %v1028
        %v1049 = vpack.c.b16 %v1031, %v1030
        %v1050 = vpack.c.b16 %v1033, %v1032
        %v1051 = vpack.c.b16 %v1035, %v1034
        %v1052 = vpack.c.b16 %v1037, %v1036
        %v1053 = vpack.c.b16 %v1039, %v1038
        %v1054 = vpack.c.b16 %v1041, %v1040
        %v1055 = vpack.c.b16 %v1043, %v1042
        %v1084 = vunpack.c.l.b16 %v976
        %v1085 = vunpack.c.l.b16 %v977
        %v1086 = vunpack.c.l.b16 %v978
        %v1087 = vunpack.c.l.b16 %v979
        %v1088 = vunpack.c.l.b16 %v980
        %v1089 = vunpack.c.l.b16 %v981
        %v1090 = vunpack.c.l.b16 %v982
        %v1091 = vunpack.c.l.b16 %v983
        %v1092 = vunpack.c.l.b16 %v984
        %v1093 = vunpack.c.l.b16 %v985
        %v1094 = vunpack.c.l.b16 %v986
        %v1095 = vunpack.c.l.b16 %v987
        %v1096 = vunpack.c.l.b16 %v988
        %v1097 = vunpack.c.l.b16 %v989
        %v1098 = vunpack.c.l.b16 %v990
        %v1099 = vunpack.c.l.b16 %v991
        %v1100 = vpack.c.b16 %v1085, %v1084
        %v1101 = vpack.c.b16 %v1087, %v1086
        %v1102 = vpack.c.b16 %v1089, %v1088
        %v1103 = vpack.c.b16 %v1091, %v1090
        %v1104 = vpack.c.b16 %v1093, %v1092
        %v1105 = vpack.c.b16 %v1095, %v1094
        %v1106 = vpack.c.b16 %v1097, %v1096
        %v1107 = vpack.c.b16 %v1099, %v1098
        %1116 = vmatpush.bf16.msra.mxu0 %v1107
        %1117 = vmatpush.bf16.msra.mxu0 %v1106
        %1118 = vmatpush.bf16.msra.mxu0 %v1105
        %1119 = vmatpush.bf16.msra.mxu0 %v1104
        %1120 = vmatpush.bf16.msra.mxu0 %v1103
        %1121 = vmatpush.bf16.msra.mxu0 %v1102
        %1122 = vmatpush.bf16.msra.mxu0 %v1101
        %1123 = vmatpush.bf16.msra.mxu0 %v1100
        %1124 = vmatmul.bf16.gmra.mxu0 %v1044
        %v1125 = vpop.f32.mrf.mxu0
        %v1126 = vadd.f32 %v994, %v1125
        %v1127 = vpop.f32.mrf.mxu0
        %v1128 = vadd.f32 %v994, %v1127
        %1129 = vmatmul.bf16.gmra.mxu0 %v1045
        %v1130 = vpop.f32.mrf.mxu0
        %v1131 = vpop.f32.mrf.mxu0
        %v1132 = vadd.f32 %v994, %v1131
        %1133 = vmatmul.bf16.gmra.mxu0 %v1046
        %v1134 = vpop.f32.mrf.mxu0
        %v1135 = vadd.f32 %v994, %v1134
        %v1136 = vpop.f32.mrf.mxu0
        %1137 = vmatmul.bf16.gmra.mxu0 %v1047
        %v1138 = vpop.f32.mrf.mxu0
        %v1139 = vadd.f32 %v994, %v1138
        %v1140 = vpop.f32.mrf.mxu0
        %v1141 = vadd.f32 %v994, %v1140
        %1142 = vmatmul.bf16.gmra.mxu0 %v1048
        %v1143 = vpop.f32.mrf.mxu0
        %v1144 = vpop.f32.mrf.mxu0
        %v1145 = vadd.f32 %v994, %v1144
        %1146 = vmatmul.bf16.gmra.mxu0 %v1049
        %v1147 = vpop.f32.mrf.mxu0
        %v1148 = vadd.f32 %v994, %v1147
        %v1149 = vpop.f32.mrf.mxu0
        %1150 = vmatmul.bf16.gmra.mxu0 %v1050
        %v1151 = vpop.f32.mrf.mxu0
        %v1152 = vadd.f32 %v994, %v1151
        %v1153 = vpop.f32.mrf.mxu0
        %v1154 = vadd.f32 %v994, %v1153
        %1155 = vmatmul.bf16.gmra.mxu0 %v1051
        %v1156 = vpop.f32.mrf.mxu0
        %v1157 = vpop.f32.mrf.mxu0
        %v1158 = vadd.f32 %v994, %v1157
        %1159 = vmatmul.bf16.gmra.mxu0 %v1052
        %v1160 = vpop.f32.mrf.mxu0
        %v1161 = vadd.f32 %v994, %v1160
        %v1162 = vpop.f32.mrf.mxu0
        %1163 = vmatmul.bf16.gmra.mxu0 %v1053
        %v1164 = vpop.f32.mrf.mxu0
        %v1165 = vadd.f32 %v994, %v1164
        %v1166 = vpop.f32.mrf.mxu0
        %v1167 = vadd.f32 %v994, %v1166
        %1168 = vmatmul.bf16.gmra.mxu0 %v1054
        %v1169 = vpop.f32.mrf.mxu0
        %v1170 = vpop.f32.mrf.mxu0
        %v1171 = vadd.f32 %v994, %v1170
        %1172 = vmatmul.bf16.gmra.mxu0 %v1055
        %v1173 = vpop.f32.mrf.mxu0
        %v1174 = vadd.f32 %v994, %v1173
        %v1175 = vpop.f32.mrf.mxu0
        %1176 = vdwg.mxu0
        %v1177 = vld [vmem:[#allocation2] sm:$0xf]
        %v1178 = vld [vmem:[#allocation2 + $0x4] sm:$0xf]
        %v1179 = vld [vmem:[#allocation2 + $0x8] sm:$0xf]
        %v1180 = vld [vmem:[#allocation2 + $0xc] sm:$0xf]
        %v1181 = vld [vmem:[#allocation2 + $0x10] sm:$0xf]
        %v1182 = vld [vmem:[#allocation2 + $0x14] sm:$0xf]
        %v1183 = vld [vmem:[#allocation2 + $0x18] sm:$0xf]
        %v1184 = vld [vmem:[#allocation2 + $0x1c] sm:$0xf]
        %v1185 = vld [vmem:[#allocation2 + $0x20] sm:$0xf]
        %v1186 = vld [vmem:[#allocation2 + $0x24] sm:$0xf]
        %v1187 = vld [vmem:[#allocation2 + $0x28] sm:$0xf]
        %v1188 = vld [vmem:[#allocation2 + $0x2c] sm:$0xf]
        %v1189 = vld [vmem:[#allocation2 + $0x30] sm:$0xf]
        %v1190 = vld [vmem:[#allocation2 + $0x34] sm:$0xf]
        %v1191 = vld [vmem:[#allocation2 + $0x38] sm:$0xf]
        %v1192 = vld [vmem:[#allocation2 + $0x3c] sm:$0xf]
        %v1193 = vld [vmem:[#allocation2 + $0x40] sm:$0xf]
        %v1194 = vld [vmem:[#allocation2 + $0x44] sm:$0xf]
        %v1195 = vld [vmem:[#allocation2 + $0x48] sm:$0xf]
        %v1196 = vld [vmem:[#allocation2 + $0x4c] sm:$0xf]
        %v1197 = vld [vmem:[#allocation2 + $0x50] sm:$0xf]
        %v1198 = vld [vmem:[#allocation2 + $0x54] sm:$0xf]
        %v1199 = vld [vmem:[#allocation2 + $0x58] sm:$0xf]
        %v1200 = vld [vmem:[#allocation2 + $0x5c] sm:$0xf]
        %v1201 = vld [vmem:[#allocation2 + $0x60] sm:$0x1]
        %s1202 = scalar_lea.vmem [#allocation8], 64
        %v1203 = vld [vmem:[%s1202] sm:$0xf]
        %v1204 = vld [vmem:[%s1202 + $0x4] sm:$0xf]
        %v1205 = vld [vmem:[%s1202 + $0x8] sm:$0xf]
        %v1206 = vld [vmem:[%s1202 + $0xc] sm:$0xf]
        %v1207 = vld [vmem:[%s1202 + $0x10] sm:$0xf]
        %v1208 = vld [vmem:[%s1202 + $0x14] sm:$0xf]
        %v1209 = vld [vmem:[%s1202 + $0x18] sm:$0xf]
        %v1210 = vld [vmem:[%s1202 + $0x1c] sm:$0xf]
        %v1211 = vld [vmem:[%s1202 + $0x20] sm:$0xf]
        %v1212 = vld [vmem:[%s1202 + $0x24] sm:$0xf]
        %v1213 = vld [vmem:[%s1202 + $0x28] sm:$0xf]
        %v1214 = vld [vmem:[%s1202 + $0x2c] sm:$0xf]
        %v1215 = vld [vmem:[%s1202 + $0x30] sm:$0xf]
        %v1216 = vld [vmem:[%s1202 + $0x34] sm:$0xf]
        %v1217 = vld [vmem:[%s1202 + $0x38] sm:$0xf]
        %v1218 = vld [vmem:[%s1202 + $0x3c] sm:$0xf]
        %v1244 = vunpack.c.l.b16 %v1177
        %v1245 = vunpack.c.l.b16 %v1178
        %v1246 = vunpack.c.l.b16 %v1179
        %v1247 = vunpack.c.l.b16 %v1180
        %v1248 = vunpack.c.l.b16 %v1181
        %v1249 = vunpack.c.l.b16 %v1182
        %v1250 = vunpack.c.l.b16 %v1183
        %v1251 = vunpack.c.l.b16 %v1184
        %v1252 = vunpack.c.l.b16 %v1185
        %v1253 = vunpack.c.l.b16 %v1186
        %v1254 = vunpack.c.l.b16 %v1187
        %v1255 = vunpack.c.l.b16 %v1188
        %v1256 = vunpack.c.l.b16 %v1189
        %v1257 = vunpack.c.l.b16 %v1190
        %v1258 = vunpack.c.l.b16 %v1191
        %v1259 = vunpack.c.l.b16 %v1192
        %v1260 = vunpack.c.l.b16 %v1193
        %v1261 = vunpack.c.l.b16 %v1194
        %v1262 = vunpack.c.l.b16 %v1195
        %v1263 = vunpack.c.l.b16 %v1196
        %v1264 = vunpack.c.l.b16 %v1197
        %v1265 = vunpack.c.l.b16 %v1198
        %v1266 = vunpack.c.l.b16 %v1199
        %v1267 = vunpack.c.l.b16 %v1200
        %v1268 = vunpack.c.l.b16 %v1201
        %v1269 = vpack.c.b16 %v1245, %v1244
        %v1270 = vpack.c.b16 %v1247, %v1246
        %v1271 = vpack.c.b16 %v1249, %v1248
        %v1272 = vpack.c.b16 %v1251, %v1250
        %v1273 = vpack.c.b16 %v1253, %v1252
        %v1274 = vpack.c.b16 %v1255, %v1254
        %v1275 = vpack.c.b16 %v1257, %v1256
        %v1276 = vpack.c.b16 %v1259, %v1258
        %v1277 = vpack.c.b16 %v1261, %v1260
        %v1278 = vpack.c.b16 %v1263, %v1262
        %v1279 = vpack.c.b16 %v1265, %v1264
        %v1280 = vpack.c.b16 %v1267, %v1266
        %v1281 = vpack.c.b16 %v1268, %v1268
        %vm1282 = vsmask.f32 7424
        %v1284 = vshrl.u32 %v1269, 16
        %v1286 = vshll.u32 %v1269, 16
        %v1288 = vrot.slane %v1286, 1
        %v1289 = vor.u32 %v1284, %v1288
        %v1291 = vshll.u32 %v1270, 16
        %v1293 = vrot.slane %v1291, 1
        %v1294 = vsel %vm1282, %v1289, %v1293
        %v1295 = vshrl.u32 %v1270, 16
        %v1297 = vor.u32 %v1295, %v1293
        %v1299 = vshll.u32 %v1271, 16
        %v1301 = vrot.slane %v1299, 1
        %v1302 = vsel %vm1282, %v1297, %v1301
        %v1303 = vshrl.u32 %v1271, 16
        %v1305 = vor.u32 %v1303, %v1301
        %v1307 = vshll.u32 %v1272, 16
        %v1309 = vrot.slane %v1307, 1
        %v1310 = vsel %vm1282, %v1305, %v1309
        %v1311 = vshrl.u32 %v1272, 16
        %v1313 = vor.u32 %v1311, %v1309
        %v1315 = vshll.u32 %v1273, 16
        %v1317 = vrot.slane %v1315, 1
        %v1318 = vsel %vm1282, %v1313, %v1317
        %v1319 = vshrl.u32 %v1273, 16
        %v1321 = vor.u32 %v1319, %v1317
        %v1323 = vshll.u32 %v1274, 16
        %v1325 = vrot.slane %v1323, 1
        %v1326 = vsel %vm1282, %v1321, %v1325
        %v1327 = vshrl.u32 %v1274, 16
        %v1329 = vor.u32 %v1327, %v1325
        %v1331 = vshll.u32 %v1275, 16
        %v1333 = vrot.slane %v1331, 1
        %v1334 = vsel %vm1282, %v1329, %v1333
        %v1335 = vshrl.u32 %v1275, 16
        %v1337 = vor.u32 %v1335, %v1333
        %v1339 = vshll.u32 %v1276, 16
        %v1341 = vrot.slane %v1339, 1
        %v1342 = vsel %vm1282, %v1337, %v1341
        %v1343 = vshrl.u32 %v1276, 16
        %v1345 = vor.u32 %v1343, %v1341
        %v1347 = vshll.u32 %v1277, 16
        %v1349 = vrot.slane %v1347, 1
        %v1350 = vsel %vm1282, %v1345, %v1349
        %v1351 = vshrl.u32 %v1277, 16
        %v1353 = vor.u32 %v1351, %v1349
        %v1355 = vshll.u32 %v1278, 16
        %v1357 = vrot.slane %v1355, 1
        %v1358 = vsel %vm1282, %v1353, %v1357
        %v1359 = vshrl.u32 %v1278, 16
        %v1361 = vor.u32 %v1359, %v1357
        %v1363 = vshll.u32 %v1279, 16
        %v1365 = vrot.slane %v1363, 1
        %v1366 = vsel %vm1282, %v1361, %v1365
        %v1367 = vshrl.u32 %v1279, 16
        %v1369 = vor.u32 %v1367, %v1365
        %v1371 = vshll.u32 %v1280, 16
        %v1373 = vrot.slane %v1371, 1
        %v1374 = vsel %vm1282, %v1369, %v1373
        %v1375 = vshrl.u32 %v1280, 16
        %v1377 = vor.u32 %v1375, %v1373
        %v1379 = vshll.u32 %v1281, 16
        %v1381 = vrot.slane %v1379, 1
        %v1382 = vsel %vm1282, %v1377, %v1381
        %v1411 = vunpack.c.l.b16 %v1203
        %v1412 = vunpack.c.l.b16 %v1204
        %v1413 = vunpack.c.l.b16 %v1205
        %v1414 = vunpack.c.l.b16 %v1206
        %v1415 = vunpack.c.l.b16 %v1207
        %v1416 = vunpack.c.l.b16 %v1208
        %v1417 = vunpack.c.l.b16 %v1209
        %v1418 = vunpack.c.l.b16 %v1210
        %v1419 = vunpack.c.l.b16 %v1211
        %v1420 = vunpack.c.l.b16 %v1212
        %v1421 = vunpack.c.l.b16 %v1213
        %v1422 = vunpack.c.l.b16 %v1214
        %v1423 = vunpack.c.l.b16 %v1215
        %v1424 = vunpack.c.l.b16 %v1216
        %v1425 = vunpack.c.l.b16 %v1217
        %v1426 = vunpack.c.l.b16 %v1218
        %v1427 = vpack.c.b16 %v1412, %v1411
        %v1428 = vpack.c.b16 %v1414, %v1413
        %v1429 = vpack.c.b16 %v1416, %v1415
        %v1430 = vpack.c.b16 %v1418, %v1417
        %v1431 = vpack.c.b16 %v1420, %v1419
        %v1432 = vpack.c.b16 %v1422, %v1421
        %v1433 = vpack.c.b16 %v1424, %v1423
        %v1434 = vpack.c.b16 %v1426, %v1425
        %1443 = vmatpush.bf16.msra.mxu0 %v1434
        %1444 = vmatpush.bf16.msra.mxu0 %v1433
        %1445 = vmatpush.bf16.msra.mxu0 %v1432
        %1446 = vmatpush.bf16.msra.mxu0 %v1431
        %1447 = vmatpush.bf16.msra.mxu0 %v1430
        %1448 = vmatpush.bf16.msra.mxu0 %v1429
        %1449 = vmatpush.bf16.msra.mxu0 %v1428
        %1450 = vmatpush.bf16.msra.mxu0 %v1427
        %1451 = vmatmul.bf16.gmra.mxu0 %v1294
        %v1452 = vpop.f32.mrf.mxu0
        %v1453 = vadd.f32 0.0, %v1452
        %v1454 = vpop.f32.mrf.mxu0
        %v1455 = vadd.f32 0.0, %v1454
        %1456 = vmatmul.bf16.gmra.mxu0 %v1302
        %v1457 = vpop.f32.mrf.mxu0
        %v1458 = vpop.f32.mrf.mxu0
        %v1459 = vadd.f32 0.0, %v1458
        %1460 = vmatmul.bf16.gmra.mxu0 %v1310
        %v1461 = vpop.f32.mrf.mxu0
        %v1462 = vadd.f32 0.0, %v1461
        %v1463 = vpop.f32.mrf.mxu0
        %1464 = vmatmul.bf16.gmra.mxu0 %v1318
        %v1465 = vpop.f32.mrf.mxu0
        %v1466 = vadd.f32 0.0, %v1465
        %v1467 = vpop.f32.mrf.mxu0
        %v1468 = vadd.f32 0.0, %v1467
        %1469 = vmatmul.bf16.gmra.mxu0 %v1326
        %v1470 = vpop.f32.mrf.mxu0
        %v1471 = vpop.f32.mrf.mxu0
        %v1472 = vadd.f32 0.0, %v1471
        %1473 = vmatmul.bf16.gmra.mxu0 %v1334
        %v1474 = vpop.f32.mrf.mxu0
        %v1475 = vadd.f32 0.0, %v1474
        %v1476 = vpop.f32.mrf.mxu0
        %1477 = vmatmul.bf16.gmra.mxu0 %v1342
        %v1478 = vpop.f32.mrf.mxu0
        %v1479 = vadd.f32 0.0, %v1478
        %v1480 = vpop.f32.mrf.mxu0
        %v1481 = vadd.f32 0.0, %v1480
        %1482 = vmatmul.bf16.gmra.mxu0 %v1350
        %v1483 = vpop.f32.mrf.mxu0
        %v1484 = vpop.f32.mrf.mxu0
        %v1485 = vadd.f32 0.0, %v1484
        %1486 = vmatmul.bf16.gmra.mxu0 %v1358
        %v1487 = vpop.f32.mrf.mxu0
        %v1488 = vadd.f32 0.0, %v1487
        %v1489 = vpop.f32.mrf.mxu0
        %1490 = vmatmul.bf16.gmra.mxu0 %v1366
        %v1491 = vpop.f32.mrf.mxu0
        %v1492 = vadd.f32 0.0, %v1491
        %v1493 = vpop.f32.mrf.mxu0
        %v1494 = vadd.f32 0.0, %v1493
        %1495 = vmatmul.bf16.gmra.mxu0 %v1374
        %v1496 = vpop.f32.mrf.mxu0
        %v1497 = vpop.f32.mrf.mxu0
        %v1498 = vadd.f32 0.0, %v1497
        %1499 = vmatmul.bf16.gmra.mxu0 %v1382
        %v1500 = vpop.f32.mrf.mxu0
        %v1501 = vadd.f32 0.0, %v1500
        %v1502 = vpop.f32.mrf.mxu0
        %1503 = vdwg.mxu0
        %v1504 = vadd.f32 %v1126, %v1453
        %v1505 = vadd.f32 %v1128, %v1455
        %v1506 = vadd.f32 %v1132, %v1459
        %v1507 = vadd.f32 %v1135, %v1462
        %v1508 = vadd.f32 %v1139, %v1466
        %v1509 = vadd.f32 %v1141, %v1468
        %v1510 = vadd.f32 %v1145, %v1472
        %v1511 = vadd.f32 %v1148, %v1475
        %v1512 = vadd.f32 %v1152, %v1479
        %v1513 = vadd.f32 %v1154, %v1481
        %v1514 = vadd.f32 %v1158, %v1485
        %v1515 = vadd.f32 %v1161, %v1488
        %v1516 = vadd.f32 %v1165, %v1492
        %v1517 = vadd.f32 %v1167, %v1494
        %v1518 = vadd.f32 %v1171, %v1498
        %v1519 = vadd.f32 %v1174, %v1501
        %v1520 = vld [vmem:[#allocation2] sm:$0xe]
        %s1521 = scalar_lea.vmem [#allocation8], 128
        %v1522 = vld [vmem:[%s1521] sm:$0xf]
        %v1523 = vld [vmem:[%s1521 + $0x4] sm:$0xf]
        %v1524 = vld [vmem:[%s1521 + $0x8] sm:$0xf]
        %v1525 = vld [vmem:[%s1521 + $0xc] sm:$0xf]
        %v1526 = vld [vmem:[%s1521 + $0x10] sm:$0xf]
        %v1527 = vld [vmem:[%s1521 + $0x14] sm:$0xf]
        %v1528 = vld [vmem:[%s1521 + $0x18] sm:$0xf]
        %v1529 = vld [vmem:[%s1521 + $0x1c] sm:$0xf]
        %v1530 = vld [vmem:[%s1521 + $0x20] sm:$0xf]
        %v1531 = vld [vmem:[%s1521 + $0x24] sm:$0xf]
        %v1532 = vld [vmem:[%s1521 + $0x28] sm:$0xf]
        %v1533 = vld [vmem:[%s1521 + $0x2c] sm:$0xf]
        %v1534 = vld [vmem:[%s1521 + $0x30] sm:$0xf]
        %v1535 = vld [vmem:[%s1521 + $0x34] sm:$0xf]
        %v1536 = vld [vmem:[%s1521 + $0x38] sm:$0xf]
        %v1537 = vld [vmem:[%s1521 + $0x3c] sm:$0xf]
        %v1539 = vunpack.c.l.b16 %v1520
        %v1540 = vpack.c.b16 %v1245, %v1539
        %vm1541 = vcmask 1046528
        %v1542 = vrot.slane %v1540, 1
        %v1543 = vrot.slane %v1270, 1
        %v1544 = vsel %vm1541, %v1542, %v1543
        %v1545 = vrot.slane %v1271, 1
        %v1546 = vsel %vm1541, %v1543, %v1545
        %v1547 = vrot.slane %v1272, 1
        %v1548 = vsel %vm1541, %v1545, %v1547
        %v1549 = vrot.slane %v1273, 1
        %v1550 = vsel %vm1541, %v1547, %v1549
        %v1551 = vrot.slane %v1274, 1
        %v1552 = vsel %vm1541, %v1549, %v1551
        %v1553 = vrot.slane %v1275, 1
        %v1554 = vsel %vm1541, %v1551, %v1553
        %v1555 = vrot.slane %v1276, 1
        %v1556 = vsel %vm1541, %v1553, %v1555
        %v1557 = vrot.slane %v1277, 1
        %v1558 = vsel %vm1541, %v1555, %v1557
        %v1559 = vrot.slane %v1278, 1
        %v1560 = vsel %vm1541, %v1557, %v1559
        %v1561 = vrot.slane %v1279, 1
        %v1562 = vsel %vm1541, %v1559, %v1561
        %v1563 = vrot.slane %v1280, 1
        %v1564 = vsel %vm1541, %v1561, %v1563
        %v1565 = vrot.slane %v1281, 1
        %v1566 = vsel %vm1541, %v1563, %v1565
        %v1595 = vunpack.c.l.b16 %v1522
        %v1596 = vunpack.c.l.b16 %v1523
        %v1597 = vunpack.c.l.b16 %v1524
        %v1598 = vunpack.c.l.b16 %v1525
        %v1599 = vunpack.c.l.b16 %v1526
        %v1600 = vunpack.c.l.b16 %v1527
        %v1601 = vunpack.c.l.b16 %v1528
        %v1602 = vunpack.c.l.b16 %v1529
        %v1603 = vunpack.c.l.b16 %v1530
        %v1604 = vunpack.c.l.b16 %v1531
        %v1605 = vunpack.c.l.b16 %v1532
        %v1606 = vunpack.c.l.b16 %v1533
        %v1607 = vunpack.c.l.b16 %v1534
        %v1608 = vunpack.c.l.b16 %v1535
        %v1609 = vunpack.c.l.b16 %v1536
        %v1610 = vunpack.c.l.b16 %v1537
        %v1611 = vpack.c.b16 %v1596, %v1595
        %v1612 = vpack.c.b16 %v1598, %v1597
        %v1613 = vpack.c.b16 %v1600, %v1599
        %v1614 = vpack.c.b16 %v1602, %v1601
        %v1615 = vpack.c.b16 %v1604, %v1603
        %v1616 = vpack.c.b16 %v1606, %v1605
        %v1617 = vpack.c.b16 %v1608, %v1607
        %v1618 = vpack.c.b16 %v1610, %v1609
        %1627 = vmatpush.bf16.msra.mxu0 %v1618
        %1628 = vmatpush.bf16.msra.mxu0 %v1617
        %1629 = vmatpush.bf16.msra.mxu0 %v1616
        %1630 = vmatpush.bf16.msra.mxu0 %v1615
        %1631 = vmatpush.bf16.msra.mxu0 %v1614
        %1632 = vmatpush.bf16.msra.mxu0 %v1613
        %1633 = vmatpush.bf16.msra.mxu0 %v1612
        %1634 = vmatpush.bf16.msra.mxu0 %v1611
        %1635 = vmatmul.bf16.gmra.mxu0 %v1544
        %v1636 = vpop.f32.mrf.mxu0
        %v1637 = vadd.f32 0.0, %v1636
        %v1638 = vpop.f32.mrf.mxu0
        %v1639 = vadd.f32 0.0, %v1638
        %1640 = vmatmul.bf16.gmra.mxu0 %v1546
        %v1641 = vpop.f32.mrf.mxu0
        %v1642 = vpop.f32.mrf.mxu0
        %v1643 = vadd.f32 0.0, %v1642
        %1644 = vmatmul.bf16.gmra.mxu0 %v1548
        %v1645 = vpop.f32.mrf.mxu0
        %v1646 = vadd.f32 0.0, %v1645
        %v1647 = vpop.f32.mrf.mxu0
        %1648 = vmatmul.bf16.gmra.mxu0 %v1550
        %v1649 = vpop.f32.mrf.mxu0
        %v1650 = vadd.f32 0.0, %v1649
        %v1651 = vpop.f32.mrf.mxu0
        %v1652 = vadd.f32 0.0, %v1651
        %1653 = vmatmul.bf16.gmra.mxu0 %v1552
        %v1654 = vpop.f32.mrf.mxu0
        %v1655 = vpop.f32.mrf.mxu0
        %v1656 = vadd.f32 0.0, %v1655
        %1657 = vmatmul.bf16.gmra.mxu0 %v1554
        %v1658 = vpop.f32.mrf.mxu0
        %v1659 = vadd.f32 0.0, %v1658
        %v1660 = vpop.f32.mrf.mxu0
        %1661 = vmatmul.bf16.gmra.mxu0 %v1556
        %v1662 = vpop.f32.mrf.mxu0
        %v1663 = vadd.f32 0.0, %v1662
        %v1664 = vpop.f32.mrf.mxu0
        %v1665 = vadd.f32 0.0, %v1664
        %1666 = vmatmul.bf16.gmra.mxu0 %v1558
        %v1667 = vpop.f32.mrf.mxu0
        %v1668 = vpop.f32.mrf.mxu0
        %v1669 = vadd.f32 0.0, %v1668
        %1670 = vmatmul.bf16.gmra.mxu0 %v1560
        %v1671 = vpop.f32.mrf.mxu0
        %v1672 = vadd.f32 0.0, %v1671
        %v1673 = vpop.f32.mrf.mxu0
        %1674 = vmatmul.bf16.gmra.mxu0 %v1562
        %v1675 = vpop.f32.mrf.mxu0
        %v1676 = vadd.f32 0.0, %v1675
        %v1677 = vpop.f32.mrf.mxu0
        %v1678 = vadd.f32 0.0, %v1677
        %1679 = vmatmul.bf16.gmra.mxu0 %v1564
        %v1680 = vpop.f32.mrf.mxu0
        %v1681 = vpop.f32.mrf.mxu0
        %v1682 = vadd.f32 0.0, %v1681
        %1683 = vmatmul.bf16.gmra.mxu0 %v1566
        %v1684 = vpop.f32.mrf.mxu0
        %v1685 = vadd.f32 0.0, %v1684
        %v1686 = vpop.f32.mrf.mxu0
        %1687 = vdwg.mxu0
        %v1688 = vadd.f32 %v1504, %v1637
        %v1689 = vadd.f32 %v1505, %v1639
        %v1690 = vadd.f32 %v1506, %v1643
        %v1691 = vadd.f32 %v1507, %v1646
        %v1692 = vadd.f32 %v1508, %v1650
        %v1693 = vadd.f32 %v1509, %v1652
        %v1694 = vadd.f32 %v1510, %v1656
        %v1695 = vadd.f32 %v1511, %v1659
        %v1696 = vadd.f32 %v1512, %v1663
        %v1697 = vadd.f32 %v1513, %v1665
        %v1698 = vadd.f32 %v1514, %v1669
        %v1699 = vadd.f32 %v1515, %v1672
        %v1700 = vadd.f32 %v1516, %v1676
        %v1701 = vadd.f32 %v1517, %v1678
        %v1702 = vadd.f32 %v1518, %v1682
        %v1703 = vadd.f32 %v1519, %v1685
        %v1704 = vld [vmem:[#allocation2 + $0xc] sm:$0xf]
        %v1705 = vld [vmem:[#allocation2 + $0x10] sm:$0xf]
        %v1706 = vld [vmem:[#allocation2 + $0x14] sm:$0xf]
        %v1707 = vld [vmem:[#allocation2 + $0x18] sm:$0xf]
        %v1708 = vld [vmem:[#allocation2 + $0x1c] sm:$0xf]
        %v1709 = vld [vmem:[#allocation2 + $0x20] sm:$0xf]
        %v1710 = vld [vmem:[#allocation2 + $0x24] sm:$0xf]
        %v1711 = vld [vmem:[#allocation2 + $0x28] sm:$0xf]
        %v1712 = vld [vmem:[#allocation2 + $0x2c] sm:$0xf]
        %v1713 = vld [vmem:[#allocation2 + $0x30] sm:$0xf]
        %v1714 = vld [vmem:[#allocation2 + $0x34] sm:$0xf]
        %v1715 = vld [vmem:[#allocation2 + $0x38] sm:$0xf]
        %v1716 = vld [vmem:[#allocation2 + $0x3c] sm:$0xf]
        %v1717 = vld [vmem:[#allocation2 + $0x40] sm:$0xf]
        %v1718 = vld [vmem:[#allocation2 + $0x44] sm:$0xf]
        %v1719 = vld [vmem:[#allocation2 + $0x48] sm:$0xf]
        %v1720 = vld [vmem:[#allocation2 + $0x4c] sm:$0xf]
        %v1721 = vld [vmem:[#allocation2 + $0x50] sm:$0xf]
        %v1722 = vld [vmem:[#allocation2 + $0x54] sm:$0xf]
        %v1723 = vld [vmem:[#allocation2 + $0x58] sm:$0xf]
        %v1724 = vld [vmem:[#allocation2 + $0x5c] sm:$0xf]
        %v1725 = vld [vmem:[#allocation2 + $0x60] sm:$0xf]
        %v1726 = vld [vmem:[#allocation2 + $0x64] sm:$0xf]
        %v1727 = vld [vmem:[#allocation2 + $0x68] sm:$0xf]
        %s1728 = scalar_lea.vmem [#allocation8], 192
        %v1729 = vld [vmem:[%s1728] sm:$0xf]
        %v1730 = vld [vmem:[%s1728 + $0x4] sm:$0xf]
        %v1731 = vld [vmem:[%s1728 + $0x8] sm:$0xf]
        %v1732 = vld [vmem:[%s1728 + $0xc] sm:$0xf]
        %v1733 = vld [vmem:[%s1728 + $0x10] sm:$0xf]
        %v1734 = vld [vmem:[%s1728 + $0x14] sm:$0xf]
        %v1735 = vld [vmem:[%s1728 + $0x18] sm:$0xf]
        %v1736 = vld [vmem:[%s1728 + $0x1c] sm:$0xf]
        %v1737 = vld [vmem:[%s1728 + $0x20] sm:$0xf]
        %v1738 = vld [vmem:[%s1728 + $0x24] sm:$0xf]
        %v1739 = vld [vmem:[%s1728 + $0x28] sm:$0xf]
        %v1740 = vld [vmem:[%s1728 + $0x2c] sm:$0xf]
        %v1741 = vld [vmem:[%s1728 + $0x30] sm:$0xf]
        %v1742 = vld [vmem:[%s1728 + $0x34] sm:$0xf]
        %v1743 = vld [vmem:[%s1728 + $0x38] sm:$0xf]
        %v1744 = vld [vmem:[%s1728 + $0x3c] sm:$0xf]
        %v1769 = vunpack.c.l.b16 %v1704
        %v1770 = vunpack.c.l.b16 %v1705
        %v1771 = vunpack.c.l.b16 %v1706
        %v1772 = vunpack.c.l.b16 %v1707
        %v1773 = vunpack.c.l.b16 %v1708
        %v1774 = vunpack.c.l.b16 %v1709
        %v1775 = vunpack.c.l.b16 %v1710
        %v1776 = vunpack.c.l.b16 %v1711
        %v1777 = vunpack.c.l.b16 %v1712
        %v1778 = vunpack.c.l.b16 %v1713
        %v1779 = vunpack.c.l.b16 %v1714
        %v1780 = vunpack.c.l.b16 %v1715
        %v1781 = vunpack.c.l.b16 %v1716
        %v1782 = vunpack.c.l.b16 %v1717
        %v1783 = vunpack.c.l.b16 %v1718
        %v1784 = vunpack.c.l.b16 %v1719
        %v1785 = vunpack.c.l.b16 %v1720
        %v1786 = vunpack.c.l.b16 %v1721
        %v1787 = vunpack.c.l.b16 %v1722
        %v1788 = vunpack.c.l.b16 %v1723
        %v1789 = vunpack.c.l.b16 %v1724
        %v1790 = vunpack.c.l.b16 %v1725
        %v1791 = vunpack.c.l.b16 %v1726
        %v1792 = vunpack.c.l.b16 %v1727
        %v1793 = vpack.c.b16 %v1770, %v1769
        %v1794 = vpack.c.b16 %v1772, %v1771
        %v1795 = vpack.c.b16 %v1774, %v1773
        %v1796 = vpack.c.b16 %v1776, %v1775
        %v1797 = vpack.c.b16 %v1778, %v1777
        %v1798 = vpack.c.b16 %v1780, %v1779
        %v1799 = vpack.c.b16 %v1782, %v1781
        %v1800 = vpack.c.b16 %v1784, %v1783
        %v1801 = vpack.c.b16 %v1786, %v1785
        %v1802 = vpack.c.b16 %v1788, %v1787
        %v1803 = vpack.c.b16 %v1790, %v1789
        %v1804 = vpack.c.b16 %v1792, %v1791
        %v1833 = vunpack.c.l.b16 %v1729
        %v1834 = vunpack.c.l.b16 %v1730
        %v1835 = vunpack.c.l.b16 %v1731
        %v1836 = vunpack.c.l.b16 %v1732
        %v1837 = vunpack.c.l.b16 %v1733
        %v1838 = vunpack.c.l.b16 %v1734
        %v1839 = vunpack.c.l.b16 %v1735
        %v1840 = vunpack.c.l.b16 %v1736
        %v1841 = vunpack.c.l.b16 %v1737
        %v1842 = vunpack.c.l.b16 %v1738
        %v1843 = vunpack.c.l.b16 %v1739
        %v1844 = vunpack.c.l.b16 %v1740
        %v1845 = vunpack.c.l.b16 %v1741
        %v1846 = vunpack.c.l.b16 %v1742
        %v1847 = vunpack.c.l.b16 %v1743
        %v1848 = vunpack.c.l.b16 %v1744
        %v1849 = vpack.c.b16 %v1834, %v1833
        %v1850 = vpack.c.b16 %v1836, %v1835
        %v1851 = vpack.c.b16 %v1838, %v1837
        %v1852 = vpack.c.b16 %v1840, %v1839
        %v1853 = vpack.c.b16 %v1842, %v1841
        %v1854 = vpack.c.b16 %v1844, %v1843
        %v1855 = vpack.c.b16 %v1846, %v1845
        %v1856 = vpack.c.b16 %v1848, %v1847
        %1865 = vmatpush.bf16.msra.mxu0 %v1856
        %1866 = vmatpush.bf16.msra.mxu0 %v1855
        %1867 = vmatpush.bf16.msra.mxu0 %v1854
        %1868 = vmatpush.bf16.msra.mxu0 %v1853
        %1869 = vmatpush.bf16.msra.mxu0 %v1852
        %1870 = vmatpush.bf16.msra.mxu0 %v1851
        %1871 = vmatpush.bf16.msra.mxu0 %v1850
        %1872 = vmatpush.bf16.msra.mxu0 %v1849
        %1873 = vmatmul.bf16.gmra.mxu0 %v1793
        %v1874 = vpop.f32.mrf.mxu0
        %v1875 = vadd.f32 0.0, %v1874
        %v1876 = vpop.f32.mrf.mxu0
        %v1877 = vadd.f32 0.0, %v1876
        %1878 = vmatmul.bf16.gmra.mxu0 %v1794
        %v1879 = vpop.f32.mrf.mxu0
        %v1880 = vpop.f32.mrf.mxu0
        %v1881 = vadd.f32 0.0, %v1880
        %1882 = vmatmul.bf16.gmra.mxu0 %v1795
        %v1883 = vpop.f32.mrf.mxu0
        %v1884 = vadd.f32 0.0, %v1883
        %v1885 = vpop.f32.mrf.mxu0
        %1886 = vmatmul.bf16.gmra.mxu0 %v1796
        %v1887 = vpop.f32.mrf.mxu0
        %v1888 = vadd.f32 0.0, %v1887
        %v1889 = vpop.f32.mrf.mxu0
        %v1890 = vadd.f32 0.0, %v1889
        %1891 = vmatmul.bf16.gmra.mxu0 %v1797
        %v1892 = vpop.f32.mrf.mxu0
        %v1893 = vpop.f32.mrf.mxu0
        %v1894 = vadd.f32 0.0, %v1893
        %1895 = vmatmul.bf16.gmra.mxu0 %v1798
        %v1896 = vpop.f32.mrf.mxu0
        %v1897 = vadd.f32 0.0, %v1896
        %v1898 = vpop.f32.mrf.mxu0
        %1899 = vmatmul.bf16.gmra.mxu0 %v1799
        %v1900 = vpop.f32.mrf.mxu0
        %v1901 = vadd.f32 0.0, %v1900
        %v1902 = vpop.f32.mrf.mxu0
        %v1903 = vadd.f32 0.0, %v1902
        %1904 = vmatmul.bf16.gmra.mxu0 %v1800
        %v1905 = vpop.f32.mrf.mxu0
        %v1906 = vpop.f32.mrf.mxu0
        %v1907 = vadd.f32 0.0, %v1906
        %1908 = vmatmul.bf16.gmra.mxu0 %v1801
        %v1909 = vpop.f32.mrf.mxu0
        %v1910 = vadd.f32 0.0, %v1909
        %v1911 = vpop.f32.mrf.mxu0
        %1912 = vmatmul.bf16.gmra.mxu0 %v1802
        %v1913 = vpop.f32.mrf.mxu0
        %v1914 = vadd.f32 0.0, %v1913
        %v1915 = vpop.f32.mrf.mxu0
        %v1916 = vadd.f32 0.0, %v1915
        %1917 = vmatmul.bf16.gmra.mxu0 %v1803
        %v1918 = vpop.f32.mrf.mxu0
        %v1919 = vpop.f32.mrf.mxu0
        %v1920 = vadd.f32 0.0, %v1919
        %1921 = vmatmul.bf16.gmra.mxu0 %v1804
        %v1922 = vpop.f32.mrf.mxu0
        %v1923 = vadd.f32 0.0, %v1922
        %v1924 = vpop.f32.mrf.mxu0
        %1925 = vdwg.mxu0
        %v1926 = vadd.f32 %v1688, %v1875
        %v1927 = vadd.f32 %v1689, %v1877
        %v1928 = vadd.f32 %v1690, %v1881
        %v1929 = vadd.f32 %v1691, %v1884
        %v1930 = vadd.f32 %v1692, %v1888
        %v1931 = vadd.f32 %v1693, %v1890
        %v1932 = vadd.f32 %v1694, %v1894
        %v1933 = vadd.f32 %v1695, %v1897
        %v1934 = vadd.f32 %v1696, %v1901
        %v1935 = vadd.f32 %v1697, %v1903
        %v1936 = vadd.f32 %v1698, %v1907
        %v1937 = vadd.f32 %v1699, %v1910
        %v1938 = vadd.f32 %v1700, %v1914
        %v1939 = vadd.f32 %v1701, %v1916
        %v1940 = vadd.f32 %v1702, %v1920
        %v1941 = vadd.f32 %v1703, %v1923
        %v1942 = vld [vmem:[#allocation2 + $0xc] sm:$0xf]
        %v1943 = vld [vmem:[#allocation2 + $0x10] sm:$0xf]
        %v1944 = vld [vmem:[#allocation2 + $0x14] sm:$0xf]
        %v1945 = vld [vmem:[#allocation2 + $0x18] sm:$0xf]
        %v1946 = vld [vmem:[#allocation2 + $0x1c] sm:$0xf]
        %v1947 = vld [vmem:[#allocation2 + $0x20] sm:$0xf]
        %v1948 = vld [vmem:[#allocation2 + $0x24] sm:$0xf]
        %v1949 = vld [vmem:[#allocation2 + $0x28] sm:$0xf]
        %v1950 = vld [vmem:[#allocation2 + $0x2c] sm:$0xf]
        %v1951 = vld [vmem:[#allocation2 + $0x30] sm:$0xf]
        %v1952 = vld [vmem:[#allocation2 + $0x34] sm:$0xf]
        %v1953 = vld [vmem:[#allocation2 + $0x38] sm:$0xf]
        %v1954 = vld [vmem:[#allocation2 + $0x3c] sm:$0xf]
        %v1955 = vld [vmem:[#allocation2 + $0x40] sm:$0xf]
        %v1956 = vld [vmem:[#allocation2 + $0x44] sm:$0xf]
        %v1957 = vld [vmem:[#allocation2 + $0x48] sm:$0xf]
        %v1958 = vld [vmem:[#allocation2 + $0x4c] sm:$0xf]
        %v1959 = vld [vmem:[#allocation2 + $0x50] sm:$0xf]
        %v1960 = vld [vmem:[#allocation2 + $0x54] sm:$0xf]
        %v1961 = vld [vmem:[#allocation2 + $0x58] sm:$0xf]
        %v1962 = vld [vmem:[#allocation2 + $0x5c] sm:$0xf]
        %v1963 = vld [vmem:[#allocation2 + $0x60] sm:$0xf]
        %v1964 = vld [vmem:[#allocation2 + $0x64] sm:$0xf]
        %v1965 = vld [vmem:[#allocation2 + $0x68] sm:$0xf]
        %v1966 = vld [vmem:[#allocation2 + $0x6c] sm:$0x1]
        %s1967 = scalar_lea.vmem [#allocation8], 256
        %v1968 = vld [vmem:[%s1967] sm:$0xf]
        %v1969 = vld [vmem:[%s1967 + $0x4] sm:$0xf]
        %v1970 = vld [vmem:[%s1967 + $0x8] sm:$0xf]
        %v1971 = vld [vmem:[%s1967 + $0xc] sm:$0xf]
        %v1972 = vld [vmem:[%s1967 + $0x10] sm:$0xf]
        %v1973 = vld [vmem:[%s1967 + $0x14] sm:$0xf]
        %v1974 = vld [vmem:[%s1967 + $0x18] sm:$0xf]
        %v1975 = vld [vmem:[%s1967 + $0x1c] sm:$0xf]
        %v1976 = vld [vmem:[%s1967 + $0x20] sm:$0xf]
        %v1977 = vld [vmem:[%s1967 + $0x24] sm:$0xf]
        %v1978 = vld [vmem:[%s1967 + $0x28] sm:$0xf]
        %v1979 = vld [vmem:[%s1967 + $0x2c] sm:$0xf]
        %v1980 = vld [vmem:[%s1967 + $0x30] sm:$0xf]
        %v1981 = vld [vmem:[%s1967 + $0x34] sm:$0xf]
        %v1982 = vld [vmem:[%s1967 + $0x38] sm:$0xf]
        %v1983 = vld [vmem:[%s1967 + $0x3c] sm:$0xf]
        %v2009 = vunpack.c.l.b16 %v1942
        %v2010 = vunpack.c.l.b16 %v1943
        %v2011 = vunpack.c.l.b16 %v1944
        %v2012 = vunpack.c.l.b16 %v1945
        %v2013 = vunpack.c.l.b16 %v1946
        %v2014 = vunpack.c.l.b16 %v1947
        %v2015 = vunpack.c.l.b16 %v1948
        %v2016 = vunpack.c.l.b16 %v1949
        %v2017 = vunpack.c.l.b16 %v1950
        %v2018 = vunpack.c.l.b16 %v1951
        %v2019 = vunpack.c.l.b16 %v1952
        %v2020 = vunpack.c.l.b16 %v1953
        %v2021 = vunpack.c.l.b16 %v1954
        %v2022 = vunpack.c.l.b16 %v1955
        %v2023 = vunpack.c.l.b16 %v1956
        %v2024 = vunpack.c.l.b16 %v1957
        %v2025 = vunpack.c.l.b16 %v1958
        %v2026 = vunpack.c.l.b16 %v1959
        %v2027 = vunpack.c.l.b16 %v1960
        %v2028 = vunpack.c.l.b16 %v1961
        %v2029 = vunpack.c.l.b16 %v1962
        %v2030 = vunpack.c.l.b16 %v1963
        %v2031 = vunpack.c.l.b16 %v1964
        %v2032 = vunpack.c.l.b16 %v1965
        %v2033 = vunpack.c.l.b16 %v1966
        %v2034 = vpack.c.b16 %v2010, %v2009
        %v2035 = vpack.c.b16 %v2012, %v2011
        %v2036 = vpack.c.b16 %v2014, %v2013
        %v2037 = vpack.c.b16 %v2016, %v2015
        %v2038 = vpack.c.b16 %v2018, %v2017
        %v2039 = vpack.c.b16 %v2020, %v2019
        %v2040 = vpack.c.b16 %v2022, %v2021
        %v2041 = vpack.c.b16 %v2024, %v2023
        %v2042 = vpack.c.b16 %v2026, %v2025
        %v2043 = vpack.c.b16 %v2028, %v2027
        %v2044 = vpack.c.b16 %v2030, %v2029
        %v2045 = vpack.c.b16 %v2032, %v2031
        %v2046 = vpack.c.b16 %v2033, %v2033
        %v2048 = vshrl.u32 %v2034, 16
        %v2050 = vshll.u32 %v2034, 16
        %v2052 = vrot.slane %v2050, 1
        %v2053 = vor.u32 %v2048, %v2052
        %v2055 = vshll.u32 %v2035, 16
        %v2057 = vrot.slane %v2055, 1
        %v2058 = vsel %vm1282, %v2053, %v2057
        %v2059 = vshrl.u32 %v2035, 16
        %v2061 = vor.u32 %v2059, %v2057
        %v2063 = vshll.u32 %v2036, 16
        %v2065 = vrot.slane %v2063, 1
        %v2066 = vsel %vm1282, %v2061, %v2065
        %v2067 = vshrl.u32 %v2036, 16
        %v2069 = vor.u32 %v2067, %v2065
        %v2071 = vshll.u32 %v2037, 16
        %v2073 = vrot.slane %v2071, 1
        %v2074 = vsel %vm1282, %v2069, %v2073
        %v2075 = vshrl.u32 %v2037, 16
        %v2077 = vor.u32 %v2075, %v2073
        %v2079 = vshll.u32 %v2038, 16
        %v2081 = vrot.slane %v2079, 1
        %v2082 = vsel %vm1282, %v2077, %v2081
        %v2083 = vshrl.u32 %v2038, 16
        %v2085 = vor.u32 %v2083, %v2081
        %v2087 = vshll.u32 %v2039, 16
        %v2089 = vrot.slane %v2087, 1
        %v2090 = vsel %vm1282, %v2085, %v2089
        %v2091 = vshrl.u32 %v2039, 16
        %v2093 = vor.u32 %v2091, %v2089
        %v2095 = vshll.u32 %v2040, 16
        %v2097 = vrot.slane %v2095, 1
        %v2098 = vsel %vm1282, %v2093, %v2097
        %v2099 = vshrl.u32 %v2040, 16
        %v2101 = vor.u32 %v2099, %v2097
        %v2103 = vshll.u32 %v2041, 16
        %v2105 = vrot.slane %v2103, 1
        %v2106 = vsel %vm1282, %v2101, %v2105
        %v2107 = vshrl.u32 %v2041, 16
        %v2109 = vor.u32 %v2107, %v2105
        %v2111 = vshll.u32 %v2042, 16
        %v2113 = vrot.slane %v2111, 1
        %v2114 = vsel %vm1282, %v2109, %v2113
        %v2115 = vshrl.u32 %v2042, 16
        %v2117 = vor.u32 %v2115, %v2113
        %v2119 = vshll.u32 %v2043, 16
        %v2121 = vrot.slane %v2119, 1
        %v2122 = vsel %vm1282, %v2117, %v2121
        %v2123 = vshrl.u32 %v2043, 16
        %v2125 = vor.u32 %v2123, %v2121
        %v2127 = vshll.u32 %v2044, 16
        %v2129 = vrot.slane %v2127, 1
        %v2130 = vsel %vm1282, %v2125, %v2129
        %v2131 = vshrl.u32 %v2044, 16
        %v2133 = vor.u32 %v2131, %v2129
        %v2135 = vshll.u32 %v2045, 16
        %v2137 = vrot.slane %v2135, 1
        %v2138 = vsel %vm1282, %v2133, %v2137
        %v2139 = vshrl.u32 %v2045, 16
        %v2141 = vor.u32 %v2139, %v2137
        %v2143 = vshll.u32 %v2046, 16
        %v2145 = vrot.slane %v2143, 1
        %v2146 = vsel %vm1282, %v2141, %v2145
        %v2175 = vunpack.c.l.b16 %v1968
        %v2176 = vunpack.c.l.b16 %v1969
        %v2177 = vunpack.c.l.b16 %v1970
        %v2178 = vunpack.c.l.b16 %v1971
        %v2179 = vunpack.c.l.b16 %v1972
        %v2180 = vunpack.c.l.b16 %v1973
        %v2181 = vunpack.c.l.b16 %v1974
        %v2182 = vunpack.c.l.b16 %v1975
        %v2183 = vunpack.c.l.b16 %v1976
        %v2184 = vunpack.c.l.b16 %v1977
        %v2185 = vunpack.c.l.b16 %v1978
        %v2186 = vunpack.c.l.b16 %v1979
        %v2187 = vunpack.c.l.b16 %v1980
        %v2188 = vunpack.c.l.b16 %v1981
        %v2189 = vunpack.c.l.b16 %v1982
        %v2190 = vunpack.c.l.b16 %v1983
        %v2191 = vpack.c.b16 %v2176, %v2175
        %v2192 = vpack.c.b16 %v2178, %v2177
        %v2193 = vpack.c.b16 %v2180, %v2179
        %v2194 = vpack.c.b16 %v2182, %v2181
        %v2195 = vpack.c.b16 %v2184, %v2183
        %v2196 = vpack.c.b16 %v2186, %v2185
        %v2197 = vpack.c.b16 %v2188, %v2187
        %v2198 = vpack.c.b16 %v2190, %v2189
        %2207 = vmatpush.bf16.msra.mxu0 %v2198
        %2208 = vmatpush.bf16.msra.mxu0 %v2197
        %2209 = vmatpush.bf16.msra.mxu0 %v2196
        %2210 = vmatpush.bf16.msra.mxu0 %v2195
        %2211 = vmatpush.bf16.msra.mxu0 %v2194
        %2212 = vmatpush.bf16.msra.mxu0 %v2193
        %2213 = vmatpush.bf16.msra.mxu0 %v2192
        %2214 = vmatpush.bf16.msra.mxu0 %v2191
        %2215 = vmatmul.bf16.gmra.mxu0 %v2058
        %v2216 = vpop.f32.mrf.mxu0
        %v2217 = vadd.f32 0.0, %v2216
        %v2218 = vpop.f32.mrf.mxu0
        %v2219 = vadd.f32 0.0, %v2218
        %2220 = vmatmul.bf16.gmra.mxu0 %v2066
        %v2221 = vpop.f32.mrf.mxu0
        %v2222 = vpop.f32.mrf.mxu0
        %v2223 = vadd.f32 0.0, %v2222
        %2224 = vmatmul.bf16.gmra.mxu0 %v2074
        %v2225 = vpop.f32.mrf.mxu0
        %v2226 = vadd.f32 0.0, %v2225
        %v2227 = vpop.f32.mrf.mxu0
        %2228 = vmatmul.bf16.gmra.mxu0 %v2082
        %v2229 = vpop.f32.mrf.mxu0
        %v2230 = vadd.f32 0.0, %v2229
        %v2231 = vpop.f32.mrf.mxu0
        %v2232 = vadd.f32 0.0, %v2231
        %2233 = vmatmul.bf16.gmra.mxu0 %v2090
        %v2234 = vpop.f32.mrf.mxu0
        %v2235 = vpop.f32.mrf.mxu0
        %v2236 = vadd.f32 0.0, %v2235
        %2237 = vmatmul.bf16.gmra.mxu0 %v2098
        %v2238 = vpop.f32.mrf.mxu0
        %v2239 = vadd.f32 0.0, %v2238
        %v2240 = vpop.f32.mrf.mxu0
        %2241 = vmatmul.bf16.gmra.mxu0 %v2106
        %v2242 = vpop.f32.mrf.mxu0
        %v2243 = vadd.f32 0.0, %v2242
        %v2244 = vpop.f32.mrf.mxu0
        %v2245 = vadd.f32 0.0, %v2244
        %2246 = vmatmul.bf16.gmra.mxu0 %v2114
        %v2247 = vpop.f32.mrf.mxu0
        %v2248 = vpop.f32.mrf.mxu0
        %v2249 = vadd.f32 0.0, %v2248
        %2250 = vmatmul.bf16.gmra.mxu0 %v2122
        %v2251 = vpop.f32.mrf.mxu0
        %v2252 = vadd.f32 0.0, %v2251
        %v2253 = vpop.f32.mrf.mxu0
        %2254 = vmatmul.bf16.gmra.mxu0 %v2130
        %v2255 = vpop.f32.mrf.mxu0
        %v2256 = vadd.f32 0.0, %v2255
        %v2257 = vpop.f32.mrf.mxu0
        %v2258 = vadd.f32 0.0, %v2257
        %2259 = vmatmul.bf16.gmra.mxu0 %v2138
        %v2260 = vpop.f32.mrf.mxu0
        %v2261 = vpop.f32.mrf.mxu0
        %v2262 = vadd.f32 0.0, %v2261
        %2263 = vmatmul.bf16.gmra.mxu0 %v2146
        %v2264 = vpop.f32.mrf.mxu0
        %v2265 = vadd.f32 0.0, %v2264
        %v2266 = vpop.f32.mrf.mxu0
        %2267 = vdwg.mxu0
        %v2268 = vadd.f32 %v1926, %v2217
        %v2269 = vadd.f32 %v1927, %v2219
        %v2270 = vadd.f32 %v1928, %v2223
        %v2271 = vadd.f32 %v1929, %v2226
        %v2272 = vadd.f32 %v1930, %v2230
        %v2273 = vadd.f32 %v1931, %v2232
        %v2274 = vadd.f32 %v1932, %v2236
        %v2275 = vadd.f32 %v1933, %v2239
        %v2276 = vadd.f32 %v1934, %v2243
        %v2277 = vadd.f32 %v1935, %v2245
        %v2278 = vadd.f32 %v1936, %v2249
        %v2279 = vadd.f32 %v1937, %v2252
        %v2280 = vadd.f32 %v1938, %v2256
        %v2281 = vadd.f32 %v1939, %v2258
        %v2282 = vadd.f32 %v1940, %v2262
        %v2283 = vadd.f32 %v1941, %v2265
        %v2284 = vld [vmem:[#allocation2 + $0xc] sm:$0xe]
        %s2285 = scalar_lea.vmem [#allocation8], 320
        %v2286 = vld [vmem:[%s2285] sm:$0xf]
        %v2287 = vld [vmem:[%s2285 + $0x4] sm:$0xf]
        %v2288 = vld [vmem:[%s2285 + $0x8] sm:$0xf]
        %v2289 = vld [vmem:[%s2285 + $0xc] sm:$0xf]
        %v2290 = vld [vmem:[%s2285 + $0x10] sm:$0xf]
        %v2291 = vld [vmem:[%s2285 + $0x14] sm:$0xf]
        %v2292 = vld [vmem:[%s2285 + $0x18] sm:$0xf]
        %v2293 = vld [vmem:[%s2285 + $0x1c] sm:$0xf]
        %v2294 = vld [vmem:[%s2285 + $0x20] sm:$0xf]
        %v2295 = vld [vmem:[%s2285 + $0x24] sm:$0xf]
        %v2296 = vld [vmem:[%s2285 + $0x28] sm:$0xf]
        %v2297 = vld [vmem:[%s2285 + $0x2c] sm:$0xf]
        %v2298 = vld [vmem:[%s2285 + $0x30] sm:$0xf]
        %v2299 = vld [vmem:[%s2285 + $0x34] sm:$0xf]
        %v2300 = vld [vmem:[%s2285 + $0x38] sm:$0xf]
        %v2301 = vld [vmem:[%s2285 + $0x3c] sm:$0xf]
        %v2303 = vunpack.c.l.b16 %v2284
        %v2304 = vpack.c.b16 %v2010, %v2303
        %v2305 = vrot.slane %v2304, 1
        %v2306 = vrot.slane %v2035, 1
        %v2307 = vsel %vm1541, %v2305, %v2306
        %v2308 = vrot.slane %v2036, 1
        %v2309 = vsel %vm1541, %v2306, %v2308
        %v2310 = vrot.slane %v2037, 1
        %v2311 = vsel %vm1541, %v2308, %v2310
        %v2312 = vrot.slane %v2038, 1
        %v2313 = vsel %vm1541, %v2310, %v2312
        %v2314 = vrot.slane %v2039, 1
        %v2315 = vsel %vm1541, %v2312, %v2314
        %v2316 = vrot.slane %v2040, 1
        %v2317 = vsel %vm1541, %v2314, %v2316
        %v2318 = vrot.slane %v2041, 1
        %v2319 = vsel %vm1541, %v2316, %v2318
        %v2320 = vrot.slane %v2042, 1
        %v2321 = vsel %vm1541, %v2318, %v2320
        %v2322 = vrot.slane %v2043, 1
        %v2323 = vsel %vm1541, %v2320, %v2322
        %v2324 = vrot.slane %v2044, 1
        %v2325 = vsel %vm1541, %v2322, %v2324
        %v2326 = vrot.slane %v2045, 1
        %v2327 = vsel %vm1541, %v2324, %v2326
        %v2328 = vrot.slane %v2046, 1
        %v2329 = vsel %vm1541, %v2326, %v2328
        %v2358 = vunpack.c.l.b16 %v2286
        %v2359 = vunpack.c.l.b16 %v2287
        %v2360 = vunpack.c.l.b16 %v2288
        %v2361 = vunpack.c.l.b16 %v2289
        %v2362 = vunpack.c.l.b16 %v2290
        %v2363 = vunpack.c.l.b16 %v2291
        %v2364 = vunpack.c.l.b16 %v2292
        %v2365 = vunpack.c.l.b16 %v2293
        %v2366 = vunpack.c.l.b16 %v2294
        %v2367 = vunpack.c.l.b16 %v2295
        %v2368 = vunpack.c.l.b16 %v2296
        %v2369 = vunpack.c.l.b16 %v2297
        %v2370 = vunpack.c.l.b16 %v2298
        %v2371 = vunpack.c.l.b16 %v2299
        %v2372 = vunpack.c.l.b16 %v2300
        %v2373 = vunpack.c.l.b16 %v2301
        %v2374 = vpack.c.b16 %v2359, %v2358
        %v2375 = vpack.c.b16 %v2361, %v2360
        %v2376 = vpack.c.b16 %v2363, %v2362
        %v2377 = vpack.c.b16 %v2365, %v2364
        %v2378 = vpack.c.b16 %v2367, %v2366
        %v2379 = vpack.c.b16 %v2369, %v2368
        %v2380 = vpack.c.b16 %v2371, %v2370
        %v2381 = vpack.c.b16 %v2373, %v2372
        %2390 = vmatpush.bf16.msra.mxu0 %v2381
        %2391 = vmatpush.bf16.msra.mxu0 %v2380
        %2392 = vmatpush.bf16.msra.mxu0 %v2379
        %2393 = vmatpush.bf16.msra.mxu0 %v2378
        %2394 = vmatpush.bf16.msra.mxu0 %v2377
        %2395 = vmatpush.bf16.msra.mxu0 %v2376
        %2396 = vmatpush.bf16.msra.mxu0 %v2375
        %2397 = vmatpush.bf16.msra.mxu0 %v2374
        %2398 = vmatmul.bf16.gmra.mxu0 %v2307
        %v2399 = vpop.f32.mrf.mxu0
        %v2400 = vadd.f32 0.0, %v2399
        %v2401 = vpop.f32.mrf.mxu0
        %v2402 = vadd.f32 0.0, %v2401
        %2403 = vmatmul.bf16.gmra.mxu0 %v2309
        %v2404 = vpop.f32.mrf.mxu0
        %v2405 = vpop.f32.mrf.mxu0
        %v2406 = vadd.f32 0.0, %v2405
        %2407 = vmatmul.bf16.gmra.mxu0 %v2311
        %v2408 = vpop.f32.mrf.mxu0
        %v2409 = vadd.f32 0.0, %v2408
        %v2410 = vpop.f32.mrf.mxu0
        %2411 = vmatmul.bf16.gmra.mxu0 %v2313
        %v2412 = vpop.f32.mrf.mxu0
        %v2413 = vadd.f32 0.0, %v2412
        %v2414 = vpop.f32.mrf.mxu0
        %v2415 = vadd.f32 0.0, %v2414
        %2416 = vmatmul.bf16.gmra.mxu0 %v2315
        %v2417 = vpop.f32.mrf.mxu0
        %v2418 = vpop.f32.mrf.mxu0
        %v2419 = vadd.f32 0.0, %v2418
        %2420 = vmatmul.bf16.gmra.mxu0 %v2317
        %v2421 = vpop.f32.mrf.mxu0
        %v2422 = vadd.f32 0.0, %v2421
        %v2423 = vpop.f32.mrf.mxu0
        %2424 = vmatmul.bf16.gmra.mxu0 %v2319
        %v2425 = vpop.f32.mrf.mxu0
        %v2426 = vadd.f32 0.0, %v2425
        %v2427 = vpop.f32.mrf.mxu0
        %v2428 = vadd.f32 0.0, %v2427
        %2429 = vmatmul.bf16.gmra.mxu0 %v2321
        %v2430 = vpop.f32.mrf.mxu0
        %v2431 = vpop.f32.mrf.mxu0
        %v2432 = vadd.f32 0.0, %v2431
        %2433 = vmatmul.bf16.gmra.mxu0 %v2323
        %v2434 = vpop.f32.mrf.mxu0
        %v2435 = vadd.f32 0.0, %v2434
        %v2436 = vpop.f32.mrf.mxu0
        %2437 = vmatmul.bf16.gmra.mxu0 %v2325
        %v2438 = vpop.f32.mrf.mxu0
        %v2439 = vadd.f32 0.0, %v2438
        %v2440 = vpop.f32.mrf.mxu0
        %v2441 = vadd.f32 0.0, %v2440
        %2442 = vmatmul.bf16.gmra.mxu0 %v2327
        %v2443 = vpop.f32.mrf.mxu0
        %v2444 = vpop.f32.mrf.mxu0
        %v2445 = vadd.f32 0.0, %v2444
        %2446 = vmatmul.bf16.gmra.mxu0 %v2329
        %v2447 = vpop.f32.mrf.mxu0
        %v2448 = vadd.f32 0.0, %v2447
        %v2449 = vpop.f32.mrf.mxu0
        %2450 = vdwg.mxu0
        %v2451 = vadd.f32 %v2268, %v2400
        %v2452 = vadd.f32 %v2269, %v2402
        %v2453 = vadd.f32 %v2270, %v2406
        %v2454 = vadd.f32 %v2271, %v2409
        %v2455 = vadd.f32 %v2272, %v2413
        %v2456 = vadd.f32 %v2273, %v2415
        %v2457 = vadd.f32 %v2274, %v2419
        %v2458 = vadd.f32 %v2275, %v2422
        %v2459 = vadd.f32 %v2276, %v2426
        %v2460 = vadd.f32 %v2277, %v2428
        %v2461 = vadd.f32 %v2278, %v2432
        %v2462 = vadd.f32 %v2279, %v2435
        %v2463 = vadd.f32 %v2280, %v2439
        %v2464 = vadd.f32 %v2281, %v2441
        %v2465 = vadd.f32 %v2282, %v2445
        %v2466 = vadd.f32 %v2283, %v2448
        %v2467 = vld [vmem:[#allocation2 + $0x18] sm:$0xf]
        %v2468 = vld [vmem:[#allocation2 + $0x1c] sm:$0xf]
        %v2469 = vld [vmem:[#allocation2 + $0x20] sm:$0xf]
        %v2470 = vld [vmem:[#allocation2 + $0x24] sm:$0xf]
        %v2471 = vld [vmem:[#allocation2 + $0x28] sm:$0xf]
        %v2472 = vld [vmem:[#allocation2 + $0x2c] sm:$0xf]
        %v2473 = vld [vmem:[#allocation2 + $0x30] sm:$0xf]
        %v2474 = vld [vmem:[#allocation2 + $0x34] sm:$0xf]
        %v2475 = vld [vmem:[#allocation2 + $0x38] sm:$0xf]
        %v2476 = vld [vmem:[#allocation2 + $0x3c] sm:$0xf]
        %v2477 = vld [vmem:[#allocation2 + $0x40] sm:$0xf]
        %v2478 = vld [vmem:[#allocation2 + $0x44] sm:$0xf]
        %v2479 = vld [vmem:[#allocation2 + $0x48] sm:$0xf]
        %v2480 = vld [vmem:[#allocation2 + $0x4c] sm:$0xf]
        %v2481 = vld [vmem:[#allocation2 + $0x50] sm:$0xf]
        %v2482 = vld [vmem:[#allocation2 + $0x54] sm:$0xf]
        %v2483 = vld [vmem:[#allocation2 + $0x58] sm:$0xf]
        %v2484 = vld [vmem:[#allocation2 + $0x5c] sm:$0xf]
        %v2485 = vld [vmem:[#allocation2 + $0x60] sm:$0xf]
        %v2486 = vld [vmem:[#allocation2 + $0x64] sm:$0xf]
        %v2487 = vld [vmem:[#allocation2 + $0x68] sm:$0xf]
        %v2488 = vld [vmem:[#allocation2 + $0x6c] sm:$0xf]
        %v2489 = vld [vmem:[#allocation2 + $0x70] sm:$0xf]
        %v2490 = vld [vmem:[#allocation2 + $0x74] sm:$0xf]
        %s2491 = scalar_lea.vmem [#allocation8], 384
        %v2492 = vld [vmem:[%s2491] sm:$0xf]
        %v2493 = vld [vmem:[%s2491 + $0x4] sm:$0xf]
        %v2494 = vld [vmem:[%s2491 + $0x8] sm:$0xf]
        %v2495 = vld [vmem:[%s2491 + $0xc] sm:$0xf]
        %v2496 = vld [vmem:[%s2491 + $0x10] sm:$0xf]
        %v2497 = vld [vmem:[%s2491 + $0x14] sm:$0xf]
        %v2498 = vld [vmem:[%s2491 + $0x18] sm:$0xf]
        %v2499 = vld [vmem:[%s2491 + $0x1c] sm:$0xf]
        %v2500 = vld [vmem:[%s2491 + $0x20] sm:$0xf]
        %v2501 = vld [vmem:[%s2491 + $0x24] sm:$0xf]
        %v2502 = vld [vmem:[%s2491 + $0x28] sm:$0xf]
        %v2503 = vld [vmem:[%s2491 + $0x2c] sm:$0xf]
        %v2504 = vld [vmem:[%s2491 + $0x30] sm:$0xf]
        %v2505 = vld [vmem:[%s2491 + $0x34] sm:$0xf]
        %v2506 = vld [vmem:[%s2491 + $0x38] sm:$0xf]
        %v2507 = vld [vmem:[%s2491 + $0x3c] sm:$0xf]
        %v2532 = vunpack.c.l.b16 %v2467
        %v2533 = vunpack.c.l.b16 %v2468
        %v2534 = vunpack.c.l.b16 %v2469
        %v2535 = vunpack.c.l.b16 %v2470
        %v2536 = vunpack.c.l.b16 %v2471
        %v2537 = vunpack.c.l.b16 %v2472
        %v2538 = vunpack.c.l.b16 %v2473
        %v2539 = vunpack.c.l.b16 %v2474
        %v2540 = vunpack.c.l.b16 %v2475
        %v2541 = vunpack.c.l.b16 %v2476
        %v2542 = vunpack.c.l.b16 %v2477
        %v2543 = vunpack.c.l.b16 %v2478
        %v2544 = vunpack.c.l.b16 %v2479
        %v2545 = vunpack.c.l.b16 %v2480
        %v2546 = vunpack.c.l.b16 %v2481
        %v2547 = vunpack.c.l.b16 %v2482
        %v2548 = vunpack.c.l.b16 %v2483
        %v2549 = vunpack.c.l.b16 %v2484
        %v2550 = vunpack.c.l.b16 %v2485
        %v2551 = vunpack.c.l.b16 %v2486
        %v2552 = vunpack.c.l.b16 %v2487
        %v2553 = vunpack.c.l.b16 %v2488
        %v2554 = vunpack.c.l.b16 %v2489
        %v2555 = vunpack.c.l.b16 %v2490
        %v2556 = vpack.c.b16 %v2533, %v2532
        %v2557 = vpack.c.b16 %v2535, %v2534
        %v2558 = vpack.c.b16 %v2537, %v2536
        %v2559 = vpack.c.b16 %v2539, %v2538
        %v2560 = vpack.c.b16 %v2541, %v2540
        %v2561 = vpack.c.b16 %v2543, %v2542
        %v2562 = vpack.c.b16 %v2545, %v2544
        %v2563 = vpack.c.b16 %v2547, %v2546
        %v2564 = vpack.c.b16 %v2549, %v2548
        %v2565 = vpack.c.b16 %v2551, %v2550
        %v2566 = vpack.c.b16 %v2553, %v2552
        %v2567 = vpack.c.b16 %v2555, %v2554
        %v2596 = vunpack.c.l.b16 %v2492
        %v2597 = vunpack.c.l.b16 %v2493
        %v2598 = vunpack.c.l.b16 %v2494
        %v2599 = vunpack.c.l.b16 %v2495
        %v2600 = vunpack.c.l.b16 %v2496
        %v2601 = vunpack.c.l.b16 %v2497
        %v2602 = vunpack.c.l.b16 %v2498
        %v2603 = vunpack.c.l.b16 %v2499
        %v2604 = vunpack.c.l.b16 %v2500
        %v2605 = vunpack.c.l.b16 %v2501
        %v2606 = vunpack.c.l.b16 %v2502
        %v2607 = vunpack.c.l.b16 %v2503
        %v2608 = vunpack.c.l.b16 %v2504
        %v2609 = vunpack.c.l.b16 %v2505
        %v2610 = vunpack.c.l.b16 %v2506
        %v2611 = vunpack.c.l.b16 %v2507
        %v2612 = vpack.c.b16 %v2597, %v2596
        %v2613 = vpack.c.b16 %v2599, %v2598
        %v2614 = vpack.c.b16 %v2601, %v2600
        %v2615 = vpack.c.b16 %v2603, %v2602
        %v2616 = vpack.c.b16 %v2605, %v2604
        %v2617 = vpack.c.b16 %v2607, %v2606
        %v2618 = vpack.c.b16 %v2609, %v2608
        %v2619 = vpack.c.b16 %v2611, %v2610
        %2628 = vmatpush.bf16.msra.mxu0 %v2619
        %2629 = vmatpush.bf16.msra.mxu0 %v2618
        %2630 = vmatpush.bf16.msra.mxu0 %v2617
        %2631 = vmatpush.bf16.msra.mxu0 %v2616
        %2632 = vmatpush.bf16.msra.mxu0 %v2615
        %2633 = vmatpush.bf16.msra.mxu0 %v2614
        %2634 = vmatpush.bf16.msra.mxu0 %v2613
        %2635 = vmatpush.bf16.msra.mxu0 %v2612
        %2636 = vmatmul.bf16.gmra.mxu0 %v2556
        %v2637 = vpop.f32.mrf.mxu0
        %v2638 = vadd.f32 0.0, %v2637
        %v2639 = vpop.f32.mrf.mxu0
        %v2640 = vadd.f32 0.0, %v2639
        %2641 = vmatmul.bf16.gmra.mxu0 %v2557
        %v2642 = vpop.f32.mrf.mxu0
        %v2643 = vpop.f32.mrf.mxu0
        %v2644 = vadd.f32 0.0, %v2643
        %2645 = vmatmul.bf16.gmra.mxu0 %v2558
        %v2646 = vpop.f32.mrf.mxu0
        %v2647 = vadd.f32 0.0, %v2646
        %v2648 = vpop.f32.mrf.mxu0
        %2649 = vmatmul.bf16.gmra.mxu0 %v2559
        %v2650 = vpop.f32.mrf.mxu0
        %v2651 = vadd.f32 0.0, %v2650
        %v2652 = vpop.f32.mrf.mxu0
        %v2653 = vadd.f32 0.0, %v2652
        %2654 = vmatmul.bf16.gmra.mxu0 %v2560
        %v2655 = vpop.f32.mrf.mxu0
        %v2656 = vpop.f32.mrf.mxu0
        %v2657 = vadd.f32 0.0, %v2656
        %2658 = vmatmul.bf16.gmra.mxu0 %v2561
        %v2659 = vpop.f32.mrf.mxu0
        %v2660 = vadd.f32 0.0, %v2659
        %v2661 = vpop.f32.mrf.mxu0
        %2662 = vmatmul.bf16.gmra.mxu0 %v2562
        %v2663 = vpop.f32.mrf.mxu0
        %v2664 = vadd.f32 0.0, %v2663
        %v2665 = vpop.f32.mrf.mxu0
        %v2666 = vadd.f32 0.0, %v2665
        %2667 = vmatmul.bf16.gmra.mxu0 %v2563
        %v2668 = vpop.f32.mrf.mxu0
        %v2669 = vpop.f32.mrf.mxu0
        %v2670 = vadd.f32 0.0, %v2669
        %2671 = vmatmul.bf16.gmra.mxu0 %v2564
        %v2672 = vpop.f32.mrf.mxu0
        %v2673 = vadd.f32 0.0, %v2672
        %v2674 = vpop.f32.mrf.mxu0
        %2675 = vmatmul.bf16.gmra.mxu0 %v2565
        %v2676 = vpop.f32.mrf.mxu0
        %v2677 = vadd.f32 0.0, %v2676
        %v2678 = vpop.f32.mrf.mxu0
        %v2679 = vadd.f32 0.0, %v2678
        %2680 = vmatmul.bf16.gmra.mxu0 %v2566
        %v2681 = vpop.f32.mrf.mxu0
        %v2682 = vpop.f32.mrf.mxu0
        %v2683 = vadd.f32 0.0, %v2682
        %2684 = vmatmul.bf16.gmra.mxu0 %v2567
        %v2685 = vpop.f32.mrf.mxu0
        %v2686 = vadd.f32 0.0, %v2685
        %v2687 = vpop.f32.mrf.mxu0
        %2688 = vdwg.mxu0
        %v2689 = vadd.f32 %v2451, %v2638
        %v2690 = vadd.f32 %v2452, %v2640
        %v2691 = vadd.f32 %v2453, %v2644
        %v2692 = vadd.f32 %v2454, %v2647
        %v2693 = vadd.f32 %v2455, %v2651
        %v2694 = vadd.f32 %v2456, %v2653
        %v2695 = vadd.f32 %v2457, %v2657
        %v2696 = vadd.f32 %v2458, %v2660
        %v2697 = vadd.f32 %v2459, %v2664
        %v2698 = vadd.f32 %v2460, %v2666
        %v2699 = vadd.f32 %v2461, %v2670
        %v2700 = vadd.f32 %v2462, %v2673
        %v2701 = vadd.f32 %v2463, %v2677
        %v2702 = vadd.f32 %v2464, %v2679
        %v2703 = vadd.f32 %v2465, %v2683
        %v2704 = vadd.f32 %v2466, %v2686
        %v2705 = vld [vmem:[#allocation2 + $0x18] sm:$0xf]
        %v2706 = vld [vmem:[#allocation2 + $0x1c] sm:$0xf]
        %v2707 = vld [vmem:[#allocation2 + $0x20] sm:$0xf]
        %v2708 = vld [vmem:[#allocation2 + $0x24] sm:$0xf]
        %v2709 = vld [vmem:[#allocation2 + $0x28] sm:$0xf]
        %v2710 = vld [vmem:[#allocation2 + $0x2c] sm:$0xf]
        %v2711 = vld [vmem:[#allocation2 + $0x30] sm:$0xf]
        %v2712 = vld [vmem:[#allocation2 + $0x34] sm:$0xf]
        %v2713 = vld [vmem:[#allocation2 + $0x38] sm:$0xf]
        %v2714 = vld [vmem:[#allocation2 + $0x3c] sm:$0xf]
        %v2715 = vld [vmem:[#allocation2 + $0x40] sm:$0xf]
        %v2716 = vld [vmem:[#allocation2 + $0x44] sm:$0xf]
        %v2717 = vld [vmem:[#allocation2 + $0x48] sm:$0xf]
        %v2718 = vld [vmem:[#allocation2 + $0x4c] sm:$0xf]
        %v2719 = vld [vmem:[#allocation2 + $0x50] sm:$0xf]
        %v2720 = vld [vmem:[#allocation2 + $0x54] sm:$0xf]
        %v2721 = vld [vmem:[#allocation2 + $0x58] sm:$0xf]
        %v2722 = vld [vmem:[#allocation2 + $0x5c] sm:$0xf]
        %v2723 = vld [vmem:[#allocation2 + $0x60] sm:$0xf]
        %v2724 = vld [vmem:[#allocation2 + $0x64] sm:$0xf]
        %v2725 = vld [vmem:[#allocation2 + $0x68] sm:$0xf]
        %v2726 = vld [vmem:[#allocation2 + $0x6c] sm:$0xf]
        %v2727 = vld [vmem:[#allocation2 + $0x70] sm:$0xf]
        %v2728 = vld [vmem:[#allocation2 + $0x74] sm:$0xf]
        %v2729 = vld [vmem:[#allocation2 + $0x78] sm:$0x1]
        %s2730 = scalar_lea.vmem [#allocation8], 448
        %v2731 = vld [vmem:[%s2730] sm:$0xf]
        %v2732 = vld [vmem:[%s2730 + $0x4] sm:$0xf]
        %v2733 = vld [vmem:[%s2730 + $0x8] sm:$0xf]
        %v2734 = vld [vmem:[%s2730 + $0xc] sm:$0xf]
        %v2735 = vld [vmem:[%s2730 + $0x10] sm:$0xf]
        %v2736 = vld [vmem:[%s2730 + $0x14] sm:$0xf]
        %v2737 = vld [vmem:[%s2730 + $0x18] sm:$0xf]
        %v2738 = vld [vmem:[%s2730 + $0x1c] sm:$0xf]
        %v2739 = vld [vmem:[%s2730 + $0x20] sm:$0xf]
        %v2740 = vld [vmem:[%s2730 + $0x24] sm:$0xf]
        %v2741 = vld [vmem:[%s2730 + $0x28] sm:$0xf]
        %v2742 = vld [vmem:[%s2730 + $0x2c] sm:$0xf]
        %v2743 = vld [vmem:[%s2730 + $0x30] sm:$0xf]
        %v2744 = vld [vmem:[%s2730 + $0x34] sm:$0xf]
        %v2745 = vld [vmem:[%s2730 + $0x38] sm:$0xf]
        %v2746 = vld [vmem:[%s2730 + $0x3c] sm:$0xf]
        %v2772 = vunpack.c.l.b16 %v2705
        %v2773 = vunpack.c.l.b16 %v2706
        %v2774 = vunpack.c.l.b16 %v2707
        %v2775 = vunpack.c.l.b16 %v2708
        %v2776 = vunpack.c.l.b16 %v2709
        %v2777 = vunpack.c.l.b16 %v2710
        %v2778 = vunpack.c.l.b16 %v2711
        %v2779 = vunpack.c.l.b16 %v2712
        %v2780 = vunpack.c.l.b16 %v2713
        %v2781 = vunpack.c.l.b16 %v2714
        %v2782 = vunpack.c.l.b16 %v2715
        %v2783 = vunpack.c.l.b16 %v2716
        %v2784 = vunpack.c.l.b16 %v2717
        %v2785 = vunpack.c.l.b16 %v2718
        %v2786 = vunpack.c.l.b16 %v2719
        %v2787 = vunpack.c.l.b16 %v2720
        %v2788 = vunpack.c.l.b16 %v2721
        %v2789 = vunpack.c.l.b16 %v2722
        %v2790 = vunpack.c.l.b16 %v2723
        %v2791 = vunpack.c.l.b16 %v2724
        %v2792 = vunpack.c.l.b16 %v2725
        %v2793 = vunpack.c.l.b16 %v2726
        %v2794 = vunpack.c.l.b16 %v2727
        %v2795 = vunpack.c.l.b16 %v2728
        %v2796 = vunpack.c.l.b16 %v2729
        %v2797 = vpack.c.b16 %v2773, %v2772
        %v2798 = vpack.c.b16 %v2775, %v2774
        %v2799 = vpack.c.b16 %v2777, %v2776
        %v2800 = vpack.c.b16 %v2779, %v2778
        %v2801 = vpack.c.b16 %v2781, %v2780
        %v2802 = vpack.c.b16 %v2783, %v2782
        %v2803 = vpack.c.b16 %v2785, %v2784
        %v2804 = vpack.c.b16 %v2787, %v2786
        %v2805 = vpack.c.b16 %v2789, %v2788
        %v2806 = vpack.c.b16 %v2791, %v2790
        %v2807 = vpack.c.b16 %v2793, %v2792
        %v2808 = vpack.c.b16 %v2795, %v2794
        %v2809 = vpack.c.b16 %v2796, %v2796
        %v2811 = vshrl.u32 %v2797, 16
        %v2813 = vshll.u32 %v2797, 16
        %v2815 = vrot.slane %v2813, 1
        %v2816 = vor.u32 %v2811, %v2815
        %v2818 = vshll.u32 %v2798, 16
        %v2820 = vrot.slane %v2818, 1
        %v2821 = vsel %vm1282, %v2816, %v2820
        %v2822 = vshrl.u32 %v2798, 16
        %v2824 = vor.u32 %v2822, %v2820
        %v2826 = vshll.u32 %v2799, 16
        %v2828 = vrot.slane %v2826, 1
        %v2829 = vsel %vm1282, %v2824, %v2828
        %v2830 = vshrl.u32 %v2799, 16
        %v2832 = vor.u32 %v2830, %v2828
        %v2834 = vshll.u32 %v2800, 16
        %v2836 = vrot.slane %v2834, 1
        %v2837 = vsel %vm1282, %v2832, %v2836
        %v2838 = vshrl.u32 %v2800, 16
        %v2840 = vor.u32 %v2838, %v2836
        %v2842 = vshll.u32 %v2801, 16
        %v2844 = vrot.slane %v2842, 1
        %v2845 = vsel %vm1282, %v2840, %v2844
        %v2846 = vshrl.u32 %v2801, 16
        %v2848 = vor.u32 %v2846, %v2844
        %v2850 = vshll.u32 %v2802, 16
        %v2852 = vrot.slane %v2850, 1
        %v2853 = vsel %vm1282, %v2848, %v2852
        %v2854 = vshrl.u32 %v2802, 16
        %v2856 = vor.u32 %v2854, %v2852
        %v2858 = vshll.u32 %v2803, 16
        %v2860 = vrot.slane %v2858, 1
        %v2861 = vsel %vm1282, %v2856, %v2860
        %v2862 = vshrl.u32 %v2803, 16
        %v2864 = vor.u32 %v2862, %v2860
        %v2866 = vshll.u32 %v2804, 16
        %v2868 = vrot.slane %v2866, 1
        %v2869 = vsel %vm1282, %v2864, %v2868
        %v2870 = vshrl.u32 %v2804, 16
        %v2872 = vor.u32 %v2870, %v2868
        %v2874 = vshll.u32 %v2805, 16
        %v2876 = vrot.slane %v2874, 1
        %v2877 = vsel %vm1282, %v2872, %v2876
        %v2878 = vshrl.u32 %v2805, 16
        %v2880 = vor.u32 %v2878, %v2876
        %v2882 = vshll.u32 %v2806, 16
        %v2884 = vrot.slane %v2882, 1
        %v2885 = vsel %vm1282, %v2880, %v2884
        %v2886 = vshrl.u32 %v2806, 16
        %v2888 = vor.u32 %v2886, %v2884
        %v2890 = vshll.u32 %v2807, 16
        %v2892 = vrot.slane %v2890, 1
        %v2893 = vsel %vm1282, %v2888, %v2892
        %v2894 = vshrl.u32 %v2807, 16
        %v2896 = vor.u32 %v2894, %v2892
        %v2898 = vshll.u32 %v2808, 16
        %v2900 = vrot.slane %v2898, 1
        %v2901 = vsel %vm1282, %v2896, %v2900
        %v2902 = vshrl.u32 %v2808, 16
        %v2904 = vor.u32 %v2902, %v2900
        %v2906 = vshll.u32 %v2809, 16
        %v2908 = vrot.slane %v2906, 1
        %v2909 = vsel %vm1282, %v2904, %v2908
        %v2938 = vunpack.c.l.b16 %v2731
        %v2939 = vunpack.c.l.b16 %v2732
        %v2940 = vunpack.c.l.b16 %v2733
        %v2941 = vunpack.c.l.b16 %v2734
        %v2942 = vunpack.c.l.b16 %v2735
        %v2943 = vunpack.c.l.b16 %v2736
        %v2944 = vunpack.c.l.b16 %v2737
        %v2945 = vunpack.c.l.b16 %v2738
        %v2946 = vunpack.c.l.b16 %v2739
        %v2947 = vunpack.c.l.b16 %v2740
        %v2948 = vunpack.c.l.b16 %v2741
        %v2949 = vunpack.c.l.b16 %v2742
        %v2950 = vunpack.c.l.b16 %v2743
        %v2951 = vunpack.c.l.b16 %v2744
        %v2952 = vunpack.c.l.b16 %v2745
        %v2953 = vunpack.c.l.b16 %v2746
        %v2954 = vpack.c.b16 %v2939, %v2938
        %v2955 = vpack.c.b16 %v2941, %v2940
        %v2956 = vpack.c.b16 %v2943, %v2942
        %v2957 = vpack.c.b16 %v2945, %v2944
        %v2958 = vpack.c.b16 %v2947, %v2946
        %v2959 = vpack.c.b16 %v2949, %v2948
        %v2960 = vpack.c.b16 %v2951, %v2950
        %v2961 = vpack.c.b16 %v2953, %v2952
        %2970 = vmatpush.bf16.msra.mxu0 %v2961
        %2971 = vmatpush.bf16.msra.mxu0 %v2960
        %2972 = vmatpush.bf16.msra.mxu0 %v2959
        %2973 = vmatpush.bf16.msra.mxu0 %v2958
        %2974 = vmatpush.bf16.msra.mxu0 %v2957
        %2975 = vmatpush.bf16.msra.mxu0 %v2956
        %2976 = vmatpush.bf16.msra.mxu0 %v2955
        %2977 = vmatpush.bf16.msra.mxu0 %v2954
        %2978 = vmatmul.bf16.gmra.mxu0 %v2821
        %v2979 = vpop.f32.mrf.mxu0
        %v2980 = vadd.f32 0.0, %v2979
        %v2981 = vpop.f32.mrf.mxu0
        %v2982 = vadd.f32 0.0, %v2981
        %2983 = vmatmul.bf16.gmra.mxu0 %v2829
        %v2984 = vpop.f32.mrf.mxu0
        %v2985 = vpop.f32.mrf.mxu0
        %v2986 = vadd.f32 0.0, %v2985
        %2987 = vmatmul.bf16.gmra.mxu0 %v2837
        %v2988 = vpop.f32.mrf.mxu0
        %v2989 = vadd.f32 0.0, %v2988
        %v2990 = vpop.f32.mrf.mxu0
        %2991 = vmatmul.bf16.gmra.mxu0 %v2845
        %v2992 = vpop.f32.mrf.mxu0
        %v2993 = vadd.f32 0.0, %v2992
        %v2994 = vpop.f32.mrf.mxu0
        %v2995 = vadd.f32 0.0, %v2994
        %2996 = vmatmul.bf16.gmra.mxu0 %v2853
        %v2997 = vpop.f32.mrf.mxu0
        %v2998 = vpop.f32.mrf.mxu0
        %v2999 = vadd.f32 0.0, %v2998
        %3000 = vmatmul.bf16.gmra.mxu0 %v2861
        %v3001 = vpop.f32.mrf.mxu0
        %v3002 = vadd.f32 0.0, %v3001
        %v3003 = vpop.f32.mrf.mxu0
        %3004 = vmatmul.bf16.gmra.mxu0 %v2869
        %v3005 = vpop.f32.mrf.mxu0
        %v3006 = vadd.f32 0.0, %v3005
        %v3007 = vpop.f32.mrf.mxu0
        %v3008 = vadd.f32 0.0, %v3007
        %3009 = vmatmul.bf16.gmra.mxu0 %v2877
        %v3010 = vpop.f32.mrf.mxu0
        %v3011 = vpop.f32.mrf.mxu0
        %v3012 = vadd.f32 0.0, %v3011
        %3013 = vmatmul.bf16.gmra.mxu0 %v2885
        %v3014 = vpop.f32.mrf.mxu0
        %v3015 = vadd.f32 0.0, %v3014
        %v3016 = vpop.f32.mrf.mxu0
        %3017 = vmatmul.bf16.gmra.mxu0 %v2893
        %v3018 = vpop.f32.mrf.mxu0
        %v3019 = vadd.f32 0.0, %v3018
        %v3020 = vpop.f32.mrf.mxu0
        %v3021 = vadd.f32 0.0, %v3020
        %3022 = vmatmul.bf16.gmra.mxu0 %v2901
        %v3023 = vpop.f32.mrf.mxu0
        %v3024 = vpop.f32.mrf.mxu0
        %v3025 = vadd.f32 0.0, %v3024
        %3026 = vmatmul.bf16.gmra.mxu0 %v2909
        %v3027 = vpop.f32.mrf.mxu0
        %v3028 = vadd.f32 0.0, %v3027
        %v3029 = vpop.f32.mrf.mxu0
        %3030 = vdwg.mxu0
        %v3031 = vadd.f32 %v2689, %v2980
        %v3032 = vadd.f32 %v2690, %v2982
        %v3033 = vadd.f32 %v2691, %v2986
        %v3034 = vadd.f32 %v2692, %v2989
        %v3035 = vadd.f32 %v2693, %v2993
        %v3036 = vadd.f32 %v2694, %v2995
        %v3037 = vadd.f32 %v2695, %v2999
        %v3038 = vadd.f32 %v2696, %v3002
        %v3039 = vadd.f32 %v2697, %v3006
        %v3040 = vadd.f32 %v2698, %v3008
        %v3041 = vadd.f32 %v2699, %v3012
        %v3042 = vadd.f32 %v2700, %v3015
        %v3043 = vadd.f32 %v2701, %v3019
        %v3044 = vadd.f32 %v2702, %v3021
        %v3045 = vadd.f32 %v2703, %v3025
        %v3046 = vadd.f32 %v2704, %v3028
        %v3047 = vld [vmem:[#allocation2 + $0x18] sm:$0xe]
        %s3048 = scalar_lea.vmem [#allocation8], 512
        %v3049 = vld [vmem:[%s3048] sm:$0xf]
        %v3050 = vld [vmem:[%s3048 + $0x4] sm:$0xf]
        %v3051 = vld [vmem:[%s3048 + $0x8] sm:$0xf]
        %v3052 = vld [vmem:[%s3048 + $0xc] sm:$0xf]
        %v3053 = vld [vmem:[%s3048 + $0x10] sm:$0xf]
        %v3054 = vld [vmem:[%s3048 + $0x14] sm:$0xf]
        %v3055 = vld [vmem:[%s3048 + $0x18] sm:$0xf]
        %v3056 = vld [vmem:[%s3048 + $0x1c] sm:$0xf]
        %v3057 = vld [vmem:[%s3048 + $0x20] sm:$0xf]
        %v3058 = vld [vmem:[%s3048 + $0x24] sm:$0xf]
        %v3059 = vld [vmem:[%s3048 + $0x28] sm:$0xf]
        %v3060 = vld [vmem:[%s3048 + $0x2c] sm:$0xf]
        %v3061 = vld [vmem:[%s3048 + $0x30] sm:$0xf]
        %v3062 = vld [vmem:[%s3048 + $0x34] sm:$0xf]
        %v3063 = vld [vmem:[%s3048 + $0x38] sm:$0xf]
        %v3064 = vld [vmem:[%s3048 + $0x3c] sm:$0xf]
        %v3066 = vunpack.c.l.b16 %v3047
        %v3067 = vpack.c.b16 %v2773, %v3066
        %v3068 = vrot.slane %v3067, 1
        %v3069 = vrot.slane %v2798, 1
        %v3070 = vsel %vm1541, %v3068, %v3069
        %v3071 = vrot.slane %v2799, 1
        %v3072 = vsel %vm1541, %v3069, %v3071
        %v3073 = vrot.slane %v2800, 1
        %v3074 = vsel %vm1541, %v3071, %v3073
        %v3075 = vrot.slane %v2801, 1
        %v3076 = vsel %vm1541, %v3073, %v3075
        %v3077 = vrot.slane %v2802, 1
        %v3078 = vsel %vm1541, %v3075, %v3077
        %v3079 = vrot.slane %v2803, 1
        %v3080 = vsel %vm1541, %v3077, %v3079
        %v3081 = vrot.slane %v2804, 1
        %v3082 = vsel %vm1541, %v3079, %v3081
        %v3083 = vrot.slane %v2805, 1
        %v3084 = vsel %vm1541, %v3081, %v3083
        %v3085 = vrot.slane %v2806, 1
        %v3086 = vsel %vm1541, %v3083, %v3085
        %v3087 = vrot.slane %v2807, 1
        %v3088 = vsel %vm1541, %v3085, %v3087
        %v3089 = vrot.slane %v2808, 1
        %v3090 = vsel %vm1541, %v3087, %v3089
        %v3091 = vrot.slane %v2809, 1
        %v3092 = vsel %vm1541, %v3089, %v3091
        %v3121 = vunpack.c.l.b16 %v3049
        %v3122 = vunpack.c.l.b16 %v3050
        %v3123 = vunpack.c.l.b16 %v3051
        %v3124 = vunpack.c.l.b16 %v3052
        %v3125 = vunpack.c.l.b16 %v3053
        %v3126 = vunpack.c.l.b16 %v3054
        %v3127 = vunpack.c.l.b16 %v3055
        %v3128 = vunpack.c.l.b16 %v3056
        %v3129 = vunpack.c.l.b16 %v3057
        %v3130 = vunpack.c.l.b16 %v3058
        %v3131 = vunpack.c.l.b16 %v3059
        %v3132 = vunpack.c.l.b16 %v3060
        %v3133 = vunpack.c.l.b16 %v3061
        %v3134 = vunpack.c.l.b16 %v3062
        %v3135 = vunpack.c.l.b16 %v3063
        %v3136 = vunpack.c.l.b16 %v3064
        %v3137 = vpack.c.b16 %v3122, %v3121
        %v3138 = vpack.c.b16 %v3124, %v3123
        %v3139 = vpack.c.b16 %v3126, %v3125
        %v3140 = vpack.c.b16 %v3128, %v3127
        %v3141 = vpack.c.b16 %v3130, %v3129
        %v3142 = vpack.c.b16 %v3132, %v3131
        %v3143 = vpack.c.b16 %v3134, %v3133
        %v3144 = vpack.c.b16 %v3136, %v3135
        %3153 = vmatpush.bf16.msra.mxu0 %v3144
        %3154 = vmatpush.bf16.msra.mxu0 %v3143
        %3155 = vmatpush.bf16.msra.mxu0 %v3142
        %3156 = vmatpush.bf16.msra.mxu0 %v3141
        %3157 = vmatpush.bf16.msra.mxu0 %v3140
        %3158 = vmatpush.bf16.msra.mxu0 %v3139
        %3159 = vmatpush.bf16.msra.mxu0 %v3138
        %3160 = vmatpush.bf16.msra.mxu0 %v3137
        %3161 = vmatmul.bf16.gmra.mxu0 %v3070
        %v3162 = vpop.f32.mrf.mxu0
        %v3163 = vadd.f32 0.0, %v3162
        %v3164 = vpop.f32.mrf.mxu0
        %v3165 = vadd.f32 0.0, %v3164
        %3166 = vmatmul.bf16.gmra.mxu0 %v3072
        %v3167 = vpop.f32.mrf.mxu0
        %v3168 = vpop.f32.mrf.mxu0
        %v3169 = vadd.f32 0.0, %v3168
        %3170 = vmatmul.bf16.gmra.mxu0 %v3074
        %v3171 = vpop.f32.mrf.mxu0
        %v3172 = vadd.f32 0.0, %v3171
        %v3173 = vpop.f32.mrf.mxu0
        %3174 = vmatmul.bf16.gmra.mxu0 %v3076
        %v3175 = vpop.f32.mrf.mxu0
        %v3176 = vadd.f32 0.0, %v3175
        %v3177 = vpop.f32.mrf.mxu0
        %v3178 = vadd.f32 0.0, %v3177
        %3179 = vmatmul.bf16.gmra.mxu0 %v3078
        %v3180 = vpop.f32.mrf.mxu0
        %v3181 = vpop.f32.mrf.mxu0
        %v3182 = vadd.f32 0.0, %v3181
        %3183 = vmatmul.bf16.gmra.mxu0 %v3080
        %v3184 = vpop.f32.mrf.mxu0
        %v3185 = vadd.f32 0.0, %v3184
        %v3186 = vpop.f32.mrf.mxu0
        %3187 = vmatmul.bf16.gmra.mxu0 %v3082
        %v3188 = vpop.f32.mrf.mxu0
        %v3189 = vadd.f32 0.0, %v3188
        %v3190 = vpop.f32.mrf.mxu0
        %v3191 = vadd.f32 0.0, %v3190
        %3192 = vmatmul.bf16.gmra.mxu0 %v3084
        %v3193 = vpop.f32.mrf.mxu0
        %v3194 = vpop.f32.mrf.mxu0
        %v3195 = vadd.f32 0.0, %v3194
        %3196 = vmatmul.bf16.gmra.mxu0 %v3086
        %v3197 = vpop.f32.mrf.mxu0
        %v3198 = vadd.f32 0.0, %v3197
        %v3199 = vpop.f32.mrf.mxu0
        %3200 = vmatmul.bf16.gmra.mxu0 %v3088
        %v3201 = vpop.f32.mrf.mxu0
        %v3202 = vadd.f32 0.0, %v3201
        %v3203 = vpop.f32.mrf.mxu0
        %v3204 = vadd.f32 0.0, %v3203
        %3205 = vmatmul.bf16.gmra.mxu0 %v3090
        %v3206 = vpop.f32.mrf.mxu0
        %v3207 = vpop.f32.mrf.mxu0
        %v3208 = vadd.f32 0.0, %v3207
        %3209 = vmatmul.bf16.gmra.mxu0 %v3092
        %v3210 = vpop.f32.mrf.mxu0
        %v3211 = vadd.f32 0.0, %v3210
        %v3212 = vpop.f32.mrf.mxu0
        %3213 = vdwg.mxu0
        %v3214 = vadd.f32 %v3031, %v3163
        %v3215 = vadd.f32 %v3032, %v3165
        %v3216 = vadd.f32 %v3033, %v3169
        %v3217 = vadd.f32 %v3034, %v3172
        %v3218 = vadd.f32 %v3035, %v3176
        %v3219 = vadd.f32 %v3036, %v3178
        %v3220 = vadd.f32 %v3037, %v3182
        %v3221 = vadd.f32 %v3038, %v3185
        %v3222 = vadd.f32 %v3039, %v3189
        %v3223 = vadd.f32 %v3040, %v3191
        %v3224 = vadd.f32 %v3041, %v3195
        %v3225 = vadd.f32 %v3042, %v3198
        %v3226 = vadd.f32 %v3043, %v3202
        %v3227 = vadd.f32 %v3044, %v3204
        %v3228 = vadd.f32 %v3045, %v3208
        %v3229 = vadd.f32 %v3046, %v3211
        %v3230 = vmax.f32 %v3214, 0.0
        %v3231 = vmax.f32 %v3215, 0.0
        %v3232 = vmax.f32 %v3216, 0.0
        %v3233 = vmax.f32 %v3217, 0.0
        %v3234 = vmax.f32 %v3218, 0.0
        %v3235 = vmax.f32 %v3219, 0.0
        %v3236 = vmax.f32 %v3220, 0.0
        %v3237 = vmax.f32 %v3221, 0.0
        %v3238 = vmax.f32 %v3222, 0.0
        %v3239 = vmax.f32 %v3223, 0.0
        %v3240 = vmax.f32 %v3224, 0.0
        %v3241 = vmax.f32 %v3225, 0.0
        %v3242 = vmax.f32 %v3226, 0.0
        %v3243 = vmax.f32 %v3227, 0.0
        %v3244 = vmax.f32 %v3228, 0.0
        %v3245 = vmax.f32 %v3229, 0.0
        %v3246 = vpack.c.bf16 %v3230, %v3230
        %v3247 = vpack.c.bf16 %v3231, %v3231
        %v3248 = vpack.c.bf16 %v3232, %v3232
        %v3249 = vpack.c.bf16 %v3233, %v3233
        %v3250 = vpack.c.bf16 %v3234, %v3234
        %v3251 = vpack.c.bf16 %v3235, %v3235
        %v3252 = vpack.c.bf16 %v3236, %v3236
        %v3253 = vpack.c.bf16 %v3237, %v3237
        %v3254 = vpack.c.bf16 %v3238, %v3238
        %v3255 = vpack.c.bf16 %v3239, %v3239
        %v3256 = vpack.c.bf16 %v3240, %v3240
        %v3257 = vpack.c.bf16 %v3241, %v3241
        %v3258 = vpack.c.bf16 %v3242, %v3242
        %v3259 = vpack.c.bf16 %v3243, %v3243
        %v3260 = vpack.c.bf16 %v3244, %v3244
        %v3261 = vpack.c.bf16 %v3245, %v3245
        %v3262 = vld [vmem:[#allocation9] sm:$0xf]
        %v3263 = vld [vmem:[#allocation9 + $0x4] sm:$0xf]
        %v3264 = vld [vmem:[#allocation9 + $0x8] sm:$0xf]
        %v3265 = vld [vmem:[#allocation9 + $0xc] sm:$0xf]
        %v3266 = vld [vmem:[#allocation9 + $0x10] sm:$0xf]
        %v3267 = vld [vmem:[#allocation9 + $0x14] sm:$0xf]
        %v3268 = vld [vmem:[#allocation9 + $0x18] sm:$0xf]
        %v3269 = vld [vmem:[#allocation9 + $0x1c] sm:$0xf]
        %v3270 = vld [vmem:[#allocation9 + $0x20] sm:$0xf]
        %v3271 = vld [vmem:[#allocation9 + $0x24] sm:$0xf]
        %v3272 = vld [vmem:[#allocation9 + $0x28] sm:$0xf]
        %v3273 = vld [vmem:[#allocation9 + $0x2c] sm:$0xf]
        %v3274 = vld [vmem:[#allocation9 + $0x30] sm:$0xf]
        %v3275 = vld [vmem:[#allocation9 + $0x34] sm:$0xf]
        %v3276 = vld [vmem:[#allocation9 + $0x38] sm:$0xf]
        %v3277 = vld [vmem:[#allocation9 + $0x3c] sm:$0xf]
        %v3278 = vunpack.c.l.bf16 %v408
        %v3279 = vunpack.c.l.bf16 %v409
        %v3280 = vunpack.c.l.bf16 %v410
        %v3281 = vunpack.c.l.bf16 %v411
        %v3282 = vunpack.c.l.bf16 %v412
        %v3283 = vunpack.c.l.bf16 %v413
        %v3284 = vunpack.c.l.bf16 %v414
        %v3285 = vunpack.c.l.bf16 %v415
        %v3286 = vunpack.c.l.bf16 %v416
        %v3287 = vunpack.c.l.bf16 %v417
        %v3288 = vunpack.c.l.bf16 %v418
        %v3289 = vunpack.c.l.bf16 %v419
        %v3290 = vunpack.c.l.bf16 %v420
        %v3291 = vunpack.c.l.bf16 %v421
        %v3292 = vunpack.c.l.bf16 %v422
        %v3293 = vunpack.c.l.bf16 %v423
        %v3294 = vld [vmem:[%s6] sm:$0x1]
        %v3296 = vperm.slane %v3294, 0
        %v3314 = vunpack.c.l.b16 %v3246
        %v3315 = vunpack.c.l.b16 %v3247
        %v3316 = vunpack.c.l.b16 %v3248
        %v3317 = vunpack.c.l.b16 %v3249
        %v3318 = vunpack.c.l.b16 %v3250
        %v3319 = vunpack.c.l.b16 %v3251
        %v3320 = vunpack.c.l.b16 %v3252
        %v3321 = vunpack.c.l.b16 %v3253
        %v3322 = vunpack.c.l.b16 %v3254
        %v3323 = vunpack.c.l.b16 %v3255
        %v3324 = vunpack.c.l.b16 %v3256
        %v3325 = vunpack.c.l.b16 %v3257
        %v3326 = vunpack.c.l.b16 %v3258
        %v3327 = vunpack.c.l.b16 %v3259
        %v3328 = vunpack.c.l.b16 %v3260
        %v3329 = vunpack.c.l.b16 %v3261
        %v3330 = vpack.c.b16 %v3315, %v3314
        %v3331 = vpack.c.b16 %v3317, %v3316
        %v3332 = vpack.c.b16 %v3319, %v3318
        %v3333 = vpack.c.b16 %v3321, %v3320
        %v3334 = vpack.c.b16 %v3323, %v3322
        %v3335 = vpack.c.b16 %v3325, %v3324
        %v3336 = vpack.c.b16 %v3327, %v3326
        %v3337 = vpack.c.b16 %v3329, %v3328
        %v3362 = vunpack.c.l.b16 %v3262
        %v3363 = vunpack.c.l.b16 %v3263
        %v3364 = vunpack.c.l.b16 %v3264
        %v3365 = vunpack.c.l.b16 %v3265
        %v3366 = vunpack.c.l.b16 %v3266
        %v3367 = vunpack.c.l.b16 %v3267
        %v3368 = vunpack.c.l.b16 %v3268
        %v3369 = vunpack.c.l.b16 %v3269
        %v3370 = vunpack.c.l.b16 %v3270
        %v3371 = vunpack.c.l.b16 %v3271
        %v3372 = vunpack.c.l.b16 %v3272
        %v3373 = vunpack.c.l.b16 %v3273
        %v3374 = vunpack.c.l.b16 %v3274
        %v3375 = vunpack.c.l.b16 %v3275
        %v3376 = vunpack.c.l.b16 %v3276
        %v3377 = vunpack.c.l.b16 %v3277
        %v3378 = vpack.c.b16 %v3363, %v3362
        %v3379 = vpack.c.b16 %v3365, %v3364
        %v3380 = vpack.c.b16 %v3367, %v3366
        %v3381 = vpack.c.b16 %v3369, %v3368
        %v3382 = vpack.c.b16 %v3371, %v3370
        %v3383 = vpack.c.b16 %v3373, %v3372
        %v3384 = vpack.c.b16 %v3375, %v3374
        %v3385 = vpack.c.b16 %v3377, %v3376
        %3394 = vmatpush.bf16.msra.mxu0 %v3385
        %3395 = vmatpush.bf16.msra.mxu0 %v3384
        %3396 = vmatpush.bf16.msra.mxu0 %v3383
        %3397 = vmatpush.bf16.msra.mxu0 %v3382
        %3398 = vmatpush.bf16.msra.mxu0 %v3381
        %3399 = vmatpush.bf16.msra.mxu0 %v3380
        %3400 = vmatpush.bf16.msra.mxu0 %v3379
        %3401 = vmatpush.bf16.msra.mxu0 %v3378
        %3402 = vmatmul.bf16.gmra.mxu0 %v3330
        %v3403 = vpop.f32.mrf.mxu0
        %v3404 = vadd.f32 %v3296, %v3403
        %v3405 = vpop.f32.mrf.mxu0
        %v3406 = vadd.f32 %v3296, %v3405
        %3407 = vmatmul.bf16.gmra.mxu0 %v3331
        %v3408 = vpop.f32.mrf.mxu0
        %v3409 = vadd.f32 %v3296, %v3408
        %v3410 = vpop.f32.mrf.mxu0
        %v3411 = vadd.f32 %v3296, %v3410
        %3412 = vmatmul.bf16.gmra.mxu0 %v3332
        %v3413 = vpop.f32.mrf.mxu0
        %v3414 = vadd.f32 %v3296, %v3413
        %v3415 = vpop.f32.mrf.mxu0
        %v3416 = vadd.f32 %v3296, %v3415
        %3417 = vmatmul.bf16.gmra.mxu0 %v3333
        %v3418 = vpop.f32.mrf.mxu0
        %v3419 = vadd.f32 %v3296, %v3418
        %v3420 = vpop.f32.mrf.mxu0
        %v3421 = vadd.f32 %v3296, %v3420
        %3422 = vmatmul.bf16.gmra.mxu0 %v3334
        %v3423 = vpop.f32.mrf.mxu0
        %v3424 = vadd.f32 %v3296, %v3423
        %v3425 = vpop.f32.mrf.mxu0
        %v3426 = vadd.f32 %v3296, %v3425
        %3427 = vmatmul.bf16.gmra.mxu0 %v3335
        %v3428 = vpop.f32.mrf.mxu0
        %v3429 = vadd.f32 %v3296, %v3428
        %v3430 = vpop.f32.mrf.mxu0
        %v3431 = vadd.f32 %v3296, %v3430
        %3432 = vmatmul.bf16.gmra.mxu0 %v3336
        %v3433 = vpop.f32.mrf.mxu0
        %v3434 = vadd.f32 %v3296, %v3433
        %v3435 = vpop.f32.mrf.mxu0
        %v3436 = vadd.f32 %v3296, %v3435
        %3437 = vmatmul.bf16.gmra.mxu0 %v3337
        %v3438 = vpop.f32.mrf.mxu0
        %v3439 = vadd.f32 %v3296, %v3438
        %v3440 = vpop.f32.mrf.mxu0
        %v3441 = vadd.f32 %v3296, %v3440
        %3442 = vdwg.mxu0
        %v3443 = vadd.f32 %v3404, %v3278
        %v3444 = vadd.f32 %v3406, %v3279
        %v3445 = vadd.f32 %v3409, %v3280
        %v3446 = vadd.f32 %v3411, %v3281
        %v3447 = vadd.f32 %v3414, %v3282
        %v3448 = vadd.f32 %v3416, %v3283
        %v3449 = vadd.f32 %v3419, %v3284
        %v3450 = vadd.f32 %v3421, %v3285
        %v3451 = vadd.f32 %v3424, %v3286
        %v3452 = vadd.f32 %v3426, %v3287
        %v3453 = vadd.f32 %v3429, %v3288
        %v3454 = vadd.f32 %v3431, %v3289
        %v3455 = vadd.f32 %v3434, %v3290
        %v3456 = vadd.f32 %v3436, %v3291
        %v3457 = vadd.f32 %v3439, %v3292
        %v3458 = vadd.f32 %v3441, %v3293
        %v3459 = vmax.f32 %v3443, 0.0
        %v3460 = vmax.f32 %v3444, 0.0
        %v3461 = vmax.f32 %v3445, 0.0
        %v3462 = vmax.f32 %v3446, 0.0
        %v3463 = vmax.f32 %v3447, 0.0
        %v3464 = vmax.f32 %v3448, 0.0
        %v3465 = vmax.f32 %v3449, 0.0
        %v3466 = vmax.f32 %v3450, 0.0
        %v3467 = vmax.f32 %v3451, 0.0
        %v3468 = vmax.f32 %v3452, 0.0
        %v3469 = vmax.f32 %v3453, 0.0
        %v3470 = vmax.f32 %v3454, 0.0
        %v3471 = vmax.f32 %v3455, 0.0
        %v3472 = vmax.f32 %v3456, 0.0
        %v3473 = vmax.f32 %v3457, 0.0
        %v3474 = vmax.f32 %v3458, 0.0
        %v3475 = vpack.c.bf16 %v3459, %v3459
        %v3476 = vpack.c.bf16 %v3460, %v3460
        %v3477 = vpack.c.bf16 %v3461, %v3461
        %v3478 = vpack.c.bf16 %v3462, %v3462
        %v3479 = vpack.c.bf16 %v3463, %v3463
        %v3480 = vpack.c.bf16 %v3464, %v3464
        %v3481 = vpack.c.bf16 %v3465, %v3465
        %v3482 = vpack.c.bf16 %v3466, %v3466
        %v3483 = vpack.c.bf16 %v3467, %v3467
        %v3484 = vpack.c.bf16 %v3468, %v3468
        %v3485 = vpack.c.bf16 %v3469, %v3469
        %v3486 = vpack.c.bf16 %v3470, %v3470
        %v3487 = vpack.c.bf16 %v3471, %v3471
        %v3488 = vpack.c.bf16 %v3472, %v3472
        %v3489 = vpack.c.bf16 %v3473, %v3473
        %v3490 = vpack.c.bf16 %v3474, %v3474
        %3491 = vst [vmem:[%s362] sm:$0xf] %v3475
        %3492 = vst [vmem:[%s362 + $0x4] sm:$0xf] %v3476
        %3493 = vst [vmem:[%s362 + $0x8] sm:$0xf] %v3477
        %3494 = vst [vmem:[%s362 + $0xc] sm:$0xf] %v3478
        %3495 = vst [vmem:[%s362 + $0x10] sm:$0xf] %v3479
        %3496 = vst [vmem:[%s362 + $0x14] sm:$0xf] %v3480
        %3497 = vst [vmem:[%s362 + $0x18] sm:$0xf] %v3481
        %3498 = vst [vmem:[%s362 + $0x1c] sm:$0xf] %v3482
        %3499 = vst [vmem:[%s362 + $0x20] sm:$0xf] %v3483
        %3500 = vst [vmem:[%s362 + $0x24] sm:$0xf] %v3484
        %3501 = vst [vmem:[%s362 + $0x28] sm:$0xf] %v3485
        %3502 = vst [vmem:[%s362 + $0x2c] sm:$0xf] %v3486
        %3503 = vst [vmem:[%s362 + $0x30] sm:$0xf] %v3487
        %3504 = vst [vmem:[%s362 + $0x34] sm:$0xf] %v3488
        %3505 = vst [vmem:[%s362 + $0x38] sm:$0xf] %v3489
        %3506 = vst [vmem:[%s362 + $0x3c] sm:$0xf] %v3490
        %s3507 = sand.u32 %s200, 1
        %s3508 = scalar_lea.sflag [#allocation5], %s3507
        %s3509 = sand.u32 %s200, 1
        %s3510 = smul.addr %s3509, 64
        %s3511 = scalar_lea.vmem [#allocation11], %s3510
        // Predicated region
        $region77: #{tpu_custom_call.1} parent=47 // pred_check
          %p3512 = pneg %p210
        $region78: #{tpu_custom_call.1} parent=47 // pred_check_branch
          %3514 = sbr.rel (%p3512) target = $region80
        $region79: #{tpu_custom_call.1} parent=47 // pred_region
          %s3515 = smul.u32 8, %s31
          %3517 = vsyncadd %s3508, 0
          %s3518 = smul.addr %s3515, 2
          %s3519 = smul.addr %s30, 32
          %s3520 = sadd.s32 %s3518, %s3519
          %s3521 = smul.addr %s3520, 4
          %s3522 = scalar_lea.hbm %s7, %s3521
          %s3523 = sshll.u32 %s3511, 4
          %s3524 = int_to_ptr.vmem [resolvable:$true] %s3523
          %s3525 = sshll.u32 %s3522, 4
          %s3526 = int_to_ptr.hbm [resolvable:$true] %s3525
          %3531 = dma.vmem_to_hbm [thread:$0]  %s3524, 1024, %s3526, %s3508, 64, 64, 4
        $region80: #{tpu_custom_call.1} parent=47 // pred_fallthru
          _
      $region48: #{tpu_custom_call.1} parent=5 // pred_fallthru
        _
      %p3532 = scmp.le.s32.totalorder 2, %s21
      // Predicated region
      $region81: #{tpu_custom_call.1} parent=5 // pred_check
        %p3533 = pneg %p3532
      $region82: #{tpu_custom_call.1} parent=5 // pred_check_branch
        %3535 = sbr.rel (%p3533) target = $region84
      $region83: #{tpu_custom_call.1} parent=5 // pred_region
        %s3536 = ssub.s32 %s21, 2
        // Predicated region
        $region85: #{tpu_custom_call.1} parent=83 // pred_check
          %p3537 = pneg %p216
        $region86: #{tpu_custom_call.1} parent=83 // pred_check_branch
          %3539 = sbr.rel (%p3537) target = $region88
        $region87: #{tpu_custom_call.1} parent=83 // pred_region
          %s3540 = sand.u32 %s201, 1
          %s3541 = scalar_lea.sflag [#allocation5], %s3540
          %s3542 = sand.u32 %s201, 1
          %s3543 = smul.addr %s3542, 64
          %s3544 = scalar_lea.vmem [#allocation11], %s3543
          %3546 = dma.done %s3541, 1024
        $region88: #{tpu_custom_call.1} parent=83 // pred_fallthru
          _
      $region84: #{tpu_custom_call.1} parent=5 // pred_fallthru
        _
    $region6: #{tpu_custom_call.1} parent=1 // loop_footer
      %s25 = sadd.s32 1, %s21
    $region7: #{tpu_custom_call.1} parent=1 // loop_footer_branch
      %20 = sbr.rel target = $region3
    $region8: #{tpu_custom_call.1} parent=1 // loop_exit
      _
    %3547 = vsyncpa [#allocation4], 1
    %s3548 = scalar_lea.sflag [#allocation4], 1
    %3549 = vsyncpa %s3548, 1
    %3550 = vsyncpa [#allocation7], 1
    %3551 = vsyncpa [#allocation10], 1
    %3552 = vsyncpa [#allocation5], 1
    %s3553 = scalar_lea.sflag [#allocation5], 1
    %3554 = vsyncpa %s3553, 1

</llo_original>
